<compile_context>
chip_gen: v6e
topology: v6e:2x2x1
jax: 0.10.0
libtpu: 0.0.40
codegen_flags: <defaults>
</compile_context>

<pallas_src>
import jax
import jax.numpy as jnp
import numpy as np
from jax.experimental import pallas as pl
from jax.experimental.pallas import tpu as pltpu

LRELU_SLOPE = 0.1
KERNEL = 3
PAD = KERNEL // 2          # 1: per-conv spatial padding
HALO = 2 * PAD             # 2: extra rows per side of x needed by the fused two-conv chain


def _lrelu(v):
    return jnp.where(v >= 0, v, LRELU_SLOPE * v)


def _conv3x3(padded_f32, w_ref, rows, W, Cp):
    """padded_f32: (rows + 2, W + 2, Cp) f32 zero-padded conv input (value).
    Returns (rows * W, Cp) f32.  The three kw-shifted views are cast to bf16 and
    concatenated along the lane dim once; the kh dimension becomes three accumulating
    K = 3*Cp MXU matmuls (kh slices are on the leading dim, i.e. free)."""
    cols = jnp.concatenate(
        [padded_f32[:, kw:kw + W, :].astype(jnp.bfloat16) for kw in range(KERNEL)],
        axis=-1)                                              # (rows+2, W, 3*Cp) bf16
    out = None
    for kh in range(KERNEL):
        patches = cols[kh:kh + rows].reshape(rows * W, KERNEL * Cp)
        part = jnp.dot(patches,
                       w_ref[kh * KERNEL * Cp:(kh + 1) * KERNEL * Cp, :],
                       preferred_element_type=jnp.float32)
        out = part if out is None else out + part
    return out


def resblock2d_kernel(x_hbm, w1_ref, b1_ref, w2_ref, b2_ref, o_ref,
                      xslab_ref, hpad_ref, sem):
    # x_hbm     : (B, H+4, W+2, Cp) f32, HBM (pre zero-padded), manual DMA per h-tile
    # w*_ref    : (9*Cp, Cp)        bf16 im2col weight matrices (VMEM)
    # b*_ref    : (1, Cp)           f32
    # o_ref     : (1, TH, W, Cp)    f32 output row tile
    # xslab_ref : (2, TH+4, W+2, Cp) f32 double-buffered x slab
    # hpad_ref  : (TH+2, W+2, Cp)   f32 conv2 input (lrelu(conv1)) with zero halo
    # sem       : DMA semaphores (2,)
    TH, W, Cp = o_ref.shape[1], o_ref.shape[2], o_ref.shape[3]
    b = pl.program_id(0)
    t = pl.program_id(1)
    nt = pl.num_programs(1)
    slab_rows = TH + 2 * HALO
    slot = t % 2

    def slab_copy(ti, sl):
        return pltpu.make_async_copy(
            x_hbm.at[b, pl.ds(ti * TH, slab_rows)],
            xslab_ref.at[sl],
            sem.at[sl])

    # Current tile's slab was prefetched by the previous h-step, except at t == 0.
    @pl.when(t == 0)
    def _fetch_first():
        slab_copy(0, 0).start()

    # Prefetch the next h-tile of the SAME image (the t axis is "arbitrary", so within an
    # image the grid steps run sequentially on one core and this overlaps with compute).
    @pl.when(t + 1 < nt)
    def _prefetch_next():
        slab_copy(t + 1, 1 - slot).start()

    slab_copy(t, slot).wait()

    x_slab = xslab_ref[slot]                         # (TH+4, W+2, Cp) f32
    xs = _lrelu(x_slab)                              # lrelu(0) == 0, so padding stays zero

    # ---- conv1 (+bias, lrelu) over TH + 2 rows: 1-row recomputed halo for conv2 ----
    R1 = TH + 2 * PAD
    h1 = _conv3x3(xs, w1_ref, R1, W, Cp).reshape(R1, W, Cp) + b1_ref[0]
    h1 = _lrelu(h1)

    # Halo rows that fall outside the image are conv2's zero padding, not conv1 output.
    zero_row = jnp.zeros((PAD, W, Cp), jnp.float32)
    hpad_ref[0:PAD, PAD:W + PAD, :] = jnp.where(t == 0, zero_row, h1[0:PAD])
    hpad_ref[R1 - PAD:R1, PAD:W + PAD, :] = jnp.where(t == nt - 1, zero_row, h1[R1 - PAD:R1])
    hpad_ref[PAD:R1 - PAD, PAD:W + PAD, :] = h1[PAD:R1 - PAD]
    hpad_ref[:, 0:PAD, :] = jnp.zeros((R1, PAD, Cp), jnp.float32)
    hpad_ref[:, W + PAD:W + 2 * PAD, :] = jnp.zeros((R1, PAD, Cp), jnp.float32)

    # ---- conv2 + bias + residual + cast, fused epilogue ----
    h2 = _conv3x3(hpad_ref[...], w2_ref, TH, W, Cp).reshape(TH, W, Cp) + b2_ref[0]
    x_res = x_slab[HALO:HALO + TH, PAD:W + PAD, :]   # original x rows (f32) for the residual
    o_ref[0] = (x_res + h2).astype(o_ref.dtype)


def _kernel_vmem_bytes(TH, W, Cp):
    """Conservative per-grid-step VMEM estimate used to size the h-tile."""
    slab = 2 * (TH + 2 * HALO) * (W + 2 * PAD) * Cp * 4       # double-buffered x slab (f32)
    hpad = (TH + 2 * PAD) * (W + 2 * PAD) * Cp * 4            # conv2 input scratch (f32)
    wts = 2 * 2 * (KERNEL * KERNEL * Cp) * Cp * 2             # w1,w2 bf16, double-buffered
    outb = 2 * TH * W * Cp * 4                                # double-buffered output block
    trans = ((TH + 2 * HALO) * (W + 2 * PAD) * Cp * 4         # lrelu(x) value
             + (TH + 2 * HALO) * W * KERNEL * Cp * 2          # (rows, W, 3*Cp) bf16 operand
             + 2 * (TH + 2 * PAD) * W * Cp * 4)               # f32 conv outputs
    return slab + hpad + wts + outb + trans


def _vmem_limit_bytes():
    """Generation-aware VMEM limit: ~70% of physical VMEM (v5e/v6e 128 MiB -> ~90 MiB,
    v7x 64 MiB -> ~45 MiB); safe ~45 MiB fallback if the query is unavailable."""
    try:
        cap = int(pltpu.get_tpu_info().vmem_capacity_bytes)
    except Exception:
        cap = 64 * 1024 * 1024
    return min(int(cap * 0.7), 100 * 1024 * 1024)


def _pick_tile_h(H, W, Cp, budget_bytes):
    divisors = [d for d in range(1, H + 1) if H % d == 0]
    fitting = [d for d in divisors if _kernel_vmem_bytes(d, W, Cp) <= budget_bytes]
    if not fitting:
        return 1
    # Prefer the smallest tile that keeps the conv1 halo recompute small (TH >= 32) and
    # feeds the MXU with >= ~1024 rows per matmul; otherwise the largest tile that fits.
    for d in fitting:
        if d >= min(32, H) and d * W >= 1024:
            return d
    return fitting[-1]


def resblock2d_pallas(x_nchw, w1_oihw, b1, w2_oihw, b2):
    """x_nchw: [B, C, H, W] float32 -> [B, C, H, W]; same semantics as ResBlock2d.forward.
    Contract: conv MXU operands are bf16 (f32 accumulation), ~1e-2 relative error."""
    B, C, H, W = x_nchw.shape
    # TODO(synk): for C far below 128 (like the C=4 demo) the lane padding below wastes ~Cp/C of
    # HBM/VMEM/MXU; a W-major lane packing would be needed to avoid it.
    Cp = ((C + 127) // 128) * 128
    vmem_limit = _vmem_limit_bytes()
    TH = _pick_tile_h(H, W, Cp, budget_bytes=vmem_limit // 2)

    # NCHW -> NHWC; zero-pad channels to lane-dense Cp, rows by HALO and cols by PAD
    # (conv zero-padding; lrelu(0) == 0, so padding before the in-kernel lrelu is equivalent).
    x_nhwc = jnp.transpose(x_nchw, (0, 2, 3, 1)).astype(jnp.float32)
    x_pad = jnp.pad(x_nhwc, ((0, 0), (HALO, HALO), (PAD, PAD), (0, Cp - C)))

    def prep_w(w):
        # OIHW -> (kh, kw, Cin, Cout), zero-pad channels, flatten to the im2col matrix (bf16).
        w = jnp.transpose(w, (2, 3, 1, 0))
        w = jnp.pad(w, ((0, 0), (0, 0), (0, Cp - C), (0, Cp - C)))
        return w.reshape(KERNEL * KERNEL * Cp, Cp).astype(jnp.bfloat16)

    def prep_b(bias):
        return jnp.pad(bias, (0, Cp - C)).reshape(1, Cp).astype(jnp.float32)

    w1m, w2m = prep_w(w1_oihw), prep_w(w2_oihw)
    b1p, b2p = prep_b(b1), prep_b(b2)

    out_nhwc = pl.pallas_call(
        resblock2d_kernel,
        out_shape=jax.ShapeDtypeStruct((B, H, W, Cp), jnp.float32),
        grid=(B, H // TH),
        in_specs=[
            pl.BlockSpec(memory_space=pl.ANY),                               # x (HBM, manual DMA)
            pl.BlockSpec((KERNEL * KERNEL * Cp, Cp), lambda b, t: (0, 0)),   # w1 (im2col, bf16)
            pl.BlockSpec((1, Cp), lambda b, t: (0, 0)),                      # b1
            pl.BlockSpec((KERNEL * KERNEL * Cp, Cp), lambda b, t: (0, 0)),   # w2 (im2col, bf16)
            pl.BlockSpec((1, Cp), lambda b, t: (0, 0)),                      # b2
        ],
        out_specs=pl.BlockSpec((1, TH, W, Cp), lambda b, t: (b, t, 0, 0)),
        scratch_shapes=[
            pltpu.VMEM((2, TH + 2 * HALO, W + 2 * PAD, Cp), jnp.float32),    # x slab, 2 slots
            pltpu.VMEM((TH + 2 * PAD, W + 2 * PAD, Cp), jnp.float32),        # padded conv1 output
            pltpu.SemaphoreType.DMA((2,)),
        ],
        compiler_params=pltpu.CompilerParams(
            dimension_semantics=("parallel", "arbitrary"),
            vmem_limit_bytes=vmem_limit,
        ),
    )(x_pad, w1m, b1p, w2m, b2p)

    return jnp.transpose(out_nhwc[..., :C], (0, 3, 1, 2))                    # NHWC -> NCHW


def resblock2d_reference(x_nchw, w1_oihw, b1, w2_oihw, b2):
    """Pure-JAX reference with torch Conv2d (cross-correlation, NCHW) semantics, f32."""
    def conv(v, w, b):
        out = jax.lax.conv_general_dilated(
            v, w, window_strides=(1, 1), padding=((PAD, PAD), (PAD, PAD)),
            dimension_numbers=("NCHW", "OIHW", "NCHW"))
        return out + b[None, :, None, None]

    h = conv(_lrelu(x_nchw), w1_oihw, b1)
    h = conv(_lrelu(h), w2_oihw, b2)
    return x_nchw + h


if __name__ == "__main__":
    B, C, H, W = 2, 4, 16, 16

    key = jax.random.PRNGKey(0)
    kx, k1, k2, k3, k4 = jax.random.split(key, 5)
    x = jax.random.normal(kx, (B, C, H, W), dtype=jnp.float32)
    # Deterministic synthetic Conv2d parameters (OIHW weights, per-channel bias).
    w1 = 0.2 * jax.random.normal(k1, (C, C, KERNEL, KERNEL), dtype=jnp.float32)
    b1 = 0.1 * jax.random.normal(k2, (C,), dtype=jnp.float32)
    w2 = 0.2 * jax.random.normal(k3, (C, C, KERNEL, KERNEL), dtype=jnp.float32)
    b2 = 0.1 * jax.random.normal(k4, (C,), dtype=jnp.float32)

    out = jax.block_until_ready(jax.jit(resblock2d_pallas)(x, w1, b1, w2, b2))
    ref = jax.block_until_ready(resblock2d_reference(x, w1, b1, w2, b2))

    assert out.shape == (B, C, H, W) and out.dtype == jnp.float32
    # Tolerance covers bf16 rounding of the MXU operands (accumulation is f32).
    np.testing.assert_allclose(np.asarray(out), np.asarray(ref), rtol=3e-2, atol=3e-2)
    print("KERNEL_OK")
</pallas_src>

<mosaic_0001>
module attributes {stable_mosaic.version = 11 : i64} {
  func.func @resblock2d_kernel(%arg0: i32, %arg1: i32, %arg2: memref<2x20x18x128xf32, #tpu.memory_space<any>>, %arg3: memref<1152x128xbf16, #tpu.memory_space<vmem>>, %arg4: memref<1x128xf32, #tpu.memory_space<vmem>>, %arg5: memref<1152x128xbf16, #tpu.memory_space<vmem>>, %arg6: memref<1x128xf32, #tpu.memory_space<vmem>>, %arg7: memref<1x16x16x128xf32, #tpu.memory_space<vmem>>, %arg8: memref<2x20x18x128xf32, #tpu.memory_space<vmem>>, %arg9: memref<18x18x128xf32, #tpu.memory_space<vmem>>, %arg10: memref<2x!tpu.dma_semaphore, #tpu.memory_space<semaphore_mem>>) attributes {dimension_semantics = [#tpu.dimension_semantics<parallel>, #tpu.dimension_semantics<arbitrary>], iteration_bounds = array<i64: 2, 1>, scalar_prefetch = 0 : i64, scratch_operands = 3 : i64, tpu.core_type = #tpu.core_type<tc>, window_params = [{}, {pipeline_mode = #tpu.pipeline_mode<synchronous>, transform_indices = @transform_1, window_bounds = array<i64: 1152, 128>}, {pipeline_mode = #tpu.pipeline_mode<synchronous>, transform_indices = @transform_2, window_bounds = array<i64: 1, 128>}, {pipeline_mode = #tpu.pipeline_mode<synchronous>, transform_indices = @transform_3, window_bounds = array<i64: 1152, 128>}, {pipeline_mode = #tpu.pipeline_mode<synchronous>, transform_indices = @transform_4, window_bounds = array<i64: 1, 128>}, {transform_indices = @transform_5, window_bounds = array<i64: 1, 16, 16, 128>}]} {
    %c2_i32 = arith.constant 2 : i32
    %c0_i32 = arith.constant 0 : i32
    %0 = arith.cmpi eq, %c2_i32, %c0_i32 : i32
    %c1_i32 = arith.constant 1 : i32
    %1 = arith.select %0, %c1_i32, %c2_i32 : i32
    %2 = arith.remsi %arg1, %1 : i32
    %c0_i32_0 = arith.constant 0 : i32
    %3 = arith.cmpi ne, %2, %c0_i32_0 : i32
    %c0_i32_1 = arith.constant 0 : i32
    %4 = arith.cmpi slt, %2, %c0_i32_1 : i32
    %c0_i32_2 = arith.constant 0 : i32
    %5 = arith.cmpi slt, %1, %c0_i32_2 : i32
    %6 = arith.xori %4, %5 : i1
    %7 = arith.andi %6, %3 : i1
    %8 = arith.addi %2, %1 : i32
    %9 = arith.select %7, %8, %2 : i32
    %c0_i32_3 = arith.constant 0 : i32
    %10 = arith.cmpi eq, %arg1, %c0_i32_3 : i32
    %11 = arith.extui %10 : i1 to i32
    %c0_i32_4 = arith.constant 0 : i32
    %12 = arith.cmpi ne, %11, %c0_i32_4 : i32
    scf.if %12 {
      %c0_i32_63 = arith.constant 0 : i32
      %c0_i32_64 = arith.constant 0 : i32
      %c0_i32_65 = arith.constant 0 : i32
      %c0_i32_66 = arith.constant 0 : i32
      %c0_i32_67 = arith.constant 0 : i32
      %112 = tpu.memref_slice %arg2[%arg0, %c0_i32_65, %c0_i32_66, %c0_i32_67] : memref<2x20x18x128xf32, #tpu.memory_space<any>> -> memref<1x20x18x128xf32, #tpu.memory_space<any>>
      %113 = tpu.memref_squeeze %112 : memref<1x20x18x128xf32, #tpu.memory_space<any>> -> memref<20x18x128xf32, #tpu.memory_space<any>>
      %c0_i32_68 = arith.constant 0 : i32
      %c0_i32_69 = arith.constant 0 : i32
      %c0_i32_70 = arith.constant 0 : i32
      %114 = tpu.memref_slice %arg8[%c0_i32_63, %c0_i32_68, %c0_i32_69, %c0_i32_70] : memref<2x20x18x128xf32, #tpu.memory_space<vmem>> -> memref<1x20x18x128xf32, #tpu.memory_space<vmem>>
      %115 = tpu.memref_squeeze %114 : memref<1x20x18x128xf32, #tpu.memory_space<vmem>> -> memref<20x18x128xf32, #tpu.memory_space<vmem>>
      %116 = tpu.memref_slice %arg10[%c0_i32_64] : memref<2x!tpu.dma_semaphore, #tpu.memory_space<semaphore_mem>> -> memref<1x!tpu.dma_semaphore, #tpu.memory_space<semaphore_mem>>
      %117 = tpu.memref_squeeze %116 : memref<1x!tpu.dma_semaphore, #tpu.memory_space<semaphore_mem>> -> memref<!tpu.dma_semaphore, #tpu.memory_space<semaphore_mem>>
      tpu.enqueue_dma source(%113 : memref<20x18x128xf32, #tpu.memory_space<any>>) target(%115 : memref<20x18x128xf32, #tpu.memory_space<vmem>>) target_semaphore(%117 : memref<!tpu.dma_semaphore, #tpu.memory_space<semaphore_mem>>)
    } else {
    }
    %c1_i32_5 = arith.constant 1 : i32
    %13 = arith.addi %arg1, %c1_i32_5 : i32
    %c1_i32_6 = arith.constant 1 : i32
    %14 = arith.cmpi slt, %13, %c1_i32_6 : i32
    %15 = arith.extui %14 : i1 to i32
    %c0_i32_7 = arith.constant 0 : i32
    %16 = arith.cmpi ne, %15, %c0_i32_7 : i32
    scf.if %16 {
      %c1_i32_63 = arith.constant 1 : i32
      %112 = arith.addi %arg1, %c1_i32_63 : i32
      %c1_i32_64 = arith.constant 1 : i32
      %113 = arith.subi %c1_i32_64, %9 : i32
      %c16_i32_65 = arith.constant 16 : i32
      %114 = arith.muli %112, %c16_i32_65 : i32
      %c0_i32_66 = arith.constant 0 : i32
      %c0_i32_67 = arith.constant 0 : i32
      %115 = tpu.memref_slice %arg2[%arg0, %114, %c0_i32_66, %c0_i32_67] : memref<2x20x18x128xf32, #tpu.memory_space<any>> -> memref<1x20x18x128xf32, #tpu.memory_space<any>>
      %116 = tpu.memref_squeeze %115 : memref<1x20x18x128xf32, #tpu.memory_space<any>> -> memref<20x18x128xf32, #tpu.memory_space<any>>
      %c0_i32_68 = arith.constant 0 : i32
      %c0_i32_69 = arith.constant 0 : i32
      %c0_i32_70 = arith.constant 0 : i32
      %117 = tpu.memref_slice %arg8[%113, %c0_i32_68, %c0_i32_69, %c0_i32_70] : memref<2x20x18x128xf32, #tpu.memory_space<vmem>> -> memref<1x20x18x128xf32, #tpu.memory_space<vmem>>
      %118 = tpu.memref_squeeze %117 : memref<1x20x18x128xf32, #tpu.memory_space<vmem>> -> memref<20x18x128xf32, #tpu.memory_space<vmem>>
      %119 = tpu.memref_slice %arg10[%113] : memref<2x!tpu.dma_semaphore, #tpu.memory_space<semaphore_mem>> -> memref<1x!tpu.dma_semaphore, #tpu.memory_space<semaphore_mem>>
      %120 = tpu.memref_squeeze %119 : memref<1x!tpu.dma_semaphore, #tpu.memory_space<semaphore_mem>> -> memref<!tpu.dma_semaphore, #tpu.memory_space<semaphore_mem>>
      tpu.enqueue_dma source(%116 : memref<20x18x128xf32, #tpu.memory_space<any>>) target(%118 : memref<20x18x128xf32, #tpu.memory_space<vmem>>) target_semaphore(%120 : memref<!tpu.dma_semaphore, #tpu.memory_space<semaphore_mem>>)
    } else {
    }
    %c16_i32 = arith.constant 16 : i32
    %17 = arith.muli %arg1, %c16_i32 : i32
    %c0_i32_8 = arith.constant 0 : i32
    %c0_i32_9 = arith.constant 0 : i32
    %18 = tpu.memref_slice %arg2[%arg0, %17, %c0_i32_8, %c0_i32_9] : memref<2x20x18x128xf32, #tpu.memory_space<any>> -> memref<1x20x18x128xf32, #tpu.memory_space<any>>
    %19 = tpu.memref_squeeze %18 : memref<1x20x18x128xf32, #tpu.memory_space<any>> -> memref<20x18x128xf32, #tpu.memory_space<any>>
    %c0_i32_10 = arith.constant 0 : i32
    %c0_i32_11 = arith.constant 0 : i32
    %c0_i32_12 = arith.constant 0 : i32
    %20 = tpu.memref_slice %arg8[%9, %c0_i32_10, %c0_i32_11, %c0_i32_12] : memref<2x20x18x128xf32, #tpu.memory_space<vmem>> -> memref<1x20x18x128xf32, #tpu.memory_space<vmem>>
    %21 = tpu.memref_squeeze %20 : memref<1x20x18x128xf32, #tpu.memory_space<vmem>> -> memref<20x18x128xf32, #tpu.memory_space<vmem>>
    %22 = tpu.memref_slice %arg10[%9] : memref<2x!tpu.dma_semaphore, #tpu.memory_space<semaphore_mem>> -> memref<1x!tpu.dma_semaphore, #tpu.memory_space<semaphore_mem>>
    %23 = tpu.memref_squeeze %22 : memref<1x!tpu.dma_semaphore, #tpu.memory_space<semaphore_mem>> -> memref<!tpu.dma_semaphore, #tpu.memory_space<semaphore_mem>>
    tpu.wait_dma2 semaphore(%23 : memref<!tpu.dma_semaphore, #tpu.memory_space<semaphore_mem>>) src(%19 : memref<20x18x128xf32, #tpu.memory_space<any>>) dst(%21 : memref<20x18x128xf32, #tpu.memory_space<vmem>>)
    %24 = arith.index_cast %9 : i32 to index
    %c0 = arith.constant 0 : index
    %c0_13 = arith.constant 0 : index
    %c0_14 = arith.constant 0 : index
    %25 = vector.load %arg8[%24, %c0, %c0_13, %c0_14] : memref<2x20x18x128xf32, #tpu.memory_space<vmem>>, vector<1x20x18x128xf32>
    %26 = vector.shape_cast %25 : vector<1x20x18x128xf32> to vector<20x18x128xf32>
    %cst = arith.constant 0.000000e+00 : f32
    %27 = vector.broadcast %cst : f32 to vector<20x18x128xf32>
    %28 = arith.cmpf oge, %26, %27 : vector<20x18x128xf32>
    %cst_15 = arith.constant 1.000000e-01 : f32
    %29 = vector.broadcast %cst_15 : f32 to vector<20x18x128xf32>
    %30 = arith.mulf %29, %26 : vector<20x18x128xf32>
    %31 = arith.select %28, %26, %30 : vector<20x18x128xi1>, vector<20x18x128xf32>
    %32 = vector.extract_strided_slice %31 {offsets = [0, 0, 0], sizes = [20, 16, 128], strides = [1, 1, 1]} : vector<20x18x128xf32> to vector<20x16x128xf32>
    %33 = arith.truncf %32 : vector<20x16x128xf32> to vector<20x16x128xbf16>
    %34 = vector.extract_strided_slice %31 {offsets = [0, 1, 0], sizes = [20, 16, 128], strides = [1, 1, 1]} : vector<20x18x128xf32> to vector<20x16x128xf32>
    %35 = arith.truncf %34 : vector<20x16x128xf32> to vector<20x16x128xbf16>
    %36 = vector.extract_strided_slice %31 {offsets = [0, 2, 0], sizes = [20, 16, 128], strides = [1, 1, 1]} : vector<20x18x128xf32> to vector<20x16x128xf32>
    %37 = arith.truncf %36 : vector<20x16x128xf32> to vector<20x16x128xbf16>
    %38 = tpu.concatenate %33, %35, %37 in 2 : vector<20x16x128xbf16>, vector<20x16x128xbf16>, vector<20x16x128xbf16> -> vector<20x16x384xbf16>
    %39 = vector.extract_strided_slice %38 {offsets = [0, 0, 0], sizes = [18, 16, 384], strides = [1, 1, 1]} : vector<20x16x384xbf16> to vector<18x16x384xbf16>
    %40 = vector.shape_cast %39 : vector<18x16x384xbf16> to vector<288x384xbf16>
    %c0_16 = arith.constant 0 : index
    %c0_17 = arith.constant 0 : index
    %41 = vector.load %arg3[%c0_16, %c0_17] : memref<1152x128xbf16, #tpu.memory_space<vmem>>, vector<384x128xbf16>
    %cst_18 = arith.constant dense<0.000000e+00> : vector<288x128xf32>
    %42 = tpu.matmul %40, %41, %cst_18 {dimension_numbers = #tpu.dot_dimension_numbers<[1], [0], [0], [1], [0, 0, 1, 1], [], []>} : vector<288x384xbf16>, vector<384x128xbf16>, vector<288x128xf32> -> vector<288x128xf32>
    %43 = vector.extract_strided_slice %38 {offsets = [1, 0, 0], sizes = [18, 16, 384], strides = [1, 1, 1]} : vector<20x16x384xbf16> to vector<18x16x384xbf16>
    %44 = vector.shape_cast %43 : vector<18x16x384xbf16> to vector<288x384xbf16>
    %c384 = arith.constant 384 : index
    %c0_19 = arith.constant 0 : index
    %45 = vector.load %arg3[%c384, %c0_19] : memref<1152x128xbf16, #tpu.memory_space<vmem>>, vector<384x128xbf16>
    %cst_20 = arith.constant dense<0.000000e+00> : vector<288x128xf32>
    %46 = tpu.matmul %44, %45, %cst_20 {dimension_numbers = #tpu.dot_dimension_numbers<[1], [0], [0], [1], [0, 0, 1, 1], [], []>} : vector<288x384xbf16>, vector<384x128xbf16>, vector<288x128xf32> -> vector<288x128xf32>
    %47 = arith.addf %42, %46 : vector<288x128xf32>
    %48 = vector.extract_strided_slice %38 {offsets = [2, 0, 0], sizes = [18, 16, 384], strides = [1, 1, 1]} : vector<20x16x384xbf16> to vector<18x16x384xbf16>
    %49 = vector.shape_cast %48 : vector<18x16x384xbf16> to vector<288x384xbf16>
    %c768 = arith.constant 768 : index
    %c0_21 = arith.constant 0 : index
    %50 = vector.load %arg3[%c768, %c0_21] : memref<1152x128xbf16, #tpu.memory_space<vmem>>, vector<384x128xbf16>
    %cst_22 = arith.constant dense<0.000000e+00> : vector<288x128xf32>
    %51 = tpu.matmul %49, %50, %cst_22 {dimension_numbers = #tpu.dot_dimension_numbers<[1], [0], [0], [1], [0, 0, 1, 1], [], []>} : vector<288x384xbf16>, vector<384x128xbf16>, vector<288x128xf32> -> vector<288x128xf32>
    %52 = arith.addf %47, %51 : vector<288x128xf32>
    %53 = vector.shape_cast %52 : vector<288x128xf32> to vector<18x16x128xf32>
    %c0_23 = arith.constant 0 : index
    %c0_24 = arith.constant 0 : index
    %54 = vector.load %arg4[%c0_23, %c0_24] : memref<1x128xf32, #tpu.memory_space<vmem>>, vector<1x128xf32>
    %55 = vector.shape_cast %54 : vector<1x128xf32> to vector<128xf32>
    %56 = vector.shape_cast %55 : vector<128xf32> to vector<1x1x128xf32>
    %57 = vector.broadcast %56 : vector<1x1x128xf32> to vector<18x16x128xf32>
    %58 = arith.addf %53, %57 : vector<18x16x128xf32>
    %cst_25 = arith.constant 0.000000e+00 : f32
    %59 = vector.broadcast %cst_25 : f32 to vector<18x16x128xf32>
    %60 = arith.cmpf oge, %58, %59 : vector<18x16x128xf32>
    %cst_26 = arith.constant 1.000000e-01 : f32
    %61 = vector.broadcast %cst_26 : f32 to vector<18x16x128xf32>
    %62 = arith.mulf %61, %58 : vector<18x16x128xf32>
    %63 = arith.select %60, %58, %62 : vector<18x16x128xi1>, vector<18x16x128xf32>
    %cst_27 = arith.constant 0.000000e+00 : f32
    %64 = vector.broadcast %cst_27 : f32 to vector<1x16x128xf32>
    %c0_i32_28 = arith.constant 0 : i32
    %65 = arith.cmpi eq, %arg1, %c0_i32_28 : i32
    %66 = vector.extract_strided_slice %63 {offsets = [0, 0, 0], sizes = [1, 16, 128], strides = [1, 1, 1]} : vector<18x16x128xf32> to vector<1x16x128xf32>
    %67 = arith.select %65, %64, %66 : vector<1x16x128xf32>
    %c0_29 = arith.constant 0 : index
    %c1 = arith.constant 1 : index
    %c0_30 = arith.constant 0 : index
    %68 = vector.load %arg9[%c0_29, %c1, %c0_30] : memref<18x18x128xf32, #tpu.memory_space<vmem>>, vector<1x16x128xf32>
    tpu.vector_store %arg9[%c0_29, %c1, %c0_30], %67 {strides = array<i32>} : memref<18x18x128xf32, #tpu.memory_space<vmem>>, vector<1x16x128xf32>,
    %c0_i32_31 = arith.constant 0 : i32
    %69 = arith.cmpi eq, %arg1, %c0_i32_31 : i32
    %70 = vector.extract_strided_slice %63 {offsets = [17, 0, 0], sizes = [1, 16, 128], strides = [1, 1, 1]} : vector<18x16x128xf32> to vector<1x16x128xf32>
    %71 = arith.select %69, %64, %70 : vector<1x16x128xf32>
    %c17 = arith.constant 17 : index
    %c1_32 = arith.constant 1 : index
    %c0_33 = arith.constant 0 : index
    %72 = vector.load %arg9[%c17, %c1_32, %c0_33] : memref<18x18x128xf32, #tpu.memory_space<vmem>>, vector<1x16x128xf32>
    tpu.vector_store %arg9[%c17, %c1_32, %c0_33], %71 {strides = array<i32>} : memref<18x18x128xf32, #tpu.memory_space<vmem>>, vector<1x16x128xf32>,
    %73 = vector.extract_strided_slice %63 {offsets = [1, 0, 0], sizes = [16, 16, 128], strides = [1, 1, 1]} : vector<18x16x128xf32> to vector<16x16x128xf32>
    %c1_34 = arith.constant 1 : index
    %c1_35 = arith.constant 1 : index
    %c0_36 = arith.constant 0 : index
    %74 = vector.load %arg9[%c1_34, %c1_35, %c0_36] : memref<18x18x128xf32, #tpu.memory_space<vmem>>, vector<16x16x128xf32>
    tpu.vector_store %arg9[%c1_34, %c1_35, %c0_36], %73 {strides = array<i32>} : memref<18x18x128xf32, #tpu.memory_space<vmem>>, vector<16x16x128xf32>,
    %cst_37 = arith.constant 0.000000e+00 : f32
    %75 = vector.broadcast %cst_37 : f32 to vector<18x1x128xf32>
    %c0_38 = arith.constant 0 : index
    %c0_39 = arith.constant 0 : index
    %c0_40 = arith.constant 0 : index
    %76 = vector.load %arg9[%c0_38, %c0_39, %c0_40] : memref<18x18x128xf32, #tpu.memory_space<vmem>>, vector<18x1x128xf32>
    tpu.vector_store %arg9[%c0_38, %c0_39, %c0_40], %75 {strides = array<i32>} : memref<18x18x128xf32, #tpu.memory_space<vmem>>, vector<18x1x128xf32>,
    %cst_41 = arith.constant 0.000000e+00 : f32
    %77 = vector.broadcast %cst_41 : f32 to vector<18x1x128xf32>
    %c0_42 = arith.constant 0 : index
    %c17_43 = arith.constant 17 : index
    %c0_44 = arith.constant 0 : index
    %78 = vector.load %arg9[%c0_42, %c17_43, %c0_44] : memref<18x18x128xf32, #tpu.memory_space<vmem>>, vector<18x1x128xf32>
    tpu.vector_store %arg9[%c0_42, %c17_43, %c0_44], %77 {strides = array<i32>} : memref<18x18x128xf32, #tpu.memory_space<vmem>>, vector<18x1x128xf32>,
    %c0_45 = arith.constant 0 : index
    %c0_46 = arith.constant 0 : index
    %c0_47 = arith.constant 0 : index
    %79 = vector.load %arg9[%c0_45, %c0_46, %c0_47] : memref<18x18x128xf32, #tpu.memory_space<vmem>>, vector<18x18x128xf32>
    %80 = vector.extract_strided_slice %79 {offsets = [0, 0, 0], sizes = [18, 16, 128], strides = [1, 1, 1]} : vector<18x18x128xf32> to vector<18x16x128xf32>
    %81 = arith.truncf %80 : vector<18x16x128xf32> to vector<18x16x128xbf16>
    %82 = vector.extract_strided_slice %79 {offsets = [0, 1, 0], sizes = [18, 16, 128], strides = [1, 1, 1]} : vector<18x18x128xf32> to vector<18x16x128xf32>
    %83 = arith.truncf %82 : vector<18x16x128xf32> to vector<18x16x128xbf16>
    %84 = vector.extract_strided_slice %79 {offsets = [0, 2, 0], sizes = [18, 16, 128], strides = [1, 1, 1]} : vector<18x18x128xf32> to vector<18x16x128xf32>
    %85 = arith.truncf %84 : vector<18x16x128xf32> to vector<18x16x128xbf16>
    %86 = tpu.concatenate %81, %83, %85 in 2 : vector<18x16x128xbf16>, vector<18x16x128xbf16>, vector<18x16x128xbf16> -> vector<18x16x384xbf16>
    %87 = vector.extract_strided_slice %86 {offsets = [0, 0, 0], sizes = [16, 16, 384], strides = [1, 1, 1]} : vector<18x16x384xbf16> to vector<16x16x384xbf16>
    %88 = vector.shape_cast %87 : vector<16x16x384xbf16> to vector<256x384xbf16>
    %c0_48 = arith.constant 0 : index
    %c0_49 = arith.constant 0 : index
    %89 = vector.load %arg5[%c0_48, %c0_49] : memref<1152x128xbf16, #tpu.memory_space<vmem>>, vector<384x128xbf16>
    %cst_50 = arith.constant dense<0.000000e+00> : vector<256x128xf32>
    %90 = tpu.matmul %88, %89, %cst_50 {dimension_numbers = #tpu.dot_dimension_numbers<[1], [0], [0], [1], [0, 0, 1, 1], [], []>} : vector<256x384xbf16>, vector<384x128xbf16>, vector<256x128xf32> -> vector<256x128xf32>
    %91 = vector.extract_strided_slice %86 {offsets = [1, 0, 0], sizes = [16, 16, 384], strides = [1, 1, 1]} : vector<18x16x384xbf16> to vector<16x16x384xbf16>
    %92 = vector.shape_cast %91 : vector<16x16x384xbf16> to vector<256x384xbf16>
    %c384_51 = arith.constant 384 : index
    %c0_52 = arith.constant 0 : index
    %93 = vector.load %arg5[%c384_51, %c0_52] : memref<1152x128xbf16, #tpu.memory_space<vmem>>, vector<384x128xbf16>
    %cst_53 = arith.constant dense<0.000000e+00> : vector<256x128xf32>
    %94 = tpu.matmul %92, %93, %cst_53 {dimension_numbers = #tpu.dot_dimension_numbers<[1], [0], [0], [1], [0, 0, 1, 1], [], []>} : vector<256x384xbf16>, vector<384x128xbf16>, vector<256x128xf32> -> vector<256x128xf32>
    %95 = arith.addf %90, %94 : vector<256x128xf32>
    %96 = vector.extract_strided_slice %86 {offsets = [2, 0, 0], sizes = [16, 16, 384], strides = [1, 1, 1]} : vector<18x16x384xbf16> to vector<16x16x384xbf16>
    %97 = vector.shape_cast %96 : vector<16x16x384xbf16> to vector<256x384xbf16>
    %c768_54 = arith.constant 768 : index
    %c0_55 = arith.constant 0 : index
    %98 = vector.load %arg5[%c768_54, %c0_55] : memref<1152x128xbf16, #tpu.memory_space<vmem>>, vector<384x128xbf16>
    %cst_56 = arith.constant dense<0.000000e+00> : vector<256x128xf32>
    %99 = tpu.matmul %97, %98, %cst_56 {dimension_numbers = #tpu.dot_dimension_numbers<[1], [0], [0], [1], [0, 0, 1, 1], [], []>} : vector<256x384xbf16>, vector<384x128xbf16>, vector<256x128xf32> -> vector<256x128xf32>
    %100 = arith.addf %95, %99 : vector<256x128xf32>
    %101 = vector.shape_cast %100 : vector<256x128xf32> to vector<16x16x128xf32>
    %c0_57 = arith.constant 0 : index
    %c0_58 = arith.constant 0 : index
    %102 = vector.load %arg6[%c0_57, %c0_58] : memref<1x128xf32, #tpu.memory_space<vmem>>, vector<1x128xf32>
    %103 = vector.shape_cast %102 : vector<1x128xf32> to vector<128xf32>
    %104 = vector.shape_cast %103 : vector<128xf32> to vector<1x1x128xf32>
    %105 = vector.broadcast %104 : vector<1x1x128xf32> to vector<16x16x128xf32>
    %106 = arith.addf %101, %105 : vector<16x16x128xf32>
    %107 = vector.extract_strided_slice %26 {offsets = [2, 1, 0], sizes = [16, 16, 128], strides = [1, 1, 1]} : vector<20x18x128xf32> to vector<16x16x128xf32>
    %108 = arith.addf %107, %106 : vector<16x16x128xf32>
    %c0_59 = arith.constant 0 : index
    %c0_60 = arith.constant 0 : index
    %c0_61 = arith.constant 0 : index
    %c0_62 = arith.constant 0 : index
    %109 = vector.load %arg7[%c0_59, %c0_60, %c0_61, %c0_62] : memref<1x16x16x128xf32, #tpu.memory_space<vmem>>, vector<1x16x16x128xf32>
    %110 = vector.shape_cast %109 : vector<1x16x16x128xf32> to vector<16x16x128xf32>
    %111 = vector.shape_cast %108 : vector<16x16x128xf32> to vector<1x16x16x128xf32>
    tpu.vector_store %arg7[%c0_59, %c0_60, %c0_61, %c0_62], %111 {strides = array<i32>} : memref<1x16x16x128xf32, #tpu.memory_space<vmem>>, vector<1x16x16x128xf32>,
    return
  }
  func.func @transform_1(%arg0: i32, %arg1: i32) -> (i32, i32) {
    %c0_i32 = arith.constant 0 : i32
    %c0_i32_0 = arith.constant 0 : i32
    %c0_i32_1 = arith.constant 0 : i32
    return %c0_i32, %c0_i32_0 : i32, i32
  }
  func.func @transform_2(%arg0: i32, %arg1: i32) -> (i32, i32) {
    %c0_i32 = arith.constant 0 : i32
    %c0_i32_0 = arith.constant 0 : i32
    %c0_i32_1 = arith.constant 0 : i32
    return %c0_i32, %c0_i32_0 : i32, i32
  }
  func.func @transform_3(%arg0: i32, %arg1: i32) -> (i32, i32) {
    %c0_i32 = arith.constant 0 : i32
    %c0_i32_0 = arith.constant 0 : i32
    %c0_i32_1 = arith.constant 0 : i32
    return %c0_i32, %c0_i32_0 : i32, i32
  }
  func.func @transform_4(%arg0: i32, %arg1: i32) -> (i32, i32) {
    %c0_i32 = arith.constant 0 : i32
    %c0_i32_0 = arith.constant 0 : i32
    %c0_i32_1 = arith.constant 0 : i32
    return %c0_i32, %c0_i32_0 : i32, i32
  }
  func.func @transform_5(%arg0: i32, %arg1: i32) -> (i32, i32, i32, i32) {
    %c0_i32 = arith.constant 0 : i32
    %c0_i32_0 = arith.constant 0 : i32
    %c0_i32_1 = arith.constant 0 : i32
    return %arg0, %arg1, %c0_i32, %c0_i32_0 : i32, i32, i32, i32
  }
}

</mosaic_0001>

<llo_original>
// kernel: resblock2d_pallas.1
$region0: #{resblock2d_pallas.1}
  #allocation0 [shape = 'u32[]', space=smem, size = 0x4, offset = 0x4, fixed_abs, tag = 'smem constant byte address 0x4 - core index']
  #allocation1 [shape = 'u32[144,128]{1,0:T(1,128)}', space=vmem, size = 0x12000, scoped, tag = 'internal scratch']
  #allocation2 [shape = 'f32[2,20,18,128]{3,2,1,0:T(8,128)}', space=vmem, size = 0x78000, scoped, tag = 'scratch operand']
  #allocation3 [shape = 'f32[18,18,128]{2,1,0:T(8,128)}', space=vmem, size = 0x36000, scoped, tag = 'scratch operand']
  #allocation4 [shape = 's32[2]{0}', space=sflag, size = 0x8, scoped, tag = 'scratch operand']
  #allocation5 [shape = 's32[]', space=sflag, size = 0x4, offset = 0, fixed_abs, tag = 'sflag constant byte address 0x0 - dummy sync flag']
  #allocation6 [shape = 's32[]', space=sflag, size = 0x4, offset = 0, fixed_abs, tag = 'sflag constant byte address 0x0 - dummy sync flag']
  %s0 = inlined_call_operand.vmem [shape: f32[2,20,18,128], index: 0, kind: input, shape index: {}]
  %s1 = inlined_call_operand.vmem [shape: bf16[1152,128], index: 1, kind: input, shape index: {}]
  %s2 = inlined_call_operand.vmem [shape: f32[1,128], index: 2, kind: input, shape index: {}]
  %s3 = inlined_call_operand.vmem [shape: bf16[1152,128], index: 3, kind: input, shape index: {}]
  %s4 = inlined_call_operand.vmem [shape: f32[1,128], index: 4, kind: input, shape index: {}]
  %s5 = inlined_call_operand.vmem [shape: f32[2,16,16,128], index: 5, kind: output, shape index: {}]
  %s6 = sld [smem:[#allocation0]]
  $region131: #{resblock2d_pallas.1} parent=0
    _
  %s8 = ssub.s32 1, %s6
  %s9 = scalar_select 0, %s8, %s6
  loop: start=0, step=1, limit=4
  $region2: #{resblock2d_pallas.1} parent=0 // loop_pre_header
    _
  $region3: #{resblock2d_pallas.1} parent=0 // loop_header
    %s11 = sphi 0, %s15
    %p12 = scmp.ge.s32.totalorder %s11, 4
    %s18 = sphi 0, %s30
    %s19 = sphi 0, %s26
    %s20 = sphi 0, %s18
    %s21 = sphi 0, %s19
    %s22 = sphi 0, %s20
    %s23 = sphi 0, %s21
    %s31 = sphi 0, %s31
    %s33 = sphi 0, %s31
    %s34 = sphi 0, %s33
    %s48 = sphi 0, %s34
    %s52 = sphi 0, %s52
    %s54 = sphi 0, %s52
    %s55 = sphi 0, %s54
    %s69 = sphi 0, %s55
    %s73 = sphi 0, %s73
    %s75 = sphi 0, %s73
    %s76 = sphi 0, %s75
    %s90 = sphi 0, %s76
    %s94 = sphi 0, %s94
    %s96 = sphi 0, %s94
    %s97 = sphi 0, %s96
    %s111 = sphi 0, %s97
    %s119 = sphi 0, %s121
    %s122 = sphi 0, %s119
    %s123 = sphi 0, %s122
    %s139 = sphi 0, %s123
  $region4: #{resblock2d_pallas.1} parent=0 // loop_header_branch
    %14 = sbr.rel (%p12) target = $region8
  $region5: #{resblock2d_pallas.1} parent=0 // loop_body
    %s16 = ssub.s32 %s11, 1
    %s17 = ssub.s32 %s11, 2
    %s24 = sadd.s32 1, %s19
    %p25 = scmp.ge.s32.totalorder %s24, 1
    %s26 = scalar_select %p25, 0, %s24
    %s27 = sadd.s32 1, %s18
    %s28 = scalar_select %p25, %s27, %s18
    %p29 = scmp.ge.s32.totalorder %s28, 2
    %s30 = scalar_select %p29, 0, %s28
    %s32 = sadd.s32 %s31, 1
    %p35 = scmp.eq.s32.totalorder %s11, 1
    %p36 = scmp.ne.s32.totalorder %s31, %s33
    %p37 = scmp.eq.s32.totalorder %s11, 0
    %p38 = por %p36, %p37
    %p39 = scmp.ne.s32.totalorder %s31, %s33
    %p40 = scmp.eq.s32.totalorder %s16, 1
    %p41 = por %p39, %p40
    %p42 = scmp.ne.s32.totalorder %s33, %s34
    %p43 = scmp.eq.s32.totalorder %s16, 0
    %p44 = por %p42, %p43
    %p45 = scmp.ne.s32.totalorder %s33, %s34
    %p46 = scmp.eq.s32.totalorder %s17, 1
    %p47 = por %p45, %p46
    %p49 = scmp.ne.s32.totalorder %s34, %s48
    %p50 = scmp.eq.s32.totalorder %s17, 0
    %p51 = por %p49, %p50
    %s53 = sadd.s32 %s52, 1
    %p56 = scmp.eq.s32.totalorder %s11, 1
    %p57 = scmp.ne.s32.totalorder %s52, %s54
    %p58 = scmp.eq.s32.totalorder %s11, 0
    %p59 = por %p57, %p58
    %p60 = scmp.ne.s32.totalorder %s52, %s54
    %p61 = scmp.eq.s32.totalorder %s16, 1
    %p62 = por %p60, %p61
    %p63 = scmp.ne.s32.totalorder %s54, %s55
    %p64 = scmp.eq.s32.totalorder %s16, 0
    %p65 = por %p63, %p64
    %p66 = scmp.ne.s32.totalorder %s54, %s55
    %p67 = scmp.eq.s32.totalorder %s17, 1
    %p68 = por %p66, %p67
    %p70 = scmp.ne.s32.totalorder %s55, %s69
    %p71 = scmp.eq.s32.totalorder %s17, 0
    %p72 = por %p70, %p71
    %s74 = sadd.s32 %s73, 1
    %p77 = scmp.eq.s32.totalorder %s11, 1
    %p78 = scmp.ne.s32.totalorder %s73, %s75
    %p79 = scmp.eq.s32.totalorder %s11, 0
    %p80 = por %p78, %p79
    %p81 = scmp.ne.s32.totalorder %s73, %s75
    %p82 = scmp.eq.s32.totalorder %s16, 1
    %p83 = por %p81, %p82
    %p84 = scmp.ne.s32.totalorder %s75, %s76
    %p85 = scmp.eq.s32.totalorder %s16, 0
    %p86 = por %p84, %p85
    %p87 = scmp.ne.s32.totalorder %s75, %s76
    %p88 = scmp.eq.s32.totalorder %s17, 1
    %p89 = por %p87, %p88
    %p91 = scmp.ne.s32.totalorder %s76, %s90
    %p92 = scmp.eq.s32.totalorder %s17, 0
    %p93 = por %p91, %p92
    %s95 = sadd.s32 %s94, 1
    %p98 = scmp.eq.s32.totalorder %s11, 1
    %p99 = scmp.ne.s32.totalorder %s94, %s96
    %p100 = scmp.eq.s32.totalorder %s11, 0
    %p101 = por %p99, %p100
    %p102 = scmp.ne.s32.totalorder %s94, %s96
    %p103 = scmp.eq.s32.totalorder %s16, 1
    %p104 = por %p102, %p103
    %p105 = scmp.ne.s32.totalorder %s96, %s97
    %p106 = scmp.eq.s32.totalorder %s16, 0
    %p107 = por %p105, %p106
    %p108 = scmp.ne.s32.totalorder %s96, %s97
    %p109 = scmp.eq.s32.totalorder %s17, 1
    %p110 = por %p108, %p109
    %p112 = scmp.ne.s32.totalorder %s97, %s111
    %p113 = scmp.eq.s32.totalorder %s17, 0
    %p114 = por %p112, %p113
    %s115 = ssub.s32 %s18, %s30
    %s116 = ssub.s32 %s19, %s26
    %s117 = sor.u32 %s115, %s116
    %p118 = scmp.eq.s32.totalorder %s117, 0
    %s120 = sadd.s32 %s119, 1
    %s121 = scalar_select %p118, %s119, %s120
    %p124 = pneg %p118
    %p125 = scmp.eq.s32.totalorder %s11, 1
    %p126 = por %p124, %p125
    %p127 = scmp.ne.s32.totalorder %s119, %s122
    %p128 = scmp.eq.s32.totalorder %s11, 0
    %p129 = por %p127, %p128
    %p130 = scmp.ne.s32.totalorder %s119, %s122
    %p131 = scmp.eq.s32.totalorder %s16, 1
    %p132 = por %p130, %p131
    %p133 = scmp.ne.s32.totalorder %s122, %s123
    %p134 = scmp.eq.s32.totalorder %s16, 0
    %p135 = por %p133, %p134
    %p136 = scmp.ne.s32.totalorder %s122, %s123
    %p137 = scmp.eq.s32.totalorder %s17, 1
    %p138 = por %p136, %p137
    %p140 = scmp.ne.s32.totalorder %s123, %s139
    %p141 = scmp.eq.s32.totalorder %s17, 0
    %p142 = por %p140, %p141
    %p143 = scmp.le.s32.totalorder 1, %s11
    %p144 = scmp.lt.s32.totalorder %s11, 3
    %p145 = pnand %p143, %p144
    %p146 = pneg %p145
    // Predicated region
    $region9: #{resblock2d_pallas.1} parent=5 // pred_check
      _
    $region10: #{resblock2d_pallas.1} parent=5 // pred_check_branch
      %148 = sbr.rel (%p145) target = $region12
    $region11: #{resblock2d_pallas.1} parent=5 // pred_region
      %s149 = ssub.s32 %s11, 1
      // Predicated region
      $region13: #{resblock2d_pallas.1} parent=11 // pred_check
        %p150 = pneg %p44
      $region14: #{resblock2d_pallas.1} parent=11 // pred_check_branch
        %152 = sbr.rel (%p150) target = $region16
      $region15: #{resblock2d_pallas.1} parent=11 // pred_region
        _
      $region16: #{resblock2d_pallas.1} parent=11 // pred_fallthru
        _
      // Predicated region
      $region17: #{resblock2d_pallas.1} parent=11 // pred_check
        %p153 = pneg %p65
      $region18: #{resblock2d_pallas.1} parent=11 // pred_check_branch
        %155 = sbr.rel (%p153) target = $region20
      $region19: #{resblock2d_pallas.1} parent=11 // pred_region
        _
      $region20: #{resblock2d_pallas.1} parent=11 // pred_fallthru
        _
      // Predicated region
      $region21: #{resblock2d_pallas.1} parent=11 // pred_check
        %p156 = pneg %p86
      $region22: #{resblock2d_pallas.1} parent=11 // pred_check_branch
        %158 = sbr.rel (%p156) target = $region24
      $region23: #{resblock2d_pallas.1} parent=11 // pred_region
        _
      $region24: #{resblock2d_pallas.1} parent=11 // pred_fallthru
        _
      // Predicated region
      $region25: #{resblock2d_pallas.1} parent=11 // pred_check
        %p159 = pneg %p107
      $region26: #{resblock2d_pallas.1} parent=11 // pred_check_branch
        %161 = sbr.rel (%p159) target = $region28
      $region27: #{resblock2d_pallas.1} parent=11 // pred_region
        _
      $region28: #{resblock2d_pallas.1} parent=11 // pred_fallthru
        _
    $region12: #{resblock2d_pallas.1} parent=5 // pred_fallthru
      _
    %p162 = scmp.lt.s32.totalorder %s11, 2
    // Predicated region
    $region29: #{resblock2d_pallas.1} parent=5 // pred_check
      %p163 = pneg %p162
    $region30: #{resblock2d_pallas.1} parent=5 // pred_check_branch
      %165 = sbr.rel (%p163) target = $region32
    $region31: #{resblock2d_pallas.1} parent=5 // pred_region
      _
    $region32: #{resblock2d_pallas.1} parent=5 // pred_fallthru
      _
    %p166 = scmp.le.s32.totalorder 1, %s11
    %p167 = scmp.lt.s32.totalorder %s11, 3
    %p168 = pnand %p166, %p167
    %p169 = pneg %p168
    // Predicated region
    $region33: #{resblock2d_pallas.1} parent=5 // pred_check
      _
    $region34: #{resblock2d_pallas.1} parent=5 // pred_check_branch
      %171 = sbr.rel (%p168) target = $region36
    $region35: #{resblock2d_pallas.1} parent=5 // pred_region
      %s172 = ssub.s32 %s11, 1
      %p173 = pneg %p44
      %p174 = pneg %p41
      %p175 = pneg %p65
      %p176 = pneg %p62
      %p177 = pneg %p86
      %p178 = pneg %p83
      %p179 = pneg %p107
      %p180 = pneg %p104
      %p181 = pneg %p135
      %p182 = pneg %p132
      %s183 = smul.u32 16, %s21
      %p184 = scmp.lt.s32.totalorder %s20, 1
      %s185 = scalar_select %p184, %s20, 1
      %p186 = scmp.lt.s32.totalorder %s183, 15
      %s187 = scalar_select %p186, %s183, 15
      %s188 = smul.addr %s187, 2
      %s189 = smul.addr %s185, 32
      %s190 = sadd.s32 %s188, %s189
      %s191 = smul.addr %s190, 8
      %s192 = scalar_lea.vmem %s5, %s191
      %s193 = smul.u32 16, %s21
      %p194 = scmp.lt.s32.totalorder %s20, 1
      %s195 = scalar_select %p194, %s20, 1
      %p196 = scmp.lt.s32.totalorder %s193, 15
      %s197 = scalar_select %p196, %s193, 15
      %s198 = smul.addr %s197, 2
      %s199 = smul.addr %s195, 32
      %s200 = sadd.s32 %s198, %s199
      %s201 = smul.addr %s200, 8
      %s202 = scalar_lea.vmem %s5, %s201
      %s203 = smul.u32 16, %s21
      %p205 = scmp.lt.s32.totalorder %s21, 0
      %s206 = ssub.s32 0, %s21
      %s207 = scalar_select %p205, %s206, %s21
      %s208 = sand.u32 %s207, 1
      %s209 = ssub.s32 0, %s208
      %s210 = scalar_select %p205, %s209, %s208
      %p211 = scmp.ne.s32.totalorder %s210, 0
      %p212 = scmp.lt.s32.totalorder %s210, 0
      %p213 = pnand %p212, %p211
      %p214 = pneg %p213
      %s215 = sadd.s32 %s210, 2
      %s216 = scalar_select %p214, %s215, %s210
      %p217 = scmp.eq.s32.totalorder %s21, 0
      // Predicated region
      $region37: #{resblock2d_pallas.1} parent=35 // pred_check
        %p218 = pneg %p217
      $region38: #{resblock2d_pallas.1} parent=35 // pred_check_branch
        %220 = sbr.rel (%p218) target = $region40
      $region39: #{resblock2d_pallas.1} parent=35 // pred_region
        %s221 = smul.u32 %s20, 480
        %s222 = scalar_lea.vmem %s0, %s221
        %p224 = scmp.lt.u32.totalorder 18, 8
        %p225 = pneg %p224
        // Predicated region
        $region41: #{resblock2d_pallas.1} parent=39 // pred_check
          _
        $region42: #{resblock2d_pallas.1} parent=39 // pred_check_branch
          %227 = sbr.rel (%p224) target = $region44
        $region43: #{resblock2d_pallas.1} parent=39 // pred_region
          %s281 = sand.u32 18, 7
          %p282 = scmp.eq.s32.totalorder %s281, 0
          %p283 = pneg %p282
          // Predicated region
          $region56: #{resblock2d_pallas.1} parent=43 // pred_check
            _
          $region57: #{resblock2d_pallas.1} parent=43 // pred_check_branch
            %285 = sbr.rel (%p282) target = $region59
          $region58: #{resblock2d_pallas.1} parent=43 // pred_region
            %s286 = sand.u32 18, 7
            %s287 = ssub.s32 18, %s286
            %s288 = scalar_lea.vmem %s222, %s287
            %s289 = ssub.s32 18, %s286
            %s290 = scalar_lea.vmem [#allocation2], %s289
            loop: start=0, step=1, limit=1
            $region60: #{resblock2d_pallas.1} parent=58 // loop_pre_header
              _
            $region61: #{resblock2d_pallas.1} parent=58 // loop_header
              %s292 = sphi 0, %s296
              %p293 = scmp.ge.s32.totalorder %s292, 1
              %s297 = sphi %s222, %s222
              %s298 = sphi [#allocation2], [#allocation2]
            $region62: #{resblock2d_pallas.1} parent=58 // loop_header_branch
              %295 = sbr.rel (%p293) target = $region66
            $region63: #{resblock2d_pallas.1} parent=58 // loop_body
              %v299 = vld [vmem:[%s297] sm:$0xff]
              %300 = vst [vmem:[%s298] sm:$0xff] %v299
              %v301 = vld [vmem:[%s297 + $0x8] sm:$0xff]
              %302 = vst [vmem:[%s298 + $0x8] sm:$0xff] %v301
              %v303 = vld [vmem:[%s297 + $0x18] sm:$0xff]
              %304 = vst [vmem:[%s298 + $0x18] sm:$0xff] %v303
              %v305 = vld [vmem:[%s297 + $0x20] sm:$0xff]
              %306 = vst [vmem:[%s298 + $0x20] sm:$0xff] %v305
              %v307 = vld [vmem:[%s297 + $0x30] sm:$0xff]
              %308 = vst [vmem:[%s298 + $0x30] sm:$0xff] %v307
              %v309 = vld [vmem:[%s297 + $0x38] sm:$0xff]
              %310 = vst [vmem:[%s298 + $0x38] sm:$0xff] %v309
              %v311 = vld [vmem:[%s297 + $0x48] sm:$0xff]
              %312 = vst [vmem:[%s298 + $0x48] sm:$0xff] %v311
              %v313 = vld [vmem:[%s297 + $0x50] sm:$0xff]
              %314 = vst [vmem:[%s298 + $0x50] sm:$0xff] %v313
              %v315 = vld [vmem:[%s297 + $0x60] sm:$0xff]
              %316 = vst [vmem:[%s298 + $0x60] sm:$0xff] %v315
              %v317 = vld [vmem:[%s297 + $0x68] sm:$0xff]
              %318 = vst [vmem:[%s298 + $0x68] sm:$0xff] %v317
              %v319 = vld [vmem:[%s297 + $0x78] sm:$0xff]
              %320 = vst [vmem:[%s298 + $0x78] sm:$0xff] %v319
              %v321 = vld [vmem:[%s297 + $0x80] sm:$0xff]
              %322 = vst [vmem:[%s298 + $0x80] sm:$0xff] %v321
              %v323 = vld [vmem:[%s297 + $0x90] sm:$0xff]
              %324 = vst [vmem:[%s298 + $0x90] sm:$0xff] %v323
              %v325 = vld [vmem:[%s297 + $0x98] sm:$0xff]
              %326 = vst [vmem:[%s298 + $0x98] sm:$0xff] %v325
              %v327 = vld [vmem:[%s297 + $0xa8] sm:$0xff]
              %328 = vst [vmem:[%s298 + $0xa8] sm:$0xff] %v327
              %v329 = vld [vmem:[%s297 + $0xb0] sm:$0xff]
              %330 = vst [vmem:[%s298 + $0xb0] sm:$0xff] %v329
              %v331 = vld [vmem:[%s297 + $0xc0] sm:$0xff]
              %332 = vst [vmem:[%s298 + $0xc0] sm:$0xff] %v331
              %v333 = vld [vmem:[%s297 + $0xc8] sm:$0xff]
              %334 = vst [vmem:[%s298 + $0xc8] sm:$0xff] %v333
              %v335 = vld [vmem:[%s297 + $0xd8] sm:$0xff]
              %336 = vst [vmem:[%s298 + $0xd8] sm:$0xff] %v335
              %v337 = vld [vmem:[%s297 + $0xe0] sm:$0xff]
              %338 = vst [vmem:[%s298 + $0xe0] sm:$0xff] %v337
              %v339 = vld [vmem:[%s297 + $0xf0] sm:$0xff]
              %340 = vst [vmem:[%s298 + $0xf0] sm:$0xff] %v339
              %v341 = vld [vmem:[%s297 + $0xf8] sm:$0xff]
              %342 = vst [vmem:[%s298 + $0xf8] sm:$0xff] %v341
              %v343 = vld [vmem:[%s297 + $0x108] sm:$0xff]
              %344 = vst [vmem:[%s298 + $0x108] sm:$0xff] %v343
              %v345 = vld [vmem:[%s297 + $0x110] sm:$0xff]
              %346 = vst [vmem:[%s298 + $0x110] sm:$0xff] %v345
              %v347 = vld [vmem:[%s297 + $0x120] sm:$0xff]
              %348 = vst [vmem:[%s298 + $0x120] sm:$0xff] %v347
              %v349 = vld [vmem:[%s297 + $0x128] sm:$0xff]
              %350 = vst [vmem:[%s298 + $0x128] sm:$0xff] %v349
              %v351 = vld [vmem:[%s297 + $0x138] sm:$0xff]
              %352 = vst [vmem:[%s298 + $0x138] sm:$0xff] %v351
              %v353 = vld [vmem:[%s297 + $0x140] sm:$0xff]
              %354 = vst [vmem:[%s298 + $0x140] sm:$0xff] %v353
              %v355 = vld [vmem:[%s297 + $0x150] sm:$0xff]
              %356 = vst [vmem:[%s298 + $0x150] sm:$0xff] %v355
              %v357 = vld [vmem:[%s297 + $0x158] sm:$0xff]
              %358 = vst [vmem:[%s298 + $0x158] sm:$0xff] %v357
              %v359 = vld [vmem:[%s297 + $0x168] sm:$0xff]
              %360 = vst [vmem:[%s298 + $0x168] sm:$0xff] %v359
              %v361 = vld [vmem:[%s297 + $0x170] sm:$0xff]
              %362 = vst [vmem:[%s298 + $0x170] sm:$0xff] %v361
              %v363 = vld [vmem:[%s297 + $0x180] sm:$0xff]
              %364 = vst [vmem:[%s298 + $0x180] sm:$0xff] %v363
              %v365 = vld [vmem:[%s297 + $0x188] sm:$0xff]
              %366 = vst [vmem:[%s298 + $0x188] sm:$0xff] %v365
              %v367 = vld [vmem:[%s297 + $0x198] sm:$0xff]
              %368 = vst [vmem:[%s298 + $0x198] sm:$0xff] %v367
              %v369 = vld [vmem:[%s297 + $0x1a0] sm:$0xff]
              %370 = vst [vmem:[%s298 + $0x1a0] sm:$0xff] %v369
              %v371 = vld [vmem:[%s297 + $0x1b0] sm:$0xff]
              %372 = vst [vmem:[%s298 + $0x1b0] sm:$0xff] %v371
              %v373 = vld [vmem:[%s297 + $0x1b8] sm:$0xff]
              %374 = vst [vmem:[%s298 + $0x1b8] sm:$0xff] %v373
              %v375 = vld [vmem:[%s297 + $0x1c8] sm:$0xff]
              %376 = vst [vmem:[%s298 + $0x1c8] sm:$0xff] %v375
              %v377 = vld [vmem:[%s297 + $0x1d0] sm:$0xff]
              %378 = vst [vmem:[%s298 + $0x1d0] sm:$0xff] %v377
            $region64: #{resblock2d_pallas.1} parent=58 // loop_footer
              %s296 = sadd.s32 1, %s292
            $region65: #{resblock2d_pallas.1} parent=58 // loop_footer_branch
              %291 = sbr.rel target = $region61
            $region66: #{resblock2d_pallas.1} parent=58 // loop_exit
              _
            %s379 = sshll.u32 1, %s286
            %s380 = ssub.s32 %s379, 1
            loop: start=0, step=1, limit=1
            $region67: #{resblock2d_pallas.1} parent=58 // loop_pre_header
              _
            $region68: #{resblock2d_pallas.1} parent=58 // loop_header
              %s382 = sphi 0, %s386
              %p383 = scmp.ge.s32.totalorder %s382, 1
              %s387 = sphi %s288, %s288
              %s388 = sphi %s290, %s290
            $region69: #{resblock2d_pallas.1} parent=58 // loop_header_branch
              %385 = sbr.rel (%p383) target = $region73
            $region70: #{resblock2d_pallas.1} parent=58 // loop_body
              %v389 = vld [vmem:[%s387] sm:%s380]
              %390 = vst [vmem:[%s388] sm:%s380] %v389
              %v391 = vld [vmem:[%s387 + $0x18] sm:%s380]
              %392 = vst [vmem:[%s388 + $0x18] sm:%s380] %v391
              %v393 = vld [vmem:[%s387 + $0x30] sm:%s380]
              %394 = vst [vmem:[%s388 + $0x30] sm:%s380] %v393
              %v395 = vld [vmem:[%s387 + $0x48] sm:%s380]
              %396 = vst [vmem:[%s388 + $0x48] sm:%s380] %v395
              %v397 = vld [vmem:[%s387 + $0x60] sm:%s380]
              %398 = vst [vmem:[%s388 + $0x60] sm:%s380] %v397
              %v399 = vld [vmem:[%s387 + $0x78] sm:%s380]
              %400 = vst [vmem:[%s388 + $0x78] sm:%s380] %v399
              %v401 = vld [vmem:[%s387 + $0x90] sm:%s380]
              %402 = vst [vmem:[%s388 + $0x90] sm:%s380] %v401
              %v403 = vld [vmem:[%s387 + $0xa8] sm:%s380]
              %404 = vst [vmem:[%s388 + $0xa8] sm:%s380] %v403
              %v405 = vld [vmem:[%s387 + $0xc0] sm:%s380]
              %406 = vst [vmem:[%s388 + $0xc0] sm:%s380] %v405
              %v407 = vld [vmem:[%s387 + $0xd8] sm:%s380]
              %408 = vst [vmem:[%s388 + $0xd8] sm:%s380] %v407
              %v409 = vld [vmem:[%s387 + $0xf0] sm:%s380]
              %410 = vst [vmem:[%s388 + $0xf0] sm:%s380] %v409
              %v411 = vld [vmem:[%s387 + $0x108] sm:%s380]
              %412 = vst [vmem:[%s388 + $0x108] sm:%s380] %v411
              %v413 = vld [vmem:[%s387 + $0x120] sm:%s380]
              %414 = vst [vmem:[%s388 + $0x120] sm:%s380] %v413
              %v415 = vld [vmem:[%s387 + $0x138] sm:%s380]
              %416 = vst [vmem:[%s388 + $0x138] sm:%s380] %v415
              %v417 = vld [vmem:[%s387 + $0x150] sm:%s380]
              %418 = vst [vmem:[%s388 + $0x150] sm:%s380] %v417
              %v419 = vld [vmem:[%s387 + $0x168] sm:%s380]
              %420 = vst [vmem:[%s388 + $0x168] sm:%s380] %v419
              %v421 = vld [vmem:[%s387 + $0x180] sm:%s380]
              %422 = vst [vmem:[%s388 + $0x180] sm:%s380] %v421
              %v423 = vld [vmem:[%s387 + $0x198] sm:%s380]
              %424 = vst [vmem:[%s388 + $0x198] sm:%s380] %v423
              %v425 = vld [vmem:[%s387 + $0x1b0] sm:%s380]
              %426 = vst [vmem:[%s388 + $0x1b0] sm:%s380] %v425
              %v427 = vld [vmem:[%s387 + $0x1c8] sm:%s380]
              %428 = vst [vmem:[%s388 + $0x1c8] sm:%s380] %v427
            $region71: #{resblock2d_pallas.1} parent=58 // loop_footer
              %s386 = sadd.s32 1, %s382
            $region72: #{resblock2d_pallas.1} parent=58 // loop_footer_branch
              %381 = sbr.rel target = $region68
            $region73: #{resblock2d_pallas.1} parent=58 // loop_exit
              _
          $region59: #{resblock2d_pallas.1} parent=43 // pred_fallthru
            _
        $region44: #{resblock2d_pallas.1} parent=39 // pred_fallthru
          _
        // Predicated region
        $region45: #{resblock2d_pallas.1} parent=39 // pred_check
          %p228 = pneg %p224
        $region46: #{resblock2d_pallas.1} parent=39 // pred_check_branch
          %230 = sbr.rel (%p228) target = $region48
        $region47: #{resblock2d_pallas.1} parent=39 // pred_region
          %s231 = sshll.u32 1, 18
          %s232 = ssub.s32 %s231, 1
          loop: start=0, step=1, limit=1
          $region49: #{resblock2d_pallas.1} parent=47 // loop_pre_header
            _
          $region50: #{resblock2d_pallas.1} parent=47 // loop_header
            %s234 = sphi 0, %s238
            %p235 = scmp.ge.s32.totalorder %s234, 1
            %s239 = sphi %s222, %s222
            %s240 = sphi [#allocation2], [#allocation2]
          $region51: #{resblock2d_pallas.1} parent=47 // loop_header_branch
            %237 = sbr.rel (%p235) target = $region55
          $region52: #{resblock2d_pallas.1} parent=47 // loop_body
            %v241 = vld [vmem:[%s239] sm:%s232]
            %242 = vst [vmem:[%s240] sm:%s232] %v241
            %v243 = vld [vmem:[%s239 + $0x18] sm:%s232]
            %244 = vst [vmem:[%s240 + $0x18] sm:%s232] %v243
            %v245 = vld [vmem:[%s239 + $0x30] sm:%s232]
            %246 = vst [vmem:[%s240 + $0x30] sm:%s232] %v245
            %v247 = vld [vmem:[%s239 + $0x48] sm:%s232]
            %248 = vst [vmem:[%s240 + $0x48] sm:%s232] %v247
            %v249 = vld [vmem:[%s239 + $0x60] sm:%s232]
            %250 = vst [vmem:[%s240 + $0x60] sm:%s232] %v249
            %v251 = vld [vmem:[%s239 + $0x78] sm:%s232]
            %252 = vst [vmem:[%s240 + $0x78] sm:%s232] %v251
            %v253 = vld [vmem:[%s239 + $0x90] sm:%s232]
            %254 = vst [vmem:[%s240 + $0x90] sm:%s232] %v253
            %v255 = vld [vmem:[%s239 + $0xa8] sm:%s232]
            %256 = vst [vmem:[%s240 + $0xa8] sm:%s232] %v255
            %v257 = vld [vmem:[%s239 + $0xc0] sm:%s232]
            %258 = vst [vmem:[%s240 + $0xc0] sm:%s232] %v257
            %v259 = vld [vmem:[%s239 + $0xd8] sm:%s232]
            %260 = vst [vmem:[%s240 + $0xd8] sm:%s232] %v259
            %v261 = vld [vmem:[%s239 + $0xf0] sm:%s232]
            %262 = vst [vmem:[%s240 + $0xf0] sm:%s232] %v261
            %v263 = vld [vmem:[%s239 + $0x108] sm:%s232]
            %264 = vst [vmem:[%s240 + $0x108] sm:%s232] %v263
            %v265 = vld [vmem:[%s239 + $0x120] sm:%s232]
            %266 = vst [vmem:[%s240 + $0x120] sm:%s232] %v265
            %v267 = vld [vmem:[%s239 + $0x138] sm:%s232]
            %268 = vst [vmem:[%s240 + $0x138] sm:%s232] %v267
            %v269 = vld [vmem:[%s239 + $0x150] sm:%s232]
            %270 = vst [vmem:[%s240 + $0x150] sm:%s232] %v269
            %v271 = vld [vmem:[%s239 + $0x168] sm:%s232]
            %272 = vst [vmem:[%s240 + $0x168] sm:%s232] %v271
            %v273 = vld [vmem:[%s239 + $0x180] sm:%s232]
            %274 = vst [vmem:[%s240 + $0x180] sm:%s232] %v273
            %v275 = vld [vmem:[%s239 + $0x198] sm:%s232]
            %276 = vst [vmem:[%s240 + $0x198] sm:%s232] %v275
            %v277 = vld [vmem:[%s239 + $0x1b0] sm:%s232]
            %278 = vst [vmem:[%s240 + $0x1b0] sm:%s232] %v277
            %v279 = vld [vmem:[%s239 + $0x1c8] sm:%s232]
            %280 = vst [vmem:[%s240 + $0x1c8] sm:%s232] %v279
          $region53: #{resblock2d_pallas.1} parent=47 // loop_footer
            %s238 = sadd.s32 1, %s234
          $region54: #{resblock2d_pallas.1} parent=47 // loop_footer_branch
            %233 = sbr.rel target = $region50
          $region55: #{resblock2d_pallas.1} parent=47 // loop_exit
            _
        $region48: #{resblock2d_pallas.1} parent=39 // pred_fallthru
          _
        // Predicated region
        $region74: #{resblock2d_pallas.1} parent=39 // pred_check
          _
        $region75: #{resblock2d_pallas.1} parent=39 // pred_check_branch
          %431 = sbr.rel (0) target = $region77
        $region76: #{resblock2d_pallas.1} parent=39 // pred_region
          %432 = vsyncadd [#allocation4], 5760
        $region77: #{resblock2d_pallas.1} parent=39 // pred_fallthru
          _
      $region40: #{resblock2d_pallas.1} parent=35 // pred_fallthru
        _
      %s433 = sadd.s32 %s21, 1
      %p434 = scmp.lt.s32.totalorder %s433, 1
      // Predicated region
      $region78: #{resblock2d_pallas.1} parent=35 // pred_check
        %p435 = pneg %p434
      $region79: #{resblock2d_pallas.1} parent=35 // pred_check_branch
        %437 = sbr.rel (%p435) target = $region81
      $region80: #{resblock2d_pallas.1} parent=35 // pred_region
        %s438 = ssub.s32 1, %s216
        %s439 = smul.u32 %s433, 16
        %s440 = smul.u32 %s439, 24
        %s441 = smul.u32 %s20, 480
        %s442 = sadd.s32 %s440, %s441
        %s443 = scalar_lea.vmem %s0, %s442
        %s444 = smul.u32 %s438, 480
        %s445 = scalar_lea.vmem [#allocation2], %s444
        %s446 = scalar_lea.sflag [#allocation4], %s438
        %p448 = scmp.lt.u32.totalorder 18, 8
        %p449 = pneg %p448
        // Predicated region
        $region82: #{resblock2d_pallas.1} parent=80 // pred_check
          _
        $region83: #{resblock2d_pallas.1} parent=80 // pred_check_branch
          %451 = sbr.rel (%p448) target = $region85
        $region84: #{resblock2d_pallas.1} parent=80 // pred_region
          %s505 = sand.u32 18, 7
          %p506 = scmp.eq.s32.totalorder %s505, 0
          %p507 = pneg %p506
          // Predicated region
          $region97: #{resblock2d_pallas.1} parent=84 // pred_check
            _
          $region98: #{resblock2d_pallas.1} parent=84 // pred_check_branch
            %509 = sbr.rel (%p506) target = $region100
          $region99: #{resblock2d_pallas.1} parent=84 // pred_region
            %s510 = sand.u32 18, 7
            %s511 = ssub.s32 18, %s510
            %s512 = scalar_lea.vmem %s443, %s511
            %s513 = ssub.s32 18, %s510
            %s514 = scalar_lea.vmem %s445, %s513 [#allocation2]
            loop: start=0, step=1, limit=1
            $region101: #{resblock2d_pallas.1} parent=99 // loop_pre_header
              _
            $region102: #{resblock2d_pallas.1} parent=99 // loop_header
              %s516 = sphi 0, %s520
              %p517 = scmp.ge.s32.totalorder %s516, 1
              %s521 = sphi %s443, %s443
              %s522 = sphi %s445, %s445
            $region103: #{resblock2d_pallas.1} parent=99 // loop_header_branch
              %519 = sbr.rel (%p517) target = $region107
            $region104: #{resblock2d_pallas.1} parent=99 // loop_body
              %v523 = vld [vmem:[%s521] sm:$0xff]
              %524 = vst [vmem:[%s522] sm:$0xff] %v523
              %v525 = vld [vmem:[%s521 + $0x8] sm:$0xff]
              %526 = vst [vmem:[%s522 + $0x8] sm:$0xff] %v525
              %v527 = vld [vmem:[%s521 + $0x18] sm:$0xff]
              %528 = vst [vmem:[%s522 + $0x18] sm:$0xff] %v527
              %v529 = vld [vmem:[%s521 + $0x20] sm:$0xff]
              %530 = vst [vmem:[%s522 + $0x20] sm:$0xff] %v529
              %v531 = vld [vmem:[%s521 + $0x30] sm:$0xff]
              %532 = vst [vmem:[%s522 + $0x30] sm:$0xff] %v531
              %v533 = vld [vmem:[%s521 + $0x38] sm:$0xff]
              %534 = vst [vmem:[%s522 + $0x38] sm:$0xff] %v533
              %v535 = vld [vmem:[%s521 + $0x48] sm:$0xff]
              %536 = vst [vmem:[%s522 + $0x48] sm:$0xff] %v535
              %v537 = vld [vmem:[%s521 + $0x50] sm:$0xff]
              %538 = vst [vmem:[%s522 + $0x50] sm:$0xff] %v537
              %v539 = vld [vmem:[%s521 + $0x60] sm:$0xff]
              %540 = vst [vmem:[%s522 + $0x60] sm:$0xff] %v539
              %v541 = vld [vmem:[%s521 + $0x68] sm:$0xff]
              %542 = vst [vmem:[%s522 + $0x68] sm:$0xff] %v541
              %v543 = vld [vmem:[%s521 + $0x78] sm:$0xff]
              %544 = vst [vmem:[%s522 + $0x78] sm:$0xff] %v543
              %v545 = vld [vmem:[%s521 + $0x80] sm:$0xff]
              %546 = vst [vmem:[%s522 + $0x80] sm:$0xff] %v545
              %v547 = vld [vmem:[%s521 + $0x90] sm:$0xff]
              %548 = vst [vmem:[%s522 + $0x90] sm:$0xff] %v547
              %v549 = vld [vmem:[%s521 + $0x98] sm:$0xff]
              %550 = vst [vmem:[%s522 + $0x98] sm:$0xff] %v549
              %v551 = vld [vmem:[%s521 + $0xa8] sm:$0xff]
              %552 = vst [vmem:[%s522 + $0xa8] sm:$0xff] %v551
              %v553 = vld [vmem:[%s521 + $0xb0] sm:$0xff]
              %554 = vst [vmem:[%s522 + $0xb0] sm:$0xff] %v553
              %v555 = vld [vmem:[%s521 + $0xc0] sm:$0xff]
              %556 = vst [vmem:[%s522 + $0xc0] sm:$0xff] %v555
              %v557 = vld [vmem:[%s521 + $0xc8] sm:$0xff]
              %558 = vst [vmem:[%s522 + $0xc8] sm:$0xff] %v557
              %v559 = vld [vmem:[%s521 + $0xd8] sm:$0xff]
              %560 = vst [vmem:[%s522 + $0xd8] sm:$0xff] %v559
              %v561 = vld [vmem:[%s521 + $0xe0] sm:$0xff]
              %562 = vst [vmem:[%s522 + $0xe0] sm:$0xff] %v561
              %v563 = vld [vmem:[%s521 + $0xf0] sm:$0xff]
              %564 = vst [vmem:[%s522 + $0xf0] sm:$0xff] %v563
              %v565 = vld [vmem:[%s521 + $0xf8] sm:$0xff]
              %566 = vst [vmem:[%s522 + $0xf8] sm:$0xff] %v565
              %v567 = vld [vmem:[%s521 + $0x108] sm:$0xff]
              %568 = vst [vmem:[%s522 + $0x108] sm:$0xff] %v567
              %v569 = vld [vmem:[%s521 + $0x110] sm:$0xff]
              %570 = vst [vmem:[%s522 + $0x110] sm:$0xff] %v569
              %v571 = vld [vmem:[%s521 + $0x120] sm:$0xff]
              %572 = vst [vmem:[%s522 + $0x120] sm:$0xff] %v571
              %v573 = vld [vmem:[%s521 + $0x128] sm:$0xff]
              %574 = vst [vmem:[%s522 + $0x128] sm:$0xff] %v573
              %v575 = vld [vmem:[%s521 + $0x138] sm:$0xff]
              %576 = vst [vmem:[%s522 + $0x138] sm:$0xff] %v575
              %v577 = vld [vmem:[%s521 + $0x140] sm:$0xff]
              %578 = vst [vmem:[%s522 + $0x140] sm:$0xff] %v577
              %v579 = vld [vmem:[%s521 + $0x150] sm:$0xff]
              %580 = vst [vmem:[%s522 + $0x150] sm:$0xff] %v579
              %v581 = vld [vmem:[%s521 + $0x158] sm:$0xff]
              %582 = vst [vmem:[%s522 + $0x158] sm:$0xff] %v581
              %v583 = vld [vmem:[%s521 + $0x168] sm:$0xff]
              %584 = vst [vmem:[%s522 + $0x168] sm:$0xff] %v583
              %v585 = vld [vmem:[%s521 + $0x170] sm:$0xff]
              %586 = vst [vmem:[%s522 + $0x170] sm:$0xff] %v585
              %v587 = vld [vmem:[%s521 + $0x180] sm:$0xff]
              %588 = vst [vmem:[%s522 + $0x180] sm:$0xff] %v587
              %v589 = vld [vmem:[%s521 + $0x188] sm:$0xff]
              %590 = vst [vmem:[%s522 + $0x188] sm:$0xff] %v589
              %v591 = vld [vmem:[%s521 + $0x198] sm:$0xff]
              %592 = vst [vmem:[%s522 + $0x198] sm:$0xff] %v591
              %v593 = vld [vmem:[%s521 + $0x1a0] sm:$0xff]
              %594 = vst [vmem:[%s522 + $0x1a0] sm:$0xff] %v593
              %v595 = vld [vmem:[%s521 + $0x1b0] sm:$0xff]
              %596 = vst [vmem:[%s522 + $0x1b0] sm:$0xff] %v595
              %v597 = vld [vmem:[%s521 + $0x1b8] sm:$0xff]
              %598 = vst [vmem:[%s522 + $0x1b8] sm:$0xff] %v597
              %v599 = vld [vmem:[%s521 + $0x1c8] sm:$0xff]
              %600 = vst [vmem:[%s522 + $0x1c8] sm:$0xff] %v599
              %v601 = vld [vmem:[%s521 + $0x1d0] sm:$0xff]
              %602 = vst [vmem:[%s522 + $0x1d0] sm:$0xff] %v601
            $region105: #{resblock2d_pallas.1} parent=99 // loop_footer
              %s520 = sadd.s32 1, %s516
            $region106: #{resblock2d_pallas.1} parent=99 // loop_footer_branch
              %515 = sbr.rel target = $region102
            $region107: #{resblock2d_pallas.1} parent=99 // loop_exit
              _
            %s603 = sshll.u32 1, %s510
            %s604 = ssub.s32 %s603, 1
            loop: start=0, step=1, limit=1
            $region108: #{resblock2d_pallas.1} parent=99 // loop_pre_header
              _
            $region109: #{resblock2d_pallas.1} parent=99 // loop_header
              %s606 = sphi 0, %s610
              %p607 = scmp.ge.s32.totalorder %s606, 1
              %s611 = sphi %s512, %s512
              %s612 = sphi %s514, %s514
            $region110: #{resblock2d_pallas.1} parent=99 // loop_header_branch
              %609 = sbr.rel (%p607) target = $region114
            $region111: #{resblock2d_pallas.1} parent=99 // loop_body
              %v613 = vld [vmem:[%s611] sm:%s604]
              %614 = vst [vmem:[%s612] sm:%s604] %v613
              %v615 = vld [vmem:[%s611 + $0x18] sm:%s604]
              %616 = vst [vmem:[%s612 + $0x18] sm:%s604] %v615
              %v617 = vld [vmem:[%s611 + $0x30] sm:%s604]
              %618 = vst [vmem:[%s612 + $0x30] sm:%s604] %v617
              %v619 = vld [vmem:[%s611 + $0x48] sm:%s604]
              %620 = vst [vmem:[%s612 + $0x48] sm:%s604] %v619
              %v621 = vld [vmem:[%s611 + $0x60] sm:%s604]
              %622 = vst [vmem:[%s612 + $0x60] sm:%s604] %v621
              %v623 = vld [vmem:[%s611 + $0x78] sm:%s604]
              %624 = vst [vmem:[%s612 + $0x78] sm:%s604] %v623
              %v625 = vld [vmem:[%s611 + $0x90] sm:%s604]
              %626 = vst [vmem:[%s612 + $0x90] sm:%s604] %v625
              %v627 = vld [vmem:[%s611 + $0xa8] sm:%s604]
              %628 = vst [vmem:[%s612 + $0xa8] sm:%s604] %v627
              %v629 = vld [vmem:[%s611 + $0xc0] sm:%s604]
              %630 = vst [vmem:[%s612 + $0xc0] sm:%s604] %v629
              %v631 = vld [vmem:[%s611 + $0xd8] sm:%s604]
              %632 = vst [vmem:[%s612 + $0xd8] sm:%s604] %v631
              %v633 = vld [vmem:[%s611 + $0xf0] sm:%s604]
              %634 = vst [vmem:[%s612 + $0xf0] sm:%s604] %v633
              %v635 = vld [vmem:[%s611 + $0x108] sm:%s604]
              %636 = vst [vmem:[%s612 + $0x108] sm:%s604] %v635
              %v637 = vld [vmem:[%s611 + $0x120] sm:%s604]
              %638 = vst [vmem:[%s612 + $0x120] sm:%s604] %v637
              %v639 = vld [vmem:[%s611 + $0x138] sm:%s604]
              %640 = vst [vmem:[%s612 + $0x138] sm:%s604] %v639
              %v641 = vld [vmem:[%s611 + $0x150] sm:%s604]
              %642 = vst [vmem:[%s612 + $0x150] sm:%s604] %v641
              %v643 = vld [vmem:[%s611 + $0x168] sm:%s604]
              %644 = vst [vmem:[%s612 + $0x168] sm:%s604] %v643
              %v645 = vld [vmem:[%s611 + $0x180] sm:%s604]
              %646 = vst [vmem:[%s612 + $0x180] sm:%s604] %v645
              %v647 = vld [vmem:[%s611 + $0x198] sm:%s604]
              %648 = vst [vmem:[%s612 + $0x198] sm:%s604] %v647
              %v649 = vld [vmem:[%s611 + $0x1b0] sm:%s604]
              %650 = vst [vmem:[%s612 + $0x1b0] sm:%s604] %v649
              %v651 = vld [vmem:[%s611 + $0x1c8] sm:%s604]
              %652 = vst [vmem:[%s612 + $0x1c8] sm:%s604] %v651
            $region112: #{resblock2d_pallas.1} parent=99 // loop_footer
              %s610 = sadd.s32 1, %s606
            $region113: #{resblock2d_pallas.1} parent=99 // loop_footer_branch
              %605 = sbr.rel target = $region109
            $region114: #{resblock2d_pallas.1} parent=99 // loop_exit
              _
          $region100: #{resblock2d_pallas.1} parent=84 // pred_fallthru
            _
        $region85: #{resblock2d_pallas.1} parent=80 // pred_fallthru
          _
        // Predicated region
        $region86: #{resblock2d_pallas.1} parent=80 // pred_check
          %p452 = pneg %p448
        $region87: #{resblock2d_pallas.1} parent=80 // pred_check_branch
          %454 = sbr.rel (%p452) target = $region89
        $region88: #{resblock2d_pallas.1} parent=80 // pred_region
          %s455 = sshll.u32 1, 18
          %s456 = ssub.s32 %s455, 1
          loop: start=0, step=1, limit=1
          $region90: #{resblock2d_pallas.1} parent=88 // loop_pre_header
            _
          $region91: #{resblock2d_pallas.1} parent=88 // loop_header
            %s458 = sphi 0, %s462
            %p459 = scmp.ge.s32.totalorder %s458, 1
            %s463 = sphi %s443, %s443
            %s464 = sphi %s445, %s445
          $region92: #{resblock2d_pallas.1} parent=88 // loop_header_branch
            %461 = sbr.rel (%p459) target = $region96
          $region93: #{resblock2d_pallas.1} parent=88 // loop_body
            %v465 = vld [vmem:[%s463] sm:%s456]
            %466 = vst [vmem:[%s464] sm:%s456] %v465
            %v467 = vld [vmem:[%s463 + $0x18] sm:%s456]
            %468 = vst [vmem:[%s464 + $0x18] sm:%s456] %v467
            %v469 = vld [vmem:[%s463 + $0x30] sm:%s456]
            %470 = vst [vmem:[%s464 + $0x30] sm:%s456] %v469
            %v471 = vld [vmem:[%s463 + $0x48] sm:%s456]
            %472 = vst [vmem:[%s464 + $0x48] sm:%s456] %v471
            %v473 = vld [vmem:[%s463 + $0x60] sm:%s456]
            %474 = vst [vmem:[%s464 + $0x60] sm:%s456] %v473
            %v475 = vld [vmem:[%s463 + $0x78] sm:%s456]
            %476 = vst [vmem:[%s464 + $0x78] sm:%s456] %v475
            %v477 = vld [vmem:[%s463 + $0x90] sm:%s456]
            %478 = vst [vmem:[%s464 + $0x90] sm:%s456] %v477
            %v479 = vld [vmem:[%s463 + $0xa8] sm:%s456]
            %480 = vst [vmem:[%s464 + $0xa8] sm:%s456] %v479
            %v481 = vld [vmem:[%s463 + $0xc0] sm:%s456]
            %482 = vst [vmem:[%s464 + $0xc0] sm:%s456] %v481
            %v483 = vld [vmem:[%s463 + $0xd8] sm:%s456]
            %484 = vst [vmem:[%s464 + $0xd8] sm:%s456] %v483
            %v485 = vld [vmem:[%s463 + $0xf0] sm:%s456]
            %486 = vst [vmem:[%s464 + $0xf0] sm:%s456] %v485
            %v487 = vld [vmem:[%s463 + $0x108] sm:%s456]
            %488 = vst [vmem:[%s464 + $0x108] sm:%s456] %v487
            %v489 = vld [vmem:[%s463 + $0x120] sm:%s456]
            %490 = vst [vmem:[%s464 + $0x120] sm:%s456] %v489
            %v491 = vld [vmem:[%s463 + $0x138] sm:%s456]
            %492 = vst [vmem:[%s464 + $0x138] sm:%s456] %v491
            %v493 = vld [vmem:[%s463 + $0x150] sm:%s456]
            %494 = vst [vmem:[%s464 + $0x150] sm:%s456] %v493
            %v495 = vld [vmem:[%s463 + $0x168] sm:%s456]
            %496 = vst [vmem:[%s464 + $0x168] sm:%s456] %v495
            %v497 = vld [vmem:[%s463 + $0x180] sm:%s456]
            %498 = vst [vmem:[%s464 + $0x180] sm:%s456] %v497
            %v499 = vld [vmem:[%s463 + $0x198] sm:%s456]
            %500 = vst [vmem:[%s464 + $0x198] sm:%s456] %v499
            %v501 = vld [vmem:[%s463 + $0x1b0] sm:%s456]
            %502 = vst [vmem:[%s464 + $0x1b0] sm:%s456] %v501
            %v503 = vld [vmem:[%s463 + $0x1c8] sm:%s456]
            %504 = vst [vmem:[%s464 + $0x1c8] sm:%s456] %v503
          $region94: #{resblock2d_pallas.1} parent=88 // loop_footer
            %s462 = sadd.s32 1, %s458
          $region95: #{resblock2d_pallas.1} parent=88 // loop_footer_branch
            %457 = sbr.rel target = $region91
          $region96: #{resblock2d_pallas.1} parent=88 // loop_exit
            _
        $region89: #{resblock2d_pallas.1} parent=80 // pred_fallthru
          _
        // Predicated region
        $region115: #{resblock2d_pallas.1} parent=80 // pred_check
          _
        $region116: #{resblock2d_pallas.1} parent=80 // pred_check_branch
          %655 = sbr.rel (0) target = $region118
        $region117: #{resblock2d_pallas.1} parent=80 // pred_region
          %656 = vsyncadd %s446, 5760
        $region118: #{resblock2d_pallas.1} parent=80 // pred_fallthru
          _
      $region81: #{resblock2d_pallas.1} parent=35 // pred_fallthru
        _
      %s657 = smul.u32 %s216, 480
      %s658 = scalar_lea.vmem [#allocation2], %s657
      %s659 = scalar_lea.sflag [#allocation4], %s216
      %s660 = smul.u32 20, 18
      %s661 = smul.u32 %s660, 1
      %s662 = sshll.u32 %s661, 4
      %663 = dma.done %s659, %s662
      %v664 = vld [vmem:[%s658] sm:$0xff]
      %v665 = vld [vmem:[%s658 + $0x8] sm:$0xff]
      %v666 = vld [vmem:[%s658 + $0x10] sm:$0x3]
      %v667 = vld [vmem:[%s658 + $0x18] sm:$0xff]
      %v668 = vld [vmem:[%s658 + $0x20] sm:$0xff]
      %v669 = vld [vmem:[%s658 + $0x28] sm:$0x3]
      %v670 = vld [vmem:[%s658 + $0x30] sm:$0xff]
      %v671 = vld [vmem:[%s658 + $0x38] sm:$0xff]
      %v672 = vld [vmem:[%s658 + $0x40] sm:$0x3]
      %v673 = vld [vmem:[%s658 + $0x48] sm:$0xff]
      %v674 = vld [vmem:[%s658 + $0x50] sm:$0xff]
      %v675 = vld [vmem:[%s658 + $0x58] sm:$0x3]
      %v676 = vld [vmem:[%s658 + $0x60] sm:$0xff]
      %v677 = vld [vmem:[%s658 + $0x68] sm:$0xff]
      %v678 = vld [vmem:[%s658 + $0x70] sm:$0x3]
      %v679 = vld [vmem:[%s658 + $0x78] sm:$0xff]
      %v680 = vld [vmem:[%s658 + $0x80] sm:$0xff]
      %v681 = vld [vmem:[%s658 + $0x88] sm:$0x3]
      %v682 = vld [vmem:[%s658 + $0x90] sm:$0xff]
      %v683 = vld [vmem:[%s658 + $0x98] sm:$0xff]
      %v684 = vld [vmem:[%s658 + $0xa0] sm:$0x3]
      %v685 = vld [vmem:[%s658 + $0xa8] sm:$0xff]
      %v686 = vld [vmem:[%s658 + $0xb0] sm:$0xff]
      %v687 = vld [vmem:[%s658 + $0xb8] sm:$0x3]
      %v688 = vld [vmem:[%s658 + $0xc0] sm:$0xff]
      %v689 = vld [vmem:[%s658 + $0xc8] sm:$0xff]
      %v690 = vld [vmem:[%s658 + $0xd0] sm:$0x3]
      %v691 = vld [vmem:[%s658 + $0xd8] sm:$0xff]
      %v692 = vld [vmem:[%s658 + $0xe0] sm:$0xff]
      %v693 = vld [vmem:[%s658 + $0xe8] sm:$0x3]
      %v694 = vld [vmem:[%s658 + $0xf0] sm:$0xff]
      %v695 = vld [vmem:[%s658 + $0xf8] sm:$0xff]
      %v696 = vld [vmem:[%s658 + $0x100] sm:$0x3]
      %v697 = vld [vmem:[%s658 + $0x108] sm:$0xff]
      %v698 = vld [vmem:[%s658 + $0x110] sm:$0xff]
      %v699 = vld [vmem:[%s658 + $0x118] sm:$0x3]
      %v700 = vld [vmem:[%s658 + $0x120] sm:$0xff]
      %v701 = vld [vmem:[%s658 + $0x128] sm:$0xff]
      %v702 = vld [vmem:[%s658 + $0x130] sm:$0x3]
      %v703 = vld [vmem:[%s658 + $0x138] sm:$0xff]
      %v704 = vld [vmem:[%s658 + $0x140] sm:$0xff]
      %v705 = vld [vmem:[%s658 + $0x148] sm:$0x3]
      %v706 = vld [vmem:[%s658 + $0x150] sm:$0xff]
      %v707 = vld [vmem:[%s658 + $0x158] sm:$0xff]
      %v708 = vld [vmem:[%s658 + $0x160] sm:$0x3]
      %v709 = vld [vmem:[%s658 + $0x168] sm:$0xff]
      %v710 = vld [vmem:[%s658 + $0x170] sm:$0xff]
      %v711 = vld [vmem:[%s658 + $0x178] sm:$0x3]
      %v712 = vld [vmem:[%s658 + $0x180] sm:$0xff]
      %v713 = vld [vmem:[%s658 + $0x188] sm:$0xff]
      %v714 = vld [vmem:[%s658 + $0x190] sm:$0x3]
      %v715 = vld [vmem:[%s658 + $0x198] sm:$0xff]
      %v716 = vld [vmem:[%s658 + $0x1a0] sm:$0xff]
      %v717 = vld [vmem:[%s658 + $0x1a8] sm:$0x3]
      %v718 = vld [vmem:[%s658 + $0x1b0] sm:$0xff]
      %v719 = vld [vmem:[%s658 + $0x1b8] sm:$0xff]
      %v720 = vld [vmem:[%s658 + $0x1c0] sm:$0x3]
      %v721 = vld [vmem:[%s658 + $0x1c8] sm:$0xff]
      %v722 = vld [vmem:[%s658 + $0x1d0] sm:$0xff]
      %v723 = vld [vmem:[%s658 + $0x1d8] sm:$0x3]
      %vm724 = vcmp.ge.f32.partialorder %v664, 0.0
      %vm725 = vcmp.ge.f32.partialorder %v665, 0.0
      %vm726 = vcmp.ge.f32.partialorder %v666, 0.0
      %vm727 = vcmp.ge.f32.partialorder %v667, 0.0
      %vm728 = vcmp.ge.f32.partialorder %v668, 0.0
      %vm729 = vcmp.ge.f32.partialorder %v669, 0.0
      %vm730 = vcmp.ge.f32.partialorder %v670, 0.0
      %vm731 = vcmp.ge.f32.partialorder %v671, 0.0
      %vm732 = vcmp.ge.f32.partialorder %v672, 0.0
      %vm733 = vcmp.ge.f32.partialorder %v673, 0.0
      %vm734 = vcmp.ge.f32.partialorder %v674, 0.0
      %vm735 = vcmp.ge.f32.partialorder %v675, 0.0
      %vm736 = vcmp.ge.f32.partialorder %v676, 0.0
      %vm737 = vcmp.ge.f32.partialorder %v677, 0.0
      %vm738 = vcmp.ge.f32.partialorder %v678, 0.0
      %vm739 = vcmp.ge.f32.partialorder %v679, 0.0
      %vm740 = vcmp.ge.f32.partialorder %v680, 0.0
      %vm741 = vcmp.ge.f32.partialorder %v681, 0.0
      %vm742 = vcmp.ge.f32.partialorder %v682, 0.0
      %vm743 = vcmp.ge.f32.partialorder %v683, 0.0
      %vm744 = vcmp.ge.f32.partialorder %v684, 0.0
      %vm745 = vcmp.ge.f32.partialorder %v685, 0.0
      %vm746 = vcmp.ge.f32.partialorder %v686, 0.0
      %vm747 = vcmp.ge.f32.partialorder %v687, 0.0
      %vm748 = vcmp.ge.f32.partialorder %v688, 0.0
      %vm749 = vcmp.ge.f32.partialorder %v689, 0.0
      %vm750 = vcmp.ge.f32.partialorder %v690, 0.0
      %vm751 = vcmp.ge.f32.partialorder %v691, 0.0
      %vm752 = vcmp.ge.f32.partialorder %v692, 0.0
      %vm753 = vcmp.ge.f32.partialorder %v693, 0.0
      %vm754 = vcmp.ge.f32.partialorder %v694, 0.0
      %vm755 = vcmp.ge.f32.partialorder %v695, 0.0
      %vm756 = vcmp.ge.f32.partialorder %v696, 0.0
      %vm757 = vcmp.ge.f32.partialorder %v697, 0.0
      %vm758 = vcmp.ge.f32.partialorder %v698, 0.0
      %vm759 = vcmp.ge.f32.partialorder %v699, 0.0
      %vm760 = vcmp.ge.f32.partialorder %v700, 0.0
      %vm761 = vcmp.ge.f32.partialorder %v701, 0.0
      %vm762 = vcmp.ge.f32.partialorder %v702, 0.0
      %vm763 = vcmp.ge.f32.partialorder %v703, 0.0
      %vm764 = vcmp.ge.f32.partialorder %v704, 0.0
      %vm765 = vcmp.ge.f32.partialorder %v705, 0.0
      %vm766 = vcmp.ge.f32.partialorder %v706, 0.0
      %vm767 = vcmp.ge.f32.partialorder %v707, 0.0
      %vm768 = vcmp.ge.f32.partialorder %v708, 0.0
      %vm769 = vcmp.ge.f32.partialorder %v709, 0.0
      %vm770 = vcmp.ge.f32.partialorder %v710, 0.0
      %vm771 = vcmp.ge.f32.partialorder %v711, 0.0
      %vm772 = vcmp.ge.f32.partialorder %v712, 0.0
      %vm773 = vcmp.ge.f32.partialorder %v713, 0.0
      %vm774 = vcmp.ge.f32.partialorder %v714, 0.0
      %vm775 = vcmp.ge.f32.partialorder %v715, 0.0
      %vm776 = vcmp.ge.f32.partialorder %v716, 0.0
      %vm777 = vcmp.ge.f32.partialorder %v717, 0.0
      %vm778 = vcmp.ge.f32.partialorder %v718, 0.0
      %vm779 = vcmp.ge.f32.partialorder %v719, 0.0
      %vm780 = vcmp.ge.f32.partialorder %v720, 0.0
      %vm781 = vcmp.ge.f32.partialorder %v721, 0.0
      %vm782 = vcmp.ge.f32.partialorder %v722, 0.0
      %vm783 = vcmp.ge.f32.partialorder %v723, 0.0
      %v784 = vmul.f32 %v664, 0.1
      %v785 = vmul.f32 %v665, 0.1
      %v786 = vmul.f32 %v666, 0.1
      %v787 = vmul.f32 %v667, 0.1
      %v788 = vmul.f32 %v668, 0.1
      %v789 = vmul.f32 %v669, 0.1
      %v790 = vmul.f32 %v670, 0.1
      %v791 = vmul.f32 %v671, 0.1
      %v792 = vmul.f32 %v672, 0.1
      %v793 = vmul.f32 %v673, 0.1
      %v794 = vmul.f32 %v674, 0.1
      %v795 = vmul.f32 %v675, 0.1
      %v796 = vmul.f32 %v676, 0.1
      %v797 = vmul.f32 %v677, 0.1
      %v798 = vmul.f32 %v678, 0.1
      %v799 = vmul.f32 %v679, 0.1
      %v800 = vmul.f32 %v680, 0.1
      %v801 = vmul.f32 %v681, 0.1
      %v802 = vmul.f32 %v682, 0.1
      %v803 = vmul.f32 %v683, 0.1
      %v804 = vmul.f32 %v684, 0.1
      %v805 = vmul.f32 %v685, 0.1
      %v806 = vmul.f32 %v686, 0.1
      %v807 = vmul.f32 %v687, 0.1
      %v808 = vmul.f32 %v688, 0.1
      %v809 = vmul.f32 %v689, 0.1
      %v810 = vmul.f32 %v690, 0.1
      %v811 = vmul.f32 %v691, 0.1
      %v812 = vmul.f32 %v692, 0.1
      %v813 = vmul.f32 %v693, 0.1
      %v814 = vmul.f32 %v694, 0.1
      %v815 = vmul.f32 %v695, 0.1
      %v816 = vmul.f32 %v696, 0.1
      %v817 = vmul.f32 %v697, 0.1
      %v818 = vmul.f32 %v698, 0.1
      %v819 = vmul.f32 %v699, 0.1
      %v820 = vmul.f32 %v700, 0.1
      %v821 = vmul.f32 %v701, 0.1
      %v822 = vmul.f32 %v702, 0.1
      %v823 = vmul.f32 %v703, 0.1
      %v824 = vmul.f32 %v704, 0.1
      %v825 = vmul.f32 %v705, 0.1
      %v826 = vmul.f32 %v706, 0.1
      %v827 = vmul.f32 %v707, 0.1
      %v828 = vmul.f32 %v708, 0.1
      %v829 = vmul.f32 %v709, 0.1
      %v830 = vmul.f32 %v710, 0.1
      %v831 = vmul.f32 %v711, 0.1
      %v832 = vmul.f32 %v712, 0.1
      %v833 = vmul.f32 %v713, 0.1
      %v834 = vmul.f32 %v714, 0.1
      %v835 = vmul.f32 %v715, 0.1
      %v836 = vmul.f32 %v716, 0.1
      %v837 = vmul.f32 %v717, 0.1
      %v838 = vmul.f32 %v718, 0.1
      %v839 = vmul.f32 %v719, 0.1
      %v840 = vmul.f32 %v720, 0.1
      %v841 = vmul.f32 %v721, 0.1
      %v842 = vmul.f32 %v722, 0.1
      %v843 = vmul.f32 %v723, 0.1
      %v844 = vsel %vm724, %v664, %v784
      %v845 = vsel %vm725, %v665, %v785
      %v846 = vsel %vm726, %v666, %v786
      %v847 = vsel %vm727, %v667, %v787
      %v848 = vsel %vm728, %v668, %v788
      %v849 = vsel %vm729, %v669, %v789
      %v850 = vsel %vm730, %v670, %v790
      %v851 = vsel %vm731, %v671, %v791
      %v852 = vsel %vm732, %v672, %v792
      %v853 = vsel %vm733, %v673, %v793
      %v854 = vsel %vm734, %v674, %v794
      %v855 = vsel %vm735, %v675, %v795
      %v856 = vsel %vm736, %v676, %v796
      %v857 = vsel %vm737, %v677, %v797
      %v858 = vsel %vm738, %v678, %v798
      %v859 = vsel %vm739, %v679, %v799
      %v860 = vsel %vm740, %v680, %v800
      %v861 = vsel %vm741, %v681, %v801
      %v862 = vsel %vm742, %v682, %v802
      %v863 = vsel %vm743, %v683, %v803
      %v864 = vsel %vm744, %v684, %v804
      %v865 = vsel %vm745, %v685, %v805
      %v866 = vsel %vm746, %v686, %v806
      %v867 = vsel %vm747, %v687, %v807
      %v868 = vsel %vm748, %v688, %v808
      %v869 = vsel %vm749, %v689, %v809
      %v870 = vsel %vm750, %v690, %v810
      %v871 = vsel %vm751, %v691, %v811
      %v872 = vsel %vm752, %v692, %v812
      %v873 = vsel %vm753, %v693, %v813
      %v874 = vsel %vm754, %v694, %v814
      %v875 = vsel %vm755, %v695, %v815
      %v876 = vsel %vm756, %v696, %v816
      %v877 = vsel %vm757, %v697, %v817
      %v878 = vsel %vm758, %v698, %v818
      %v879 = vsel %vm759, %v699, %v819
      %v880 = vsel %vm760, %v700, %v820
      %v881 = vsel %vm761, %v701, %v821
      %v882 = vsel %vm762, %v702, %v822
      %v883 = vsel %vm763, %v703, %v823
      %v884 = vsel %vm764, %v704, %v824
      %v885 = vsel %vm765, %v705, %v825
      %v886 = vsel %vm766, %v706, %v826
      %v887 = vsel %vm767, %v707, %v827
      %v888 = vsel %vm768, %v708, %v828
      %v889 = vsel %vm769, %v709, %v829
      %v890 = vsel %vm770, %v710, %v830
      %v891 = vsel %vm771, %v711, %v831
      %v892 = vsel %vm772, %v712, %v832
      %v893 = vsel %vm773, %v713, %v833
      %v894 = vsel %vm774, %v714, %v834
      %v895 = vsel %vm775, %v715, %v835
      %v896 = vsel %vm776, %v716, %v836
      %v897 = vsel %vm777, %v717, %v837
      %v898 = vsel %vm778, %v718, %v838
      %v899 = vsel %vm779, %v719, %v839
      %v900 = vsel %vm780, %v720, %v840
      %v901 = vsel %vm781, %v721, %v841
      %v902 = vsel %vm782, %v722, %v842
      %v903 = vsel %vm783, %v723, %v843
      %v904 = vpack.c.bf16 %v845, %v844
      %v905 = vpack.c.bf16 %v848, %v847
      %v906 = vpack.c.bf16 %v851, %v850
      %v907 = vpack.c.bf16 %v854, %v853
      %v908 = vpack.c.bf16 %v857, %v856
      %v909 = vpack.c.bf16 %v860, %v859
      %v910 = vpack.c.bf16 %v863, %v862
      %v911 = vpack.c.bf16 %v866, %v865
      %v912 = vpack.c.bf16 %v869, %v868
      %v913 = vpack.c.bf16 %v872, %v871
      %v914 = vpack.c.bf16 %v875, %v874
      %v915 = vpack.c.bf16 %v878, %v877
      %v916 = vpack.c.bf16 %v881, %v880
      %v917 = vpack.c.bf16 %v884, %v883
      %v918 = vpack.c.bf16 %v887, %v886
      %v919 = vpack.c.bf16 %v890, %v889
      %v920 = vpack.c.bf16 %v893, %v892
      %v921 = vpack.c.bf16 %v896, %v895
      %v922 = vpack.c.bf16 %v899, %v898
      %v923 = vpack.c.bf16 %v902, %v901
      %v924 = vpack.c.bf16 %v846, %v846
      %v925 = vpack.c.bf16 %v849, %v849
      %v926 = vpack.c.bf16 %v852, %v852
      %v927 = vpack.c.bf16 %v855, %v855
      %v928 = vpack.c.bf16 %v858, %v858
      %v929 = vpack.c.bf16 %v861, %v861
      %v930 = vpack.c.bf16 %v864, %v864
      %v931 = vpack.c.bf16 %v867, %v867
      %v932 = vpack.c.bf16 %v870, %v870
      %v933 = vpack.c.bf16 %v873, %v873
      %v934 = vpack.c.bf16 %v876, %v876
      %v935 = vpack.c.bf16 %v879, %v879
      %v936 = vpack.c.bf16 %v882, %v882
      %v937 = vpack.c.bf16 %v885, %v885
      %v938 = vpack.c.bf16 %v888, %v888
      %v939 = vpack.c.bf16 %v891, %v891
      %v940 = vpack.c.bf16 %v894, %v894
      %v941 = vpack.c.bf16 %v897, %v897
      %v942 = vpack.c.bf16 %v900, %v900
      %v943 = vpack.c.bf16 %v903, %v903
      %vm944 = vsmask.f32 7424
      %v946 = vshrl.u32 %v904, 16
      %v948 = vshll.u32 %v904, 16
      %v950 = vrot.slane %v948, 1
      %v951 = vor.u32 %v946, %v950
      %v953 = vshll.u32 %v924, 16
      %v955 = vrot.slane %v953, 1
      %v956 = vsel %vm944, %v951, %v955
      %v958 = vshrl.u32 %v905, 16
      %v960 = vshll.u32 %v905, 16
      %v962 = vrot.slane %v960, 1
      %v963 = vor.u32 %v958, %v962
      %v965 = vshll.u32 %v925, 16
      %v967 = vrot.slane %v965, 1
      %v968 = vsel %vm944, %v963, %v967
      %v970 = vshrl.u32 %v906, 16
      %v972 = vshll.u32 %v906, 16
      %v974 = vrot.slane %v972, 1
      %v975 = vor.u32 %v970, %v974
      %v977 = vshll.u32 %v926, 16
      %v979 = vrot.slane %v977, 1
      %v980 = vsel %vm944, %v975, %v979
      %v982 = vshrl.u32 %v907, 16
      %v984 = vshll.u32 %v907, 16
      %v986 = vrot.slane %v984, 1
      %v987 = vor.u32 %v982, %v986
      %v989 = vshll.u32 %v927, 16
      %v991 = vrot.slane %v989, 1
      %v992 = vsel %vm944, %v987, %v991
      %v994 = vshrl.u32 %v908, 16
      %v996 = vshll.u32 %v908, 16
      %v998 = vrot.slane %v996, 1
      %v999 = vor.u32 %v994, %v998
      %v1001 = vshll.u32 %v928, 16
      %v1003 = vrot.slane %v1001, 1
      %v1004 = vsel %vm944, %v999, %v1003
      %v1006 = vshrl.u32 %v909, 16
      %v1008 = vshll.u32 %v909, 16
      %v1010 = vrot.slane %v1008, 1
      %v1011 = vor.u32 %v1006, %v1010
      %v1013 = vshll.u32 %v929, 16
      %v1015 = vrot.slane %v1013, 1
      %v1016 = vsel %vm944, %v1011, %v1015
      %v1018 = vshrl.u32 %v910, 16
      %v1020 = vshll.u32 %v910, 16
      %v1022 = vrot.slane %v1020, 1
      %v1023 = vor.u32 %v1018, %v1022
      %v1025 = vshll.u32 %v930, 16
      %v1027 = vrot.slane %v1025, 1
      %v1028 = vsel %vm944, %v1023, %v1027
      %v1030 = vshrl.u32 %v911, 16
      %v1032 = vshll.u32 %v911, 16
      %v1034 = vrot.slane %v1032, 1
      %v1035 = vor.u32 %v1030, %v1034
      %v1037 = vshll.u32 %v931, 16
      %v1039 = vrot.slane %v1037, 1
      %v1040 = vsel %vm944, %v1035, %v1039
      %v1042 = vshrl.u32 %v912, 16
      %v1044 = vshll.u32 %v912, 16
      %v1046 = vrot.slane %v1044, 1
      %v1047 = vor.u32 %v1042, %v1046
      %v1049 = vshll.u32 %v932, 16
      %v1051 = vrot.slane %v1049, 1
      %v1052 = vsel %vm944, %v1047, %v1051
      %v1054 = vshrl.u32 %v913, 16
      %v1056 = vshll.u32 %v913, 16
      %v1058 = vrot.slane %v1056, 1
      %v1059 = vor.u32 %v1054, %v1058
      %v1061 = vshll.u32 %v933, 16
      %v1063 = vrot.slane %v1061, 1
      %v1064 = vsel %vm944, %v1059, %v1063
      %v1066 = vshrl.u32 %v914, 16
      %v1068 = vshll.u32 %v914, 16
      %v1070 = vrot.slane %v1068, 1
      %v1071 = vor.u32 %v1066, %v1070
      %v1073 = vshll.u32 %v934, 16
      %v1075 = vrot.slane %v1073, 1
      %v1076 = vsel %vm944, %v1071, %v1075
      %v1078 = vshrl.u32 %v915, 16
      %v1080 = vshll.u32 %v915, 16
      %v1082 = vrot.slane %v1080, 1
      %v1083 = vor.u32 %v1078, %v1082
      %v1085 = vshll.u32 %v935, 16
      %v1087 = vrot.slane %v1085, 1
      %v1088 = vsel %vm944, %v1083, %v1087
      %v1090 = vshrl.u32 %v916, 16
      %v1092 = vshll.u32 %v916, 16
      %v1094 = vrot.slane %v1092, 1
      %v1095 = vor.u32 %v1090, %v1094
      %v1097 = vshll.u32 %v936, 16
      %v1099 = vrot.slane %v1097, 1
      %v1100 = vsel %vm944, %v1095, %v1099
      %v1102 = vshrl.u32 %v917, 16
      %v1104 = vshll.u32 %v917, 16
      %v1106 = vrot.slane %v1104, 1
      %v1107 = vor.u32 %v1102, %v1106
      %v1109 = vshll.u32 %v937, 16
      %v1111 = vrot.slane %v1109, 1
      %v1112 = vsel %vm944, %v1107, %v1111
      %v1114 = vshrl.u32 %v918, 16
      %v1116 = vshll.u32 %v918, 16
      %v1118 = vrot.slane %v1116, 1
      %v1119 = vor.u32 %v1114, %v1118
      %v1121 = vshll.u32 %v938, 16
      %v1123 = vrot.slane %v1121, 1
      %v1124 = vsel %vm944, %v1119, %v1123
      %v1126 = vshrl.u32 %v919, 16
      %v1128 = vshll.u32 %v919, 16
      %v1130 = vrot.slane %v1128, 1
      %v1131 = vor.u32 %v1126, %v1130
      %v1133 = vshll.u32 %v939, 16
      %v1135 = vrot.slane %v1133, 1
      %v1136 = vsel %vm944, %v1131, %v1135
      %v1138 = vshrl.u32 %v920, 16
      %v1140 = vshll.u32 %v920, 16
      %v1142 = vrot.slane %v1140, 1
      %v1143 = vor.u32 %v1138, %v1142
      %v1145 = vshll.u32 %v940, 16
      %v1147 = vrot.slane %v1145, 1
      %v1148 = vsel %vm944, %v1143, %v1147
      %v1150 = vshrl.u32 %v921, 16
      %v1152 = vshll.u32 %v921, 16
      %v1154 = vrot.slane %v1152, 1
      %v1155 = vor.u32 %v1150, %v1154
      %v1157 = vshll.u32 %v941, 16
      %v1159 = vrot.slane %v1157, 1
      %v1160 = vsel %vm944, %v1155, %v1159
      %v1162 = vshrl.u32 %v922, 16
      %v1164 = vshll.u32 %v922, 16
      %v1166 = vrot.slane %v1164, 1
      %v1167 = vor.u32 %v1162, %v1166
      %v1169 = vshll.u32 %v942, 16
      %v1171 = vrot.slane %v1169, 1
      %v1172 = vsel %vm944, %v1167, %v1171
      %v1174 = vshrl.u32 %v923, 16
      %v1176 = vshll.u32 %v923, 16
      %v1178 = vrot.slane %v1176, 1
      %v1179 = vor.u32 %v1174, %v1178
      %v1181 = vshll.u32 %v943, 16
      %v1183 = vrot.slane %v1181, 1
      %v1184 = vsel %vm944, %v1179, %v1183
      %vm1245 = vcmask 1046528
      %v1246 = vrot.slane %v904, 1
      %v1247 = vrot.slane %v924, 1
      %v1248 = vsel %vm1245, %v1246, %v1247
      %v1249 = vrot.slane %v905, 1
      %v1250 = vrot.slane %v925, 1
      %v1251 = vsel %vm1245, %v1249, %v1250
      %v1252 = vrot.slane %v906, 1
      %v1253 = vrot.slane %v926, 1
      %v1254 = vsel %vm1245, %v1252, %v1253
      %v1255 = vrot.slane %v907, 1
      %v1256 = vrot.slane %v927, 1
      %v1257 = vsel %vm1245, %v1255, %v1256
      %v1258 = vrot.slane %v908, 1
      %v1259 = vrot.slane %v928, 1
      %v1260 = vsel %vm1245, %v1258, %v1259
      %v1261 = vrot.slane %v909, 1
      %v1262 = vrot.slane %v929, 1
      %v1263 = vsel %vm1245, %v1261, %v1262
      %v1264 = vrot.slane %v910, 1
      %v1265 = vrot.slane %v930, 1
      %v1266 = vsel %vm1245, %v1264, %v1265
      %v1267 = vrot.slane %v911, 1
      %v1268 = vrot.slane %v931, 1
      %v1269 = vsel %vm1245, %v1267, %v1268
      %v1270 = vrot.slane %v912, 1
      %v1271 = vrot.slane %v932, 1
      %v1272 = vsel %vm1245, %v1270, %v1271
      %v1273 = vrot.slane %v913, 1
      %v1274 = vrot.slane %v933, 1
      %v1275 = vsel %vm1245, %v1273, %v1274
      %v1276 = vrot.slane %v914, 1
      %v1277 = vrot.slane %v934, 1
      %v1278 = vsel %vm1245, %v1276, %v1277
      %v1279 = vrot.slane %v915, 1
      %v1280 = vrot.slane %v935, 1
      %v1281 = vsel %vm1245, %v1279, %v1280
      %v1282 = vrot.slane %v916, 1
      %v1283 = vrot.slane %v936, 1
      %v1284 = vsel %vm1245, %v1282, %v1283
      %v1285 = vrot.slane %v917, 1
      %v1286 = vrot.slane %v937, 1
      %v1287 = vsel %vm1245, %v1285, %v1286
      %v1288 = vrot.slane %v918, 1
      %v1289 = vrot.slane %v938, 1
      %v1290 = vsel %vm1245, %v1288, %v1289
      %v1291 = vrot.slane %v919, 1
      %v1292 = vrot.slane %v939, 1
      %v1293 = vsel %vm1245, %v1291, %v1292
      %v1294 = vrot.slane %v920, 1
      %v1295 = vrot.slane %v940, 1
      %v1296 = vsel %vm1245, %v1294, %v1295
      %v1297 = vrot.slane %v921, 1
      %v1298 = vrot.slane %v941, 1
      %v1299 = vsel %vm1245, %v1297, %v1298
      %v1300 = vrot.slane %v922, 1
      %v1301 = vrot.slane %v942, 1
      %v1302 = vsel %vm1245, %v1300, %v1301
      %v1303 = vrot.slane %v923, 1
      %v1304 = vrot.slane %v943, 1
      %v1305 = vsel %vm1245, %v1303, %v1304
      %v1326 = vld [vmem:[%s1] sm:$0xf]
      %v1327 = vld [vmem:[%s1 + $0x4] sm:$0xf]
      %v1328 = vld [vmem:[%s1 + $0x8] sm:$0xf]
      %v1329 = vld [vmem:[%s1 + $0xc] sm:$0xf]
      %v1330 = vld [vmem:[%s1 + $0x10] sm:$0xf]
      %v1331 = vld [vmem:[%s1 + $0x14] sm:$0xf]
      %v1332 = vld [vmem:[%s1 + $0x18] sm:$0xf]
      %v1333 = vld [vmem:[%s1 + $0x1c] sm:$0xf]
      %v1334 = vld [vmem:[%s1 + $0x20] sm:$0xf]
      %v1335 = vld [vmem:[%s1 + $0x24] sm:$0xf]
      %v1336 = vld [vmem:[%s1 + $0x28] sm:$0xf]
      %v1337 = vld [vmem:[%s1 + $0x2c] sm:$0xf]
      %v1338 = vld [vmem:[%s1 + $0x30] sm:$0xf]
      %v1339 = vld [vmem:[%s1 + $0x34] sm:$0xf]
      %v1340 = vld [vmem:[%s1 + $0x38] sm:$0xf]
      %v1341 = vld [vmem:[%s1 + $0x3c] sm:$0xf]
      %v1342 = vld [vmem:[%s1 + $0x40] sm:$0xf]
      %v1343 = vld [vmem:[%s1 + $0x44] sm:$0xf]
      %v1344 = vld [vmem:[%s1 + $0x48] sm:$0xf]
      %v1345 = vld [vmem:[%s1 + $0x4c] sm:$0xf]
      %v1346 = vld [vmem:[%s1 + $0x50] sm:$0xf]
      %v1347 = vld [vmem:[%s1 + $0x54] sm:$0xf]
      %v1348 = vld [vmem:[%s1 + $0x58] sm:$0xf]
      %v1349 = vld [vmem:[%s1 + $0x5c] sm:$0xf]
      %v1350 = vld [vmem:[%s1 + $0x60] sm:$0xf]
      %v1351 = vld [vmem:[%s1 + $0x64] sm:$0xf]
      %v1352 = vld [vmem:[%s1 + $0x68] sm:$0xf]
      %v1353 = vld [vmem:[%s1 + $0x6c] sm:$0xf]
      %v1354 = vld [vmem:[%s1 + $0x70] sm:$0xf]
      %v1355 = vld [vmem:[%s1 + $0x74] sm:$0xf]
      %v1356 = vld [vmem:[%s1 + $0x78] sm:$0xf]
      %v1357 = vld [vmem:[%s1 + $0x7c] sm:$0xf]
      %v1358 = vld [vmem:[%s1 + $0x80] sm:$0xf]
      %v1359 = vld [vmem:[%s1 + $0x84] sm:$0xf]
      %v1360 = vld [vmem:[%s1 + $0x88] sm:$0xf]
      %v1361 = vld [vmem:[%s1 + $0x8c] sm:$0xf]
      %v1362 = vld [vmem:[%s1 + $0x90] sm:$0xf]
      %v1363 = vld [vmem:[%s1 + $0x94] sm:$0xf]
      %v1364 = vld [vmem:[%s1 + $0x98] sm:$0xf]
      %v1365 = vld [vmem:[%s1 + $0x9c] sm:$0xf]
      %v1366 = vld [vmem:[%s1 + $0xa0] sm:$0xf]
      %v1367 = vld [vmem:[%s1 + $0xa4] sm:$0xf]
      %v1368 = vld [vmem:[%s1 + $0xa8] sm:$0xf]
      %v1369 = vld [vmem:[%s1 + $0xac] sm:$0xf]
      %v1370 = vld [vmem:[%s1 + $0xb0] sm:$0xf]
      %v1371 = vld [vmem:[%s1 + $0xb4] sm:$0xf]
      %v1372 = vld [vmem:[%s1 + $0xb8] sm:$0xf]
      %v1373 = vld [vmem:[%s1 + $0xbc] sm:$0xf]
      %v1374 = vld [vmem:[%s1 + $0xc0] sm:$0xf]
      %v1375 = vld [vmem:[%s1 + $0xc4] sm:$0xf]
      %v1376 = vld [vmem:[%s1 + $0xc8] sm:$0xf]
      %v1377 = vld [vmem:[%s1 + $0xcc] sm:$0xf]
      %v1378 = vld [vmem:[%s1 + $0xd0] sm:$0xf]
      %v1379 = vld [vmem:[%s1 + $0xd4] sm:$0xf]
      %v1380 = vld [vmem:[%s1 + $0xd8] sm:$0xf]
      %v1381 = vld [vmem:[%s1 + $0xdc] sm:$0xf]
      %v1382 = vld [vmem:[%s1 + $0xe0] sm:$0xf]
      %v1383 = vld [vmem:[%s1 + $0xe4] sm:$0xf]
      %v1384 = vld [vmem:[%s1 + $0xe8] sm:$0xf]
      %v1385 = vld [vmem:[%s1 + $0xec] sm:$0xf]
      %v1386 = vld [vmem:[%s1 + $0xf0] sm:$0xf]
      %v1387 = vld [vmem:[%s1 + $0xf4] sm:$0xf]
      %v1388 = vld [vmem:[%s1 + $0xf8] sm:$0xf]
      %v1389 = vld [vmem:[%s1 + $0xfc] sm:$0xf]
      %v1390 = vld [vmem:[%s1 + $0x100] sm:$0xf]
      %v1391 = vld [vmem:[%s1 + $0x104] sm:$0xf]
      %v1392 = vld [vmem:[%s1 + $0x108] sm:$0xf]
      %v1393 = vld [vmem:[%s1 + $0x10c] sm:$0xf]
      %v1394 = vld [vmem:[%s1 + $0x110] sm:$0xf]
      %v1395 = vld [vmem:[%s1 + $0x114] sm:$0xf]
      %v1396 = vld [vmem:[%s1 + $0x118] sm:$0xf]
      %v1397 = vld [vmem:[%s1 + $0x11c] sm:$0xf]
      %v1398 = vld [vmem:[%s1 + $0x120] sm:$0xf]
      %v1399 = vld [vmem:[%s1 + $0x124] sm:$0xf]
      %v1400 = vld [vmem:[%s1 + $0x128] sm:$0xf]
      %v1401 = vld [vmem:[%s1 + $0x12c] sm:$0xf]
      %v1402 = vld [vmem:[%s1 + $0x130] sm:$0xf]
      %v1403 = vld [vmem:[%s1 + $0x134] sm:$0xf]
      %v1404 = vld [vmem:[%s1 + $0x138] sm:$0xf]
      %v1405 = vld [vmem:[%s1 + $0x13c] sm:$0xf]
      %v1406 = vld [vmem:[%s1 + $0x140] sm:$0xf]
      %v1407 = vld [vmem:[%s1 + $0x144] sm:$0xf]
      %v1408 = vld [vmem:[%s1 + $0x148] sm:$0xf]
      %v1409 = vld [vmem:[%s1 + $0x14c] sm:$0xf]
      %v1410 = vld [vmem:[%s1 + $0x150] sm:$0xf]
      %v1411 = vld [vmem:[%s1 + $0x154] sm:$0xf]
      %v1412 = vld [vmem:[%s1 + $0x158] sm:$0xf]
      %v1413 = vld [vmem:[%s1 + $0x15c] sm:$0xf]
      %v1414 = vld [vmem:[%s1 + $0x160] sm:$0xf]
      %v1415 = vld [vmem:[%s1 + $0x164] sm:$0xf]
      %v1416 = vld [vmem:[%s1 + $0x168] sm:$0xf]
      %v1417 = vld [vmem:[%s1 + $0x16c] sm:$0xf]
      %v1418 = vld [vmem:[%s1 + $0x170] sm:$0xf]
      %v1419 = vld [vmem:[%s1 + $0x174] sm:$0xf]
      %v1420 = vld [vmem:[%s1 + $0x178] sm:$0xf]
      %v1421 = vld [vmem:[%s1 + $0x17c] sm:$0xf]
      %v1470 = vunpack.c.l.b16 %v1374
      %v1471 = vunpack.c.l.b16 %v1375
      %v1472 = vunpack.c.l.b16 %v1376
      %v1473 = vunpack.c.l.b16 %v1377
      %v1474 = vunpack.c.l.b16 %v1378
      %v1475 = vunpack.c.l.b16 %v1379
      %v1476 = vunpack.c.l.b16 %v1380
      %v1477 = vunpack.c.l.b16 %v1381
      %v1478 = vunpack.c.l.b16 %v1382
      %v1479 = vunpack.c.l.b16 %v1383
      %v1480 = vunpack.c.l.b16 %v1384
      %v1481 = vunpack.c.l.b16 %v1385
      %v1482 = vunpack.c.l.b16 %v1386
      %v1483 = vunpack.c.l.b16 %v1387
      %v1484 = vunpack.c.l.b16 %v1388
      %v1485 = vunpack.c.l.b16 %v1389
      %v1486 = vunpack.c.l.b16 %v1390
      %v1487 = vunpack.c.l.b16 %v1391
      %v1488 = vunpack.c.l.b16 %v1392
      %v1489 = vunpack.c.l.b16 %v1393
      %v1490 = vunpack.c.l.b16 %v1394
      %v1491 = vunpack.c.l.b16 %v1395
      %v1492 = vunpack.c.l.b16 %v1396
      %v1493 = vunpack.c.l.b16 %v1397
      %v1494 = vunpack.c.l.b16 %v1398
      %v1495 = vunpack.c.l.b16 %v1399
      %v1496 = vunpack.c.l.b16 %v1400
      %v1497 = vunpack.c.l.b16 %v1401
      %v1498 = vunpack.c.l.b16 %v1402
      %v1499 = vunpack.c.l.b16 %v1403
      %v1500 = vunpack.c.l.b16 %v1404
      %v1501 = vunpack.c.l.b16 %v1405
      %v1502 = vunpack.c.l.b16 %v1406
      %v1503 = vunpack.c.l.b16 %v1407
      %v1504 = vunpack.c.l.b16 %v1408
      %v1505 = vunpack.c.l.b16 %v1409
      %v1506 = vunpack.c.l.b16 %v1410
      %v1507 = vunpack.c.l.b16 %v1411
      %v1508 = vunpack.c.l.b16 %v1412
      %v1509 = vunpack.c.l.b16 %v1413
      %v1510 = vunpack.c.l.b16 %v1414
      %v1511 = vunpack.c.l.b16 %v1415
      %v1512 = vunpack.c.l.b16 %v1416
      %v1513 = vunpack.c.l.b16 %v1417
      %v1514 = vunpack.c.l.b16 %v1418
      %v1515 = vunpack.c.l.b16 %v1419
      %v1516 = vunpack.c.l.b16 %v1420
      %v1517 = vunpack.c.l.b16 %v1421
      %v1518 = vpack.c.b16 %v1471, %v1470
      %v1519 = vpack.c.b16 %v1473, %v1472
      %v1520 = vpack.c.b16 %v1475, %v1474
      %v1521 = vpack.c.b16 %v1477, %v1476
      %v1522 = vpack.c.b16 %v1479, %v1478
      %v1523 = vpack.c.b16 %v1481, %v1480
      %v1524 = vpack.c.b16 %v1483, %v1482
      %v1525 = vpack.c.b16 %v1485, %v1484
      %v1526 = vpack.c.b16 %v1487, %v1486
      %v1527 = vpack.c.b16 %v1489, %v1488
      %v1528 = vpack.c.b16 %v1491, %v1490
      %v1529 = vpack.c.b16 %v1493, %v1492
      %v1530 = vpack.c.b16 %v1495, %v1494
      %v1531 = vpack.c.b16 %v1497, %v1496
      %v1532 = vpack.c.b16 %v1499, %v1498
      %v1533 = vpack.c.b16 %v1501, %v1500
      %v1534 = vpack.c.b16 %v1503, %v1502
      %v1535 = vpack.c.b16 %v1505, %v1504
      %v1536 = vpack.c.b16 %v1507, %v1506
      %v1537 = vpack.c.b16 %v1509, %v1508
      %v1538 = vpack.c.b16 %v1511, %v1510
      %v1539 = vpack.c.b16 %v1513, %v1512
      %v1540 = vpack.c.b16 %v1515, %v1514
      %v1541 = vpack.c.b16 %v1517, %v1516
      %1566 = vmatprep.subr.bf16.mxu0 0
      %1567 = vmatpush1.bf16.msra.mxu0 %v1525
      %1568 = vmatprep.subr.bf16.mxu0 0
      %1569 = vmatpush1.bf16.msra.mxu0 %v1524
      %1570 = vmatprep.subr.bf16.mxu0 0
      %1571 = vmatpush1.bf16.msra.mxu0 %v1523
      %1572 = vmatprep.subr.bf16.mxu0 0
      %1573 = vmatpush1.bf16.msra.mxu0 %v1522
      %1574 = vmatprep.subr.bf16.mxu0 0
      %1575 = vmatpush1.bf16.msra.mxu0 %v1521
      %1576 = vmatprep.subr.bf16.mxu0 0
      %1577 = vmatpush1.bf16.msra.mxu0 %v1520
      %1578 = vmatprep.subr.bf16.mxu0 0
      %1579 = vmatpush1.bf16.msra.mxu0 %v1519
      %1580 = vmatprep.subr.bf16.mxu0 0
      %1581 = vmatpush1.bf16.msra.mxu0 %v1518
      %1582 = vmatprep.subr.bf16.mxu0 0
      %1583 = vmatpush2.bf16.msra.mxu0 %v1533
      %1584 = vmatprep.subr.bf16.mxu0 0
      %1585 = vmatpush2.bf16.msra.mxu0 %v1532
      %1586 = vmatprep.subr.bf16.mxu0 0
      %1587 = vmatpush2.bf16.msra.mxu0 %v1531
      %1588 = vmatprep.subr.bf16.mxu0 0
      %1589 = vmatpush2.bf16.msra.mxu0 %v1530
      %1590 = vmatprep.subr.bf16.mxu0 0
      %1591 = vmatpush2.bf16.msra.mxu0 %v1529
      %1592 = vmatprep.subr.bf16.mxu0 0
      %1593 = vmatpush2.bf16.msra.mxu0 %v1528
      %1594 = vmatprep.subr.bf16.mxu0 0
      %1595 = vmatpush2.bf16.msra.mxu0 %v1527
      %1596 = vmatprep.subr.bf16.mxu0 0
      %1597 = vmatpush2.bf16.msra.mxu0 %v1526
      %1598 = vmatprep.mubr.bf16.mxu0 %v968
      %1599 = vmatmul.mubr.bf16.gmra.mxu0 %v905
      %v1600 = vpop.f32.mrf.mxu0
      %v1601 = vadd.f32 0.0, %v1600
      %v1602 = vpop.f32.mrf.mxu0
      %v1603 = vpop.f32.mrf.mxu0
      %v1604 = vadd.f32 0.0, %v1603
      %v1605 = vpop.f32.mrf.mxu0
      %1606 = vmatprep.mubr.bf16.mxu0 %v980
      %1607 = vmatmul.mubr.bf16.gmra.mxu0 %v906
      %v1608 = vpop.f32.mrf.mxu0
      %v1609 = vadd.f32 0.0, %v1608
      %v1610 = vpop.f32.mrf.mxu0
      %v1611 = vpop.f32.mrf.mxu0
      %v1612 = vadd.f32 0.0, %v1611
      %v1613 = vpop.f32.mrf.mxu0
      %1614 = vmatprep.mubr.bf16.mxu0 %v992
      %1615 = vmatmul.mubr.bf16.gmra.mxu0 %v907
      %v1616 = vpop.f32.mrf.mxu0
      %v1617 = vadd.f32 0.0, %v1616
      %v1618 = vpop.f32.mrf.mxu0
      %v1619 = vpop.f32.mrf.mxu0
      %v1620 = vadd.f32 0.0, %v1619
      %v1621 = vpop.f32.mrf.mxu0
      %1622 = vmatprep.mubr.bf16.mxu0 %v1004
      %1623 = vmatmul.mubr.bf16.gmra.mxu0 %v908
      %v1624 = vpop.f32.mrf.mxu0
      %v1625 = vadd.f32 0.0, %v1624
      %v1626 = vpop.f32.mrf.mxu0
      %v1627 = vpop.f32.mrf.mxu0
      %v1628 = vadd.f32 0.0, %v1627
      %v1629 = vpop.f32.mrf.mxu0
      %1630 = vmatprep.mubr.bf16.mxu0 %v1016
      %1631 = vmatmul.mubr.bf16.gmra.mxu0 %v909
      %v1632 = vpop.f32.mrf.mxu0
      %v1633 = vadd.f32 0.0, %v1632
      %v1634 = vpop.f32.mrf.mxu0
      %v1635 = vpop.f32.mrf.mxu0
      %v1636 = vadd.f32 0.0, %v1635
      %v1637 = vpop.f32.mrf.mxu0
      %1638 = vmatprep.mubr.bf16.mxu0 %v1028
      %1639 = vmatmul.mubr.bf16.gmra.mxu0 %v910
      %v1640 = vpop.f32.mrf.mxu0
      %v1641 = vadd.f32 0.0, %v1640
      %v1642 = vpop.f32.mrf.mxu0
      %v1643 = vpop.f32.mrf.mxu0
      %v1644 = vadd.f32 0.0, %v1643
      %v1645 = vpop.f32.mrf.mxu0
      %1646 = vmatprep.mubr.bf16.mxu0 %v1040
      %1647 = vmatmul.mubr.bf16.gmra.mxu0 %v911
      %v1648 = vpop.f32.mrf.mxu0
      %v1649 = vadd.f32 0.0, %v1648
      %v1650 = vpop.f32.mrf.mxu0
      %v1651 = vpop.f32.mrf.mxu0
      %v1652 = vadd.f32 0.0, %v1651
      %v1653 = vpop.f32.mrf.mxu0
      %1654 = vmatprep.mubr.bf16.mxu0 %v1052
      %1655 = vmatmul.mubr.bf16.gmra.mxu0 %v912
      %v1656 = vpop.f32.mrf.mxu0
      %v1657 = vadd.f32 0.0, %v1656
      %v1658 = vpop.f32.mrf.mxu0
      %v1659 = vpop.f32.mrf.mxu0
      %v1660 = vadd.f32 0.0, %v1659
      %v1661 = vpop.f32.mrf.mxu0
      %1662 = vmatprep.mubr.bf16.mxu0 %v1064
      %1663 = vmatmul.mubr.bf16.gmra.mxu0 %v913
      %v1664 = vpop.f32.mrf.mxu0
      %v1665 = vadd.f32 0.0, %v1664
      %v1666 = vpop.f32.mrf.mxu0
      %v1667 = vpop.f32.mrf.mxu0
      %v1668 = vadd.f32 0.0, %v1667
      %v1669 = vpop.f32.mrf.mxu0
      %1670 = vmatprep.mubr.bf16.mxu0 %v1076
      %1671 = vmatmul.mubr.bf16.gmra.mxu0 %v914
      %v1672 = vpop.f32.mrf.mxu0
      %v1673 = vadd.f32 0.0, %v1672
      %v1674 = vpop.f32.mrf.mxu0
      %v1675 = vpop.f32.mrf.mxu0
      %v1676 = vadd.f32 0.0, %v1675
      %v1677 = vpop.f32.mrf.mxu0
      %1678 = vmatprep.mubr.bf16.mxu0 %v1088
      %1679 = vmatmul.mubr.bf16.gmra.mxu0 %v915
      %v1680 = vpop.f32.mrf.mxu0
      %v1681 = vadd.f32 0.0, %v1680
      %v1682 = vpop.f32.mrf.mxu0
      %v1683 = vpop.f32.mrf.mxu0
      %v1684 = vadd.f32 0.0, %v1683
      %v1685 = vpop.f32.mrf.mxu0
      %1686 = vmatprep.mubr.bf16.mxu0 %v1100
      %1687 = vmatmul.mubr.bf16.gmra.mxu0 %v916
      %v1688 = vpop.f32.mrf.mxu0
      %v1689 = vadd.f32 0.0, %v1688
      %v1690 = vpop.f32.mrf.mxu0
      %v1691 = vpop.f32.mrf.mxu0
      %v1692 = vadd.f32 0.0, %v1691
      %v1693 = vpop.f32.mrf.mxu0
      %1694 = vmatprep.mubr.bf16.mxu0 %v1112
      %1695 = vmatmul.mubr.bf16.gmra.mxu0 %v917
      %v1696 = vpop.f32.mrf.mxu0
      %v1697 = vadd.f32 0.0, %v1696
      %v1698 = vpop.f32.mrf.mxu0
      %v1699 = vpop.f32.mrf.mxu0
      %v1700 = vadd.f32 0.0, %v1699
      %v1701 = vpop.f32.mrf.mxu0
      %1702 = vmatprep.mubr.bf16.mxu0 %v1124
      %1703 = vmatmul.mubr.bf16.gmra.mxu0 %v918
      %v1704 = vpop.f32.mrf.mxu0
      %v1705 = vadd.f32 0.0, %v1704
      %v1706 = vpop.f32.mrf.mxu0
      %v1707 = vpop.f32.mrf.mxu0
      %v1708 = vadd.f32 0.0, %v1707
      %v1709 = vpop.f32.mrf.mxu0
      %1710 = vmatprep.mubr.bf16.mxu0 %v1136
      %1711 = vmatmul.mubr.bf16.gmra.mxu0 %v919
      %v1712 = vpop.f32.mrf.mxu0
      %v1713 = vadd.f32 0.0, %v1712
      %v1714 = vpop.f32.mrf.mxu0
      %v1715 = vpop.f32.mrf.mxu0
      %v1716 = vadd.f32 0.0, %v1715
      %v1717 = vpop.f32.mrf.mxu0
      %1718 = vmatprep.mubr.bf16.mxu0 %v1148
      %1719 = vmatmul.mubr.bf16.gmra.mxu0 %v920
      %v1720 = vpop.f32.mrf.mxu0
      %v1721 = vadd.f32 0.0, %v1720
      %v1722 = vpop.f32.mrf.mxu0
      %v1723 = vpop.f32.mrf.mxu0
      %v1724 = vadd.f32 0.0, %v1723
      %v1725 = vpop.f32.mrf.mxu0
      %1726 = vmatprep.mubr.bf16.mxu0 %v1160
      %1727 = vmatmul.mubr.bf16.gmra.mxu0 %v921
      %v1728 = vpop.f32.mrf.mxu0
      %v1729 = vadd.f32 0.0, %v1728
      %v1730 = vpop.f32.mrf.mxu0
      %v1731 = vpop.f32.mrf.mxu0
      %v1732 = vadd.f32 0.0, %v1731
      %v1733 = vpop.f32.mrf.mxu0
      %1734 = vmatprep.mubr.bf16.mxu0 %v1172
      %1735 = vmatmul.mubr.bf16.gmra.mxu0 %v922
      %v1736 = vpop.f32.mrf.mxu0
      %v1737 = vadd.f32 0.0, %v1736
      %v1738 = vpop.f32.mrf.mxu0
      %v1739 = vpop.f32.mrf.mxu0
      %v1740 = vadd.f32 0.0, %v1739
      %v1741 = vpop.f32.mrf.mxu0
      %1742 = vdwg.mxu0
      %1743 = vmatprep.subr.bf16.mxu0 0
      %1744 = vmatpush1.bf16.msra.mxu0 %v1541
      %1745 = vmatprep.subr.bf16.mxu0 0
      %1746 = vmatpush1.bf16.msra.mxu0 %v1540
      %1747 = vmatprep.subr.bf16.mxu0 0
      %1748 = vmatpush1.bf16.msra.mxu0 %v1539
      %1749 = vmatprep.subr.bf16.mxu0 0
      %1750 = vmatpush1.bf16.msra.mxu0 %v1538
      %1751 = vmatprep.subr.bf16.mxu0 0
      %1752 = vmatpush1.bf16.msra.mxu0 %v1537
      %1753 = vmatprep.subr.bf16.mxu0 0
      %1754 = vmatpush1.bf16.msra.mxu0 %v1536
      %1755 = vmatprep.subr.bf16.mxu0 0
      %1756 = vmatpush1.bf16.msra.mxu0 %v1535
      %1757 = vmatprep.subr.bf16.mxu0 0
      %1758 = vmatpush1.bf16.msra.mxu0 %v1534
      %1759 = vmatprep.subr.bf16.mxu0 0
      %1760 = vmatpush2.bf16.msra.mxu0 0
      %1761 = vmatprep.subr.bf16.mxu0 0
      %1762 = vmatpush2.bf16.msra.mxu0 0
      %1763 = vmatprep.subr.bf16.mxu0 0
      %1764 = vmatpush2.bf16.msra.mxu0 0
      %1765 = vmatprep.subr.bf16.mxu0 0
      %1766 = vmatpush2.bf16.msra.mxu0 0
      %1767 = vmatprep.subr.bf16.mxu0 0
      %1768 = vmatpush2.bf16.msra.mxu0 0
      %1769 = vmatprep.subr.bf16.mxu0 0
      %1770 = vmatpush2.bf16.msra.mxu0 0
      %1771 = vmatprep.subr.bf16.mxu0 0
      %1772 = vmatpush2.bf16.msra.mxu0 0
      %1773 = vmatprep.subr.bf16.mxu0 0
      %1774 = vmatpush2.bf16.msra.mxu0 0
      %1775 = vmatprep.mubr.bf16.mxu0 0
      %1776 = vmatmul.mubr.bf16.gmra.mxu0 %v1251
      %v1777 = vpop.f32.mrf.mxu0
      %v1778 = vadd.f32 %v1601, %v1777
      %v1779 = vpop.f32.mrf.mxu0
      %v1780 = vpop.f32.mrf.mxu0
      %v1781 = vadd.f32 %v1604, %v1780
      %v1782 = vpop.f32.mrf.mxu0
      %1783 = vmatprep.mubr.bf16.mxu0 0
      %1784 = vmatmul.mubr.bf16.gmra.mxu0 %v1254
      %v1785 = vpop.f32.mrf.mxu0
      %v1786 = vadd.f32 %v1609, %v1785
      %v1787 = vpop.f32.mrf.mxu0
      %v1788 = vpop.f32.mrf.mxu0
      %v1789 = vadd.f32 %v1612, %v1788
      %v1790 = vpop.f32.mrf.mxu0
      %1791 = vmatprep.mubr.bf16.mxu0 0
      %1792 = vmatmul.mubr.bf16.gmra.mxu0 %v1257
      %v1793 = vpop.f32.mrf.mxu0
      %v1794 = vadd.f32 %v1617, %v1793
      %v1795 = vpop.f32.mrf.mxu0
      %v1796 = vpop.f32.mrf.mxu0
      %v1797 = vadd.f32 %v1620, %v1796
      %v1798 = vpop.f32.mrf.mxu0
      %1799 = vmatprep.mubr.bf16.mxu0 0
      %1800 = vmatmul.mubr.bf16.gmra.mxu0 %v1260
      %v1801 = vpop.f32.mrf.mxu0
      %v1802 = vadd.f32 %v1625, %v1801
      %v1803 = vpop.f32.mrf.mxu0
      %v1804 = vpop.f32.mrf.mxu0
      %v1805 = vadd.f32 %v1628, %v1804
      %v1806 = vpop.f32.mrf.mxu0
      %1807 = vmatprep.mubr.bf16.mxu0 0
      %1808 = vmatmul.mubr.bf16.gmra.mxu0 %v1263
      %v1809 = vpop.f32.mrf.mxu0
      %v1810 = vadd.f32 %v1633, %v1809
      %v1811 = vpop.f32.mrf.mxu0
      %v1812 = vpop.f32.mrf.mxu0
      %v1813 = vadd.f32 %v1636, %v1812
      %v1814 = vpop.f32.mrf.mxu0
      %1815 = vmatprep.mubr.bf16.mxu0 0
      %1816 = vmatmul.mubr.bf16.gmra.mxu0 %v1266
      %v1817 = vpop.f32.mrf.mxu0
      %v1818 = vadd.f32 %v1641, %v1817
      %v1819 = vpop.f32.mrf.mxu0
      %v1820 = vpop.f32.mrf.mxu0
      %v1821 = vadd.f32 %v1644, %v1820
      %v1822 = vpop.f32.mrf.mxu0
      %1823 = vmatprep.mubr.bf16.mxu0 0
      %1824 = vmatmul.mubr.bf16.gmra.mxu0 %v1269
      %v1825 = vpop.f32.mrf.mxu0
      %v1826 = vadd.f32 %v1649, %v1825
      %v1827 = vpop.f32.mrf.mxu0
      %v1828 = vpop.f32.mrf.mxu0
      %v1829 = vadd.f32 %v1652, %v1828
      %v1830 = vpop.f32.mrf.mxu0
      %1831 = vmatprep.mubr.bf16.mxu0 0
      %1832 = vmatmul.mubr.bf16.gmra.mxu0 %v1272
      %v1833 = vpop.f32.mrf.mxu0
      %v1834 = vadd.f32 %v1657, %v1833
      %v1835 = vpop.f32.mrf.mxu0
      %v1836 = vpop.f32.mrf.mxu0
      %v1837 = vadd.f32 %v1660, %v1836
      %v1838 = vpop.f32.mrf.mxu0
      %1839 = vmatprep.mubr.bf16.mxu0 0
      %1840 = vmatmul.mubr.bf16.gmra.mxu0 %v1275
      %v1841 = vpop.f32.mrf.mxu0
      %v1842 = vadd.f32 %v1665, %v1841
      %v1843 = vpop.f32.mrf.mxu0
      %v1844 = vpop.f32.mrf.mxu0
      %v1845 = vadd.f32 %v1668, %v1844
      %v1846 = vpop.f32.mrf.mxu0
      %1847 = vmatprep.mubr.bf16.mxu0 0
      %1848 = vmatmul.mubr.bf16.gmra.mxu0 %v1278
      %v1849 = vpop.f32.mrf.mxu0
      %v1850 = vadd.f32 %v1673, %v1849
      %v1851 = vpop.f32.mrf.mxu0
      %v1852 = vpop.f32.mrf.mxu0
      %v1853 = vadd.f32 %v1676, %v1852
      %v1854 = vpop.f32.mrf.mxu0
      %1855 = vmatprep.mubr.bf16.mxu0 0
      %1856 = vmatmul.mubr.bf16.gmra.mxu0 %v1281
      %v1857 = vpop.f32.mrf.mxu0
      %v1858 = vadd.f32 %v1681, %v1857
      %v1859 = vpop.f32.mrf.mxu0
      %v1860 = vpop.f32.mrf.mxu0
      %v1861 = vadd.f32 %v1684, %v1860
      %v1862 = vpop.f32.mrf.mxu0
      %1863 = vmatprep.mubr.bf16.mxu0 0
      %1864 = vmatmul.mubr.bf16.gmra.mxu0 %v1284
      %v1865 = vpop.f32.mrf.mxu0
      %v1866 = vadd.f32 %v1689, %v1865
      %v1867 = vpop.f32.mrf.mxu0
      %v1868 = vpop.f32.mrf.mxu0
      %v1869 = vadd.f32 %v1692, %v1868
      %v1870 = vpop.f32.mrf.mxu0
      %1871 = vmatprep.mubr.bf16.mxu0 0
      %1872 = vmatmul.mubr.bf16.gmra.mxu0 %v1287
      %v1873 = vpop.f32.mrf.mxu0
      %v1874 = vadd.f32 %v1697, %v1873
      %v1875 = vpop.f32.mrf.mxu0
      %v1876 = vpop.f32.mrf.mxu0
      %v1877 = vadd.f32 %v1700, %v1876
      %v1878 = vpop.f32.mrf.mxu0
      %1879 = vmatprep.mubr.bf16.mxu0 0
      %1880 = vmatmul.mubr.bf16.gmra.mxu0 %v1290
      %v1881 = vpop.f32.mrf.mxu0
      %v1882 = vadd.f32 %v1705, %v1881
      %v1883 = vpop.f32.mrf.mxu0
      %v1884 = vpop.f32.mrf.mxu0
      %v1885 = vadd.f32 %v1708, %v1884
      %v1886 = vpop.f32.mrf.mxu0
      %1887 = vmatprep.mubr.bf16.mxu0 0
      %1888 = vmatmul.mubr.bf16.gmra.mxu0 %v1293
      %v1889 = vpop.f32.mrf.mxu0
      %v1890 = vadd.f32 %v1713, %v1889
      %v1891 = vpop.f32.mrf.mxu0
      %v1892 = vpop.f32.mrf.mxu0
      %v1893 = vadd.f32 %v1716, %v1892
      %v1894 = vpop.f32.mrf.mxu0
      %1895 = vmatprep.mubr.bf16.mxu0 0
      %1896 = vmatmul.mubr.bf16.gmra.mxu0 %v1296
      %v1897 = vpop.f32.mrf.mxu0
      %v1898 = vadd.f32 %v1721, %v1897
      %v1899 = vpop.f32.mrf.mxu0
      %v1900 = vpop.f32.mrf.mxu0
      %v1901 = vadd.f32 %v1724, %v1900
      %v1902 = vpop.f32.mrf.mxu0
      %1903 = vmatprep.mubr.bf16.mxu0 0
      %1904 = vmatmul.mubr.bf16.gmra.mxu0 %v1299
      %v1905 = vpop.f32.mrf.mxu0
      %v1906 = vadd.f32 %v1729, %v1905
      %v1907 = vpop.f32.mrf.mxu0
      %v1908 = vpop.f32.mrf.mxu0
      %v1909 = vadd.f32 %v1732, %v1908
      %v1910 = vpop.f32.mrf.mxu0
      %1911 = vmatprep.mubr.bf16.mxu0 0
      %1912 = vmatmul.mubr.bf16.gmra.mxu0 %v1302
      %v1913 = vpop.f32.mrf.mxu0
      %v1914 = vadd.f32 %v1737, %v1913
      %v1915 = vpop.f32.mrf.mxu0
      %v1916 = vpop.f32.mrf.mxu0
      %v1917 = vadd.f32 %v1740, %v1916
      %v1918 = vpop.f32.mrf.mxu0
      %1919 = vdwg.mxu0
      %v1968 = vunpack.c.l.b16 %v1326
      %v1969 = vunpack.c.l.b16 %v1327
      %v1970 = vunpack.c.l.b16 %v1328
      %v1971 = vunpack.c.l.b16 %v1329
      %v1972 = vunpack.c.l.b16 %v1330
      %v1973 = vunpack.c.l.b16 %v1331
      %v1974 = vunpack.c.l.b16 %v1332
      %v1975 = vunpack.c.l.b16 %v1333
      %v1976 = vunpack.c.l.b16 %v1334
      %v1977 = vunpack.c.l.b16 %v1335
      %v1978 = vunpack.c.l.b16 %v1336
      %v1979 = vunpack.c.l.b16 %v1337
      %v1980 = vunpack.c.l.b16 %v1338
      %v1981 = vunpack.c.l.b16 %v1339
      %v1982 = vunpack.c.l.b16 %v1340
      %v1983 = vunpack.c.l.b16 %v1341
      %v1984 = vunpack.c.l.b16 %v1342
      %v1985 = vunpack.c.l.b16 %v1343
      %v1986 = vunpack.c.l.b16 %v1344
      %v1987 = vunpack.c.l.b16 %v1345
      %v1988 = vunpack.c.l.b16 %v1346
      %v1989 = vunpack.c.l.b16 %v1347
      %v1990 = vunpack.c.l.b16 %v1348
      %v1991 = vunpack.c.l.b16 %v1349
      %v1992 = vunpack.c.l.b16 %v1350
      %v1993 = vunpack.c.l.b16 %v1351
      %v1994 = vunpack.c.l.b16 %v1352
      %v1995 = vunpack.c.l.b16 %v1353
      %v1996 = vunpack.c.l.b16 %v1354
      %v1997 = vunpack.c.l.b16 %v1355
      %v1998 = vunpack.c.l.b16 %v1356
      %v1999 = vunpack.c.l.b16 %v1357
      %v2000 = vunpack.c.l.b16 %v1358
      %v2001 = vunpack.c.l.b16 %v1359
      %v2002 = vunpack.c.l.b16 %v1360
      %v2003 = vunpack.c.l.b16 %v1361
      %v2004 = vunpack.c.l.b16 %v1362
      %v2005 = vunpack.c.l.b16 %v1363
      %v2006 = vunpack.c.l.b16 %v1364
      %v2007 = vunpack.c.l.b16 %v1365
      %v2008 = vunpack.c.l.b16 %v1366
      %v2009 = vunpack.c.l.b16 %v1367
      %v2010 = vunpack.c.l.b16 %v1368
      %v2011 = vunpack.c.l.b16 %v1369
      %v2012 = vunpack.c.l.b16 %v1370
      %v2013 = vunpack.c.l.b16 %v1371
      %v2014 = vunpack.c.l.b16 %v1372
      %v2015 = vunpack.c.l.b16 %v1373
      %v2016 = vpack.c.b16 %v1969, %v1968
      %v2017 = vpack.c.b16 %v1971, %v1970
      %v2018 = vpack.c.b16 %v1973, %v1972
      %v2019 = vpack.c.b16 %v1975, %v1974
      %v2020 = vpack.c.b16 %v1977, %v1976
      %v2021 = vpack.c.b16 %v1979, %v1978
      %v2022 = vpack.c.b16 %v1981, %v1980
      %v2023 = vpack.c.b16 %v1983, %v1982
      %v2024 = vpack.c.b16 %v1985, %v1984
      %v2025 = vpack.c.b16 %v1987, %v1986
      %v2026 = vpack.c.b16 %v1989, %v1988
      %v2027 = vpack.c.b16 %v1991, %v1990
      %v2028 = vpack.c.b16 %v1993, %v1992
      %v2029 = vpack.c.b16 %v1995, %v1994
      %v2030 = vpack.c.b16 %v1997, %v1996
      %v2031 = vpack.c.b16 %v1999, %v1998
      %v2032 = vpack.c.b16 %v2001, %v2000
      %v2033 = vpack.c.b16 %v2003, %v2002
      %v2034 = vpack.c.b16 %v2005, %v2004
      %v2035 = vpack.c.b16 %v2007, %v2006
      %v2036 = vpack.c.b16 %v2009, %v2008
      %v2037 = vpack.c.b16 %v2011, %v2010
      %v2038 = vpack.c.b16 %v2013, %v2012
      %v2039 = vpack.c.b16 %v2015, %v2014
      %2064 = vmatprep.subr.bf16.mxu0 0
      %2065 = vmatpush1.bf16.msra.mxu0 %v2023
      %2066 = vmatprep.subr.bf16.mxu0 0
      %2067 = vmatpush1.bf16.msra.mxu0 %v2022
      %2068 = vmatprep.subr.bf16.mxu0 0
      %2069 = vmatpush1.bf16.msra.mxu0 %v2021
      %2070 = vmatprep.subr.bf16.mxu0 0
      %2071 = vmatpush1.bf16.msra.mxu0 %v2020
      %2072 = vmatprep.subr.bf16.mxu0 0
      %2073 = vmatpush1.bf16.msra.mxu0 %v2019
      %2074 = vmatprep.subr.bf16.mxu0 0
      %2075 = vmatpush1.bf16.msra.mxu0 %v2018
      %2076 = vmatprep.subr.bf16.mxu0 0
      %2077 = vmatpush1.bf16.msra.mxu0 %v2017
      %2078 = vmatprep.subr.bf16.mxu0 0
      %2079 = vmatpush1.bf16.msra.mxu0 %v2016
      %2080 = vmatprep.subr.bf16.mxu0 0
      %2081 = vmatpush2.bf16.msra.mxu0 %v2031
      %2082 = vmatprep.subr.bf16.mxu0 0
      %2083 = vmatpush2.bf16.msra.mxu0 %v2030
      %2084 = vmatprep.subr.bf16.mxu0 0
      %2085 = vmatpush2.bf16.msra.mxu0 %v2029
      %2086 = vmatprep.subr.bf16.mxu0 0
      %2087 = vmatpush2.bf16.msra.mxu0 %v2028
      %2088 = vmatprep.subr.bf16.mxu0 0
      %2089 = vmatpush2.bf16.msra.mxu0 %v2027
      %2090 = vmatprep.subr.bf16.mxu0 0
      %2091 = vmatpush2.bf16.msra.mxu0 %v2026
      %2092 = vmatprep.subr.bf16.mxu0 0
      %2093 = vmatpush2.bf16.msra.mxu0 %v2025
      %2094 = vmatprep.subr.bf16.mxu0 0
      %2095 = vmatpush2.bf16.msra.mxu0 %v2024
      %2096 = vmatprep.mubr.bf16.mxu0 %v956
      %2097 = vmatmul.mubr.bf16.gmra.mxu0 %v904
      %v2098 = vpop.f32.mrf.mxu0
      %v2099 = vadd.f32 %v1778, %v2098
      %v2100 = vpop.f32.mrf.mxu0
      %v2101 = vpop.f32.mrf.mxu0
      %v2102 = vadd.f32 %v1781, %v2101
      %v2103 = vpop.f32.mrf.mxu0
      %2104 = vmatprep.mubr.bf16.mxu0 %v968
      %2105 = vmatmul.mubr.bf16.gmra.mxu0 %v905
      %v2106 = vpop.f32.mrf.mxu0
      %v2107 = vadd.f32 %v1786, %v2106
      %v2108 = vpop.f32.mrf.mxu0
      %v2109 = vpop.f32.mrf.mxu0
      %v2110 = vadd.f32 %v1789, %v2109
      %v2111 = vpop.f32.mrf.mxu0
      %2112 = vmatprep.mubr.bf16.mxu0 %v980
      %2113 = vmatmul.mubr.bf16.gmra.mxu0 %v906
      %v2114 = vpop.f32.mrf.mxu0
      %v2115 = vadd.f32 %v1794, %v2114
      %v2116 = vpop.f32.mrf.mxu0
      %v2117 = vpop.f32.mrf.mxu0
      %v2118 = vadd.f32 %v1797, %v2117
      %v2119 = vpop.f32.mrf.mxu0
      %2120 = vmatprep.mubr.bf16.mxu0 %v992
      %2121 = vmatmul.mubr.bf16.gmra.mxu0 %v907
      %v2122 = vpop.f32.mrf.mxu0
      %v2123 = vadd.f32 %v1802, %v2122
      %v2124 = vpop.f32.mrf.mxu0
      %v2125 = vpop.f32.mrf.mxu0
      %v2126 = vadd.f32 %v1805, %v2125
      %v2127 = vpop.f32.mrf.mxu0
      %2128 = vmatprep.mubr.bf16.mxu0 %v1004
      %2129 = vmatmul.mubr.bf16.gmra.mxu0 %v908
      %v2130 = vpop.f32.mrf.mxu0
      %v2131 = vadd.f32 %v1810, %v2130
      %v2132 = vpop.f32.mrf.mxu0
      %v2133 = vpop.f32.mrf.mxu0
      %v2134 = vadd.f32 %v1813, %v2133
      %v2135 = vpop.f32.mrf.mxu0
      %2136 = vmatprep.mubr.bf16.mxu0 %v1016
      %2137 = vmatmul.mubr.bf16.gmra.mxu0 %v909
      %v2138 = vpop.f32.mrf.mxu0
      %v2139 = vadd.f32 %v1818, %v2138
      %v2140 = vpop.f32.mrf.mxu0
      %v2141 = vpop.f32.mrf.mxu0
      %v2142 = vadd.f32 %v1821, %v2141
      %v2143 = vpop.f32.mrf.mxu0
      %2144 = vmatprep.mubr.bf16.mxu0 %v1028
      %2145 = vmatmul.mubr.bf16.gmra.mxu0 %v910
      %v2146 = vpop.f32.mrf.mxu0
      %v2147 = vadd.f32 %v1826, %v2146
      %v2148 = vpop.f32.mrf.mxu0
      %v2149 = vpop.f32.mrf.mxu0
      %v2150 = vadd.f32 %v1829, %v2149
      %v2151 = vpop.f32.mrf.mxu0
      %2152 = vmatprep.mubr.bf16.mxu0 %v1040
      %2153 = vmatmul.mubr.bf16.gmra.mxu0 %v911
      %v2154 = vpop.f32.mrf.mxu0
      %v2155 = vadd.f32 %v1834, %v2154
      %v2156 = vpop.f32.mrf.mxu0
      %v2157 = vpop.f32.mrf.mxu0
      %v2158 = vadd.f32 %v1837, %v2157
      %v2159 = vpop.f32.mrf.mxu0
      %2160 = vmatprep.mubr.bf16.mxu0 %v1052
      %2161 = vmatmul.mubr.bf16.gmra.mxu0 %v912
      %v2162 = vpop.f32.mrf.mxu0
      %v2163 = vadd.f32 %v1842, %v2162
      %v2164 = vpop.f32.mrf.mxu0
      %v2165 = vpop.f32.mrf.mxu0
      %v2166 = vadd.f32 %v1845, %v2165
      %v2167 = vpop.f32.mrf.mxu0
      %2168 = vmatprep.mubr.bf16.mxu0 %v1064
      %2169 = vmatmul.mubr.bf16.gmra.mxu0 %v913
      %v2170 = vpop.f32.mrf.mxu0
      %v2171 = vadd.f32 %v1850, %v2170
      %v2172 = vpop.f32.mrf.mxu0
      %v2173 = vpop.f32.mrf.mxu0
      %v2174 = vadd.f32 %v1853, %v2173
      %v2175 = vpop.f32.mrf.mxu0
      %2176 = vmatprep.mubr.bf16.mxu0 %v1076
      %2177 = vmatmul.mubr.bf16.gmra.mxu0 %v914
      %v2178 = vpop.f32.mrf.mxu0
      %v2179 = vadd.f32 %v1858, %v2178
      %v2180 = vpop.f32.mrf.mxu0
      %v2181 = vpop.f32.mrf.mxu0
      %v2182 = vadd.f32 %v1861, %v2181
      %v2183 = vpop.f32.mrf.mxu0
      %2184 = vmatprep.mubr.bf16.mxu0 %v1088
      %2185 = vmatmul.mubr.bf16.gmra.mxu0 %v915
      %v2186 = vpop.f32.mrf.mxu0
      %v2187 = vadd.f32 %v1866, %v2186
      %v2188 = vpop.f32.mrf.mxu0
      %v2189 = vpop.f32.mrf.mxu0
      %v2190 = vadd.f32 %v1869, %v2189
      %v2191 = vpop.f32.mrf.mxu0
      %2192 = vmatprep.mubr.bf16.mxu0 %v1100
      %2193 = vmatmul.mubr.bf16.gmra.mxu0 %v916
      %v2194 = vpop.f32.mrf.mxu0
      %v2195 = vadd.f32 %v1874, %v2194
      %v2196 = vpop.f32.mrf.mxu0
      %v2197 = vpop.f32.mrf.mxu0
      %v2198 = vadd.f32 %v1877, %v2197
      %v2199 = vpop.f32.mrf.mxu0
      %2200 = vmatprep.mubr.bf16.mxu0 %v1112
      %2201 = vmatmul.mubr.bf16.gmra.mxu0 %v917
      %v2202 = vpop.f32.mrf.mxu0
      %v2203 = vadd.f32 %v1882, %v2202
      %v2204 = vpop.f32.mrf.mxu0
      %v2205 = vpop.f32.mrf.mxu0
      %v2206 = vadd.f32 %v1885, %v2205
      %v2207 = vpop.f32.mrf.mxu0
      %2208 = vmatprep.mubr.bf16.mxu0 %v1124
      %2209 = vmatmul.mubr.bf16.gmra.mxu0 %v918
      %v2210 = vpop.f32.mrf.mxu0
      %v2211 = vadd.f32 %v1890, %v2210
      %v2212 = vpop.f32.mrf.mxu0
      %v2213 = vpop.f32.mrf.mxu0
      %v2214 = vadd.f32 %v1893, %v2213
      %v2215 = vpop.f32.mrf.mxu0
      %2216 = vmatprep.mubr.bf16.mxu0 %v1136
      %2217 = vmatmul.mubr.bf16.gmra.mxu0 %v919
      %v2218 = vpop.f32.mrf.mxu0
      %v2219 = vadd.f32 %v1898, %v2218
      %v2220 = vpop.f32.mrf.mxu0
      %v2221 = vpop.f32.mrf.mxu0
      %v2222 = vadd.f32 %v1901, %v2221
      %v2223 = vpop.f32.mrf.mxu0
      %2224 = vmatprep.mubr.bf16.mxu0 %v1148
      %2225 = vmatmul.mubr.bf16.gmra.mxu0 %v920
      %v2226 = vpop.f32.mrf.mxu0
      %v2227 = vadd.f32 %v1906, %v2226
      %v2228 = vpop.f32.mrf.mxu0
      %v2229 = vpop.f32.mrf.mxu0
      %v2230 = vadd.f32 %v1909, %v2229
      %v2231 = vpop.f32.mrf.mxu0
      %2232 = vmatprep.mubr.bf16.mxu0 %v1160
      %2233 = vmatmul.mubr.bf16.gmra.mxu0 %v921
      %v2234 = vpop.f32.mrf.mxu0
      %v2235 = vadd.f32 %v1914, %v2234
      %v2236 = vpop.f32.mrf.mxu0
      %v2237 = vpop.f32.mrf.mxu0
      %v2238 = vadd.f32 %v1917, %v2237
      %v2239 = vpop.f32.mrf.mxu0
      %2240 = vdwg.mxu0
      %2241 = vmatprep.subr.bf16.mxu0 0
      %2242 = vmatpush1.bf16.msra.mxu0 %v2039
      %2243 = vmatprep.subr.bf16.mxu0 0
      %2244 = vmatpush1.bf16.msra.mxu0 %v2038
      %2245 = vmatprep.subr.bf16.mxu0 0
      %2246 = vmatpush1.bf16.msra.mxu0 %v2037
      %2247 = vmatprep.subr.bf16.mxu0 0
      %2248 = vmatpush1.bf16.msra.mxu0 %v2036
      %2249 = vmatprep.subr.bf16.mxu0 0
      %2250 = vmatpush1.bf16.msra.mxu0 %v2035
      %2251 = vmatprep.subr.bf16.mxu0 0
      %2252 = vmatpush1.bf16.msra.mxu0 %v2034
      %2253 = vmatprep.subr.bf16.mxu0 0
      %2254 = vmatpush1.bf16.msra.mxu0 %v2033
      %2255 = vmatprep.subr.bf16.mxu0 0
      %2256 = vmatpush1.bf16.msra.mxu0 %v2032
      %2257 = vmatprep.subr.bf16.mxu0 0
      %2258 = vmatpush2.bf16.msra.mxu0 0
      %2259 = vmatprep.subr.bf16.mxu0 0
      %2260 = vmatpush2.bf16.msra.mxu0 0
      %2261 = vmatprep.subr.bf16.mxu0 0
      %2262 = vmatpush2.bf16.msra.mxu0 0
      %2263 = vmatprep.subr.bf16.mxu0 0
      %2264 = vmatpush2.bf16.msra.mxu0 0
      %2265 = vmatprep.subr.bf16.mxu0 0
      %2266 = vmatpush2.bf16.msra.mxu0 0
      %2267 = vmatprep.subr.bf16.mxu0 0
      %2268 = vmatpush2.bf16.msra.mxu0 0
      %2269 = vmatprep.subr.bf16.mxu0 0
      %2270 = vmatpush2.bf16.msra.mxu0 0
      %2271 = vmatprep.subr.bf16.mxu0 0
      %2272 = vmatpush2.bf16.msra.mxu0 0
      %2273 = vmatprep.mubr.bf16.mxu0 0
      %2274 = vmatmul.mubr.bf16.gmra.mxu0 %v1248
      %v2275 = vpop.f32.mrf.mxu0
      %v2276 = vadd.f32 %v2099, %v2275
      %v2277 = vpop.f32.mrf.mxu0
      %v2278 = vpop.f32.mrf.mxu0
      %v2279 = vadd.f32 %v2102, %v2278
      %v2280 = vpop.f32.mrf.mxu0
      %2281 = vmatprep.mubr.bf16.mxu0 0
      %2282 = vmatmul.mubr.bf16.gmra.mxu0 %v1251
      %v2283 = vpop.f32.mrf.mxu0
      %v2284 = vadd.f32 %v2107, %v2283
      %v2285 = vpop.f32.mrf.mxu0
      %v2286 = vpop.f32.mrf.mxu0
      %v2287 = vadd.f32 %v2110, %v2286
      %v2288 = vpop.f32.mrf.mxu0
      %2289 = vmatprep.mubr.bf16.mxu0 0
      %2290 = vmatmul.mubr.bf16.gmra.mxu0 %v1254
      %v2291 = vpop.f32.mrf.mxu0
      %v2292 = vadd.f32 %v2115, %v2291
      %v2293 = vpop.f32.mrf.mxu0
      %v2294 = vpop.f32.mrf.mxu0
      %v2295 = vadd.f32 %v2118, %v2294
      %v2296 = vpop.f32.mrf.mxu0
      %2297 = vmatprep.mubr.bf16.mxu0 0
      %2298 = vmatmul.mubr.bf16.gmra.mxu0 %v1257
      %v2299 = vpop.f32.mrf.mxu0
      %v2300 = vadd.f32 %v2123, %v2299
      %v2301 = vpop.f32.mrf.mxu0
      %v2302 = vpop.f32.mrf.mxu0
      %v2303 = vadd.f32 %v2126, %v2302
      %v2304 = vpop.f32.mrf.mxu0
      %2305 = vmatprep.mubr.bf16.mxu0 0
      %2306 = vmatmul.mubr.bf16.gmra.mxu0 %v1260
      %v2307 = vpop.f32.mrf.mxu0
      %v2308 = vadd.f32 %v2131, %v2307
      %v2309 = vpop.f32.mrf.mxu0
      %v2310 = vpop.f32.mrf.mxu0
      %v2311 = vadd.f32 %v2134, %v2310
      %v2312 = vpop.f32.mrf.mxu0
      %2313 = vmatprep.mubr.bf16.mxu0 0
      %2314 = vmatmul.mubr.bf16.gmra.mxu0 %v1263
      %v2315 = vpop.f32.mrf.mxu0
      %v2316 = vadd.f32 %v2139, %v2315
      %v2317 = vpop.f32.mrf.mxu0
      %v2318 = vpop.f32.mrf.mxu0
      %v2319 = vadd.f32 %v2142, %v2318
      %v2320 = vpop.f32.mrf.mxu0
      %2321 = vmatprep.mubr.bf16.mxu0 0
      %2322 = vmatmul.mubr.bf16.gmra.mxu0 %v1266
      %v2323 = vpop.f32.mrf.mxu0
      %v2324 = vadd.f32 %v2147, %v2323
      %v2325 = vpop.f32.mrf.mxu0
      %v2326 = vpop.f32.mrf.mxu0
      %v2327 = vadd.f32 %v2150, %v2326
      %v2328 = vpop.f32.mrf.mxu0
      %2329 = vmatprep.mubr.bf16.mxu0 0
      %2330 = vmatmul.mubr.bf16.gmra.mxu0 %v1269
      %v2331 = vpop.f32.mrf.mxu0
      %v2332 = vadd.f32 %v2155, %v2331
      %v2333 = vpop.f32.mrf.mxu0
      %v2334 = vpop.f32.mrf.mxu0
      %v2335 = vadd.f32 %v2158, %v2334
      %v2336 = vpop.f32.mrf.mxu0
      %2337 = vmatprep.mubr.bf16.mxu0 0
      %2338 = vmatmul.mubr.bf16.gmra.mxu0 %v1272
      %v2339 = vpop.f32.mrf.mxu0
      %v2340 = vadd.f32 %v2163, %v2339
      %v2341 = vpop.f32.mrf.mxu0
      %v2342 = vpop.f32.mrf.mxu0
      %v2343 = vadd.f32 %v2166, %v2342
      %v2344 = vpop.f32.mrf.mxu0
      %2345 = vmatprep.mubr.bf16.mxu0 0
      %2346 = vmatmul.mubr.bf16.gmra.mxu0 %v1275
      %v2347 = vpop.f32.mrf.mxu0
      %v2348 = vadd.f32 %v2171, %v2347
      %v2349 = vpop.f32.mrf.mxu0
      %v2350 = vpop.f32.mrf.mxu0
      %v2351 = vadd.f32 %v2174, %v2350
      %v2352 = vpop.f32.mrf.mxu0
      %2353 = vmatprep.mubr.bf16.mxu0 0
      %2354 = vmatmul.mubr.bf16.gmra.mxu0 %v1278
      %v2355 = vpop.f32.mrf.mxu0
      %v2356 = vadd.f32 %v2179, %v2355
      %v2357 = vpop.f32.mrf.mxu0
      %v2358 = vpop.f32.mrf.mxu0
      %v2359 = vadd.f32 %v2182, %v2358
      %v2360 = vpop.f32.mrf.mxu0
      %2361 = vmatprep.mubr.bf16.mxu0 0
      %2362 = vmatmul.mubr.bf16.gmra.mxu0 %v1281
      %v2363 = vpop.f32.mrf.mxu0
      %v2364 = vadd.f32 %v2187, %v2363
      %v2365 = vpop.f32.mrf.mxu0
      %v2366 = vpop.f32.mrf.mxu0
      %v2367 = vadd.f32 %v2190, %v2366
      %v2368 = vpop.f32.mrf.mxu0
      %2369 = vmatprep.mubr.bf16.mxu0 0
      %2370 = vmatmul.mubr.bf16.gmra.mxu0 %v1284
      %v2371 = vpop.f32.mrf.mxu0
      %v2372 = vadd.f32 %v2195, %v2371
      %v2373 = vpop.f32.mrf.mxu0
      %v2374 = vpop.f32.mrf.mxu0
      %v2375 = vadd.f32 %v2198, %v2374
      %v2376 = vpop.f32.mrf.mxu0
      %2377 = vmatprep.mubr.bf16.mxu0 0
      %2378 = vmatmul.mubr.bf16.gmra.mxu0 %v1287
      %v2379 = vpop.f32.mrf.mxu0
      %v2380 = vadd.f32 %v2203, %v2379
      %v2381 = vpop.f32.mrf.mxu0
      %v2382 = vpop.f32.mrf.mxu0
      %v2383 = vadd.f32 %v2206, %v2382
      %v2384 = vpop.f32.mrf.mxu0
      %2385 = vmatprep.mubr.bf16.mxu0 0
      %2386 = vmatmul.mubr.bf16.gmra.mxu0 %v1290
      %v2387 = vpop.f32.mrf.mxu0
      %v2388 = vadd.f32 %v2211, %v2387
      %v2389 = vpop.f32.mrf.mxu0
      %v2390 = vpop.f32.mrf.mxu0
      %v2391 = vadd.f32 %v2214, %v2390
      %v2392 = vpop.f32.mrf.mxu0
      %2393 = vmatprep.mubr.bf16.mxu0 0
      %2394 = vmatmul.mubr.bf16.gmra.mxu0 %v1293
      %v2395 = vpop.f32.mrf.mxu0
      %v2396 = vadd.f32 %v2219, %v2395
      %v2397 = vpop.f32.mrf.mxu0
      %v2398 = vpop.f32.mrf.mxu0
      %v2399 = vadd.f32 %v2222, %v2398
      %v2400 = vpop.f32.mrf.mxu0
      %2401 = vmatprep.mubr.bf16.mxu0 0
      %2402 = vmatmul.mubr.bf16.gmra.mxu0 %v1296
      %v2403 = vpop.f32.mrf.mxu0
      %v2404 = vadd.f32 %v2227, %v2403
      %v2405 = vpop.f32.mrf.mxu0
      %v2406 = vpop.f32.mrf.mxu0
      %v2407 = vadd.f32 %v2230, %v2406
      %v2408 = vpop.f32.mrf.mxu0
      %2409 = vmatprep.mubr.bf16.mxu0 0
      %2410 = vmatmul.mubr.bf16.gmra.mxu0 %v1299
      %v2411 = vpop.f32.mrf.mxu0
      %v2412 = vadd.f32 %v2235, %v2411
      %v2413 = vpop.f32.mrf.mxu0
      %v2414 = vpop.f32.mrf.mxu0
      %v2415 = vadd.f32 %v2238, %v2414
      %v2416 = vpop.f32.mrf.mxu0
      %2417 = vdwg.mxu0
      %v2418 = vld [vmem:[%s1 + $0x180] sm:$0xf]
      %v2419 = vld [vmem:[%s1 + $0x184] sm:$0xf]
      %v2420 = vld [vmem:[%s1 + $0x188] sm:$0xf]
      %v2421 = vld [vmem:[%s1 + $0x18c] sm:$0xf]
      %v2422 = vld [vmem:[%s1 + $0x190] sm:$0xf]
      %v2423 = vld [vmem:[%s1 + $0x194] sm:$0xf]
      %v2424 = vld [vmem:[%s1 + $0x198] sm:$0xf]
      %v2425 = vld [vmem:[%s1 + $0x19c] sm:$0xf]
      %v2426 = vld [vmem:[%s1 + $0x1a0] sm:$0xf]
      %v2427 = vld [vmem:[%s1 + $0x1a4] sm:$0xf]
      %v2428 = vld [vmem:[%s1 + $0x1a8] sm:$0xf]
      %v2429 = vld [vmem:[%s1 + $0x1ac] sm:$0xf]
      %v2430 = vld [vmem:[%s1 + $0x1b0] sm:$0xf]
      %v2431 = vld [vmem:[%s1 + $0x1b4] sm:$0xf]
      %v2432 = vld [vmem:[%s1 + $0x1b8] sm:$0xf]
      %v2433 = vld [vmem:[%s1 + $0x1bc] sm:$0xf]
      %v2434 = vld [vmem:[%s1 + $0x1c0] sm:$0xf]
      %v2435 = vld [vmem:[%s1 + $0x1c4] sm:$0xf]
      %v2436 = vld [vmem:[%s1 + $0x1c8] sm:$0xf]
      %v2437 = vld [vmem:[%s1 + $0x1cc] sm:$0xf]
      %v2438 = vld [vmem:[%s1 + $0x1d0] sm:$0xf]
      %v2439 = vld [vmem:[%s1 + $0x1d4] sm:$0xf]
      %v2440 = vld [vmem:[%s1 + $0x1d8] sm:$0xf]
      %v2441 = vld [vmem:[%s1 + $0x1dc] sm:$0xf]
      %v2442 = vld [vmem:[%s1 + $0x1e0] sm:$0xf]
      %v2443 = vld [vmem:[%s1 + $0x1e4] sm:$0xf]
      %v2444 = vld [vmem:[%s1 + $0x1e8] sm:$0xf]
      %v2445 = vld [vmem:[%s1 + $0x1ec] sm:$0xf]
      %v2446 = vld [vmem:[%s1 + $0x1f0] sm:$0xf]
      %v2447 = vld [vmem:[%s1 + $0x1f4] sm:$0xf]
      %v2448 = vld [vmem:[%s1 + $0x1f8] sm:$0xf]
      %v2449 = vld [vmem:[%s1 + $0x1fc] sm:$0xf]
      %v2450 = vld [vmem:[%s1 + $0x200] sm:$0xf]
      %v2451 = vld [vmem:[%s1 + $0x204] sm:$0xf]
      %v2452 = vld [vmem:[%s1 + $0x208] sm:$0xf]
      %v2453 = vld [vmem:[%s1 + $0x20c] sm:$0xf]
      %v2454 = vld [vmem:[%s1 + $0x210] sm:$0xf]
      %v2455 = vld [vmem:[%s1 + $0x214] sm:$0xf]
      %v2456 = vld [vmem:[%s1 + $0x218] sm:$0xf]
      %v2457 = vld [vmem:[%s1 + $0x21c] sm:$0xf]
      %v2458 = vld [vmem:[%s1 + $0x220] sm:$0xf]
      %v2459 = vld [vmem:[%s1 + $0x224] sm:$0xf]
      %v2460 = vld [vmem:[%s1 + $0x228] sm:$0xf]
      %v2461 = vld [vmem:[%s1 + $0x22c] sm:$0xf]
      %v2462 = vld [vmem:[%s1 + $0x230] sm:$0xf]
      %v2463 = vld [vmem:[%s1 + $0x234] sm:$0xf]
      %v2464 = vld [vmem:[%s1 + $0x238] sm:$0xf]
      %v2465 = vld [vmem:[%s1 + $0x23c] sm:$0xf]
      %v2514 = vunpack.c.l.b16 %v2418
      %v2515 = vunpack.c.l.b16 %v2419
      %v2516 = vunpack.c.l.b16 %v2420
      %v2517 = vunpack.c.l.b16 %v2421
      %v2518 = vunpack.c.l.b16 %v2422
      %v2519 = vunpack.c.l.b16 %v2423
      %v2520 = vunpack.c.l.b16 %v2424
      %v2521 = vunpack.c.l.b16 %v2425
      %v2522 = vunpack.c.l.b16 %v2426
      %v2523 = vunpack.c.l.b16 %v2427
      %v2524 = vunpack.c.l.b16 %v2428
      %v2525 = vunpack.c.l.b16 %v2429
      %v2526 = vunpack.c.l.b16 %v2430
      %v2527 = vunpack.c.l.b16 %v2431
      %v2528 = vunpack.c.l.b16 %v2432
      %v2529 = vunpack.c.l.b16 %v2433
      %v2530 = vunpack.c.l.b16 %v2434
      %v2531 = vunpack.c.l.b16 %v2435
      %v2532 = vunpack.c.l.b16 %v2436
      %v2533 = vunpack.c.l.b16 %v2437
      %v2534 = vunpack.c.l.b16 %v2438
      %v2535 = vunpack.c.l.b16 %v2439
      %v2536 = vunpack.c.l.b16 %v2440
      %v2537 = vunpack.c.l.b16 %v2441
      %v2538 = vunpack.c.l.b16 %v2442
      %v2539 = vunpack.c.l.b16 %v2443
      %v2540 = vunpack.c.l.b16 %v2444
      %v2541 = vunpack.c.l.b16 %v2445
      %v2542 = vunpack.c.l.b16 %v2446
      %v2543 = vunpack.c.l.b16 %v2447
      %v2544 = vunpack.c.l.b16 %v2448
      %v2545 = vunpack.c.l.b16 %v2449
      %v2546 = vunpack.c.l.b16 %v2450
      %v2547 = vunpack.c.l.b16 %v2451
      %v2548 = vunpack.c.l.b16 %v2452
      %v2549 = vunpack.c.l.b16 %v2453
      %v2550 = vunpack.c.l.b16 %v2454
      %v2551 = vunpack.c.l.b16 %v2455
      %v2552 = vunpack.c.l.b16 %v2456
      %v2553 = vunpack.c.l.b16 %v2457
      %v2554 = vunpack.c.l.b16 %v2458
      %v2555 = vunpack.c.l.b16 %v2459
      %v2556 = vunpack.c.l.b16 %v2460
      %v2557 = vunpack.c.l.b16 %v2461
      %v2558 = vunpack.c.l.b16 %v2462
      %v2559 = vunpack.c.l.b16 %v2463
      %v2560 = vunpack.c.l.b16 %v2464
      %v2561 = vunpack.c.l.b16 %v2465
      %v2562 = vpack.c.b16 %v2515, %v2514
      %v2563 = vpack.c.b16 %v2517, %v2516
      %v2564 = vpack.c.b16 %v2519, %v2518
      %v2565 = vpack.c.b16 %v2521, %v2520
      %v2566 = vpack.c.b16 %v2523, %v2522
      %v2567 = vpack.c.b16 %v2525, %v2524
      %v2568 = vpack.c.b16 %v2527, %v2526
      %v2569 = vpack.c.b16 %v2529, %v2528
      %v2570 = vpack.c.b16 %v2531, %v2530
      %v2571 = vpack.c.b16 %v2533, %v2532
      %v2572 = vpack.c.b16 %v2535, %v2534
      %v2573 = vpack.c.b16 %v2537, %v2536
      %v2574 = vpack.c.b16 %v2539, %v2538
      %v2575 = vpack.c.b16 %v2541, %v2540
      %v2576 = vpack.c.b16 %v2543, %v2542
      %v2577 = vpack.c.b16 %v2545, %v2544
      %v2578 = vpack.c.b16 %v2547, %v2546
      %v2579 = vpack.c.b16 %v2549, %v2548
      %v2580 = vpack.c.b16 %v2551, %v2550
      %v2581 = vpack.c.b16 %v2553, %v2552
      %v2582 = vpack.c.b16 %v2555, %v2554
      %v2583 = vpack.c.b16 %v2557, %v2556
      %v2584 = vpack.c.b16 %v2559, %v2558
      %v2585 = vpack.c.b16 %v2561, %v2560
      %2610 = vmatprep.subr.bf16.mxu0 0
      %2611 = vmatpush1.bf16.msra.mxu0 %v2569
      %2612 = vmatprep.subr.bf16.mxu0 0
      %2613 = vmatpush1.bf16.msra.mxu0 %v2568
      %2614 = vmatprep.subr.bf16.mxu0 0
      %2615 = vmatpush1.bf16.msra.mxu0 %v2567
      %2616 = vmatprep.subr.bf16.mxu0 0
      %2617 = vmatpush1.bf16.msra.mxu0 %v2566
      %2618 = vmatprep.subr.bf16.mxu0 0
      %2619 = vmatpush1.bf16.msra.mxu0 %v2565
      %2620 = vmatprep.subr.bf16.mxu0 0
      %2621 = vmatpush1.bf16.msra.mxu0 %v2564
      %2622 = vmatprep.subr.bf16.mxu0 0
      %2623 = vmatpush1.bf16.msra.mxu0 %v2563
      %2624 = vmatprep.subr.bf16.mxu0 0
      %2625 = vmatpush1.bf16.msra.mxu0 %v2562
      %2626 = vmatprep.subr.bf16.mxu0 0
      %2627 = vmatpush2.bf16.msra.mxu0 %v2577
      %2628 = vmatprep.subr.bf16.mxu0 0
      %2629 = vmatpush2.bf16.msra.mxu0 %v2576
      %2630 = vmatprep.subr.bf16.mxu0 0
      %2631 = vmatpush2.bf16.msra.mxu0 %v2575
      %2632 = vmatprep.subr.bf16.mxu0 0
      %2633 = vmatpush2.bf16.msra.mxu0 %v2574
      %2634 = vmatprep.subr.bf16.mxu0 0
      %2635 = vmatpush2.bf16.msra.mxu0 %v2573
      %2636 = vmatprep.subr.bf16.mxu0 0
      %2637 = vmatpush2.bf16.msra.mxu0 %v2572
      %2638 = vmatprep.subr.bf16.mxu0 0
      %2639 = vmatpush2.bf16.msra.mxu0 %v2571
      %2640 = vmatprep.subr.bf16.mxu0 0
      %2641 = vmatpush2.bf16.msra.mxu0 %v2570
      %2642 = vmatprep.mubr.bf16.mxu0 %v980
      %2643 = vmatmul.mubr.bf16.gmra.mxu0 %v906
      %v2644 = vpop.f32.mrf.mxu0
      %v2645 = vadd.f32 0.0, %v2644
      %v2646 = vpop.f32.mrf.mxu0
      %v2647 = vpop.f32.mrf.mxu0
      %v2648 = vadd.f32 0.0, %v2647
      %v2649 = vpop.f32.mrf.mxu0
      %2650 = vmatprep.mubr.bf16.mxu0 %v992
      %2651 = vmatmul.mubr.bf16.gmra.mxu0 %v907
      %v2652 = vpop.f32.mrf.mxu0
      %v2653 = vadd.f32 0.0, %v2652
      %v2654 = vpop.f32.mrf.mxu0
      %v2655 = vpop.f32.mrf.mxu0
      %v2656 = vadd.f32 0.0, %v2655
      %v2657 = vpop.f32.mrf.mxu0
      %2658 = vmatprep.mubr.bf16.mxu0 %v1004
      %2659 = vmatmul.mubr.bf16.gmra.mxu0 %v908
      %v2660 = vpop.f32.mrf.mxu0
      %v2661 = vadd.f32 0.0, %v2660
      %v2662 = vpop.f32.mrf.mxu0
      %v2663 = vpop.f32.mrf.mxu0
      %v2664 = vadd.f32 0.0, %v2663
      %v2665 = vpop.f32.mrf.mxu0
      %2666 = vmatprep.mubr.bf16.mxu0 %v1016
      %2667 = vmatmul.mubr.bf16.gmra.mxu0 %v909
      %v2668 = vpop.f32.mrf.mxu0
      %v2669 = vadd.f32 0.0, %v2668
      %v2670 = vpop.f32.mrf.mxu0
      %v2671 = vpop.f32.mrf.mxu0
      %v2672 = vadd.f32 0.0, %v2671
      %v2673 = vpop.f32.mrf.mxu0
      %2674 = vmatprep.mubr.bf16.mxu0 %v1028
      %2675 = vmatmul.mubr.bf16.gmra.mxu0 %v910
      %v2676 = vpop.f32.mrf.mxu0
      %v2677 = vadd.f32 0.0, %v2676
      %v2678 = vpop.f32.mrf.mxu0
      %v2679 = vpop.f32.mrf.mxu0
      %v2680 = vadd.f32 0.0, %v2679
      %v2681 = vpop.f32.mrf.mxu0
      %2682 = vmatprep.mubr.bf16.mxu0 %v1040
      %2683 = vmatmul.mubr.bf16.gmra.mxu0 %v911
      %v2684 = vpop.f32.mrf.mxu0
      %v2685 = vadd.f32 0.0, %v2684
      %v2686 = vpop.f32.mrf.mxu0
      %v2687 = vpop.f32.mrf.mxu0
      %v2688 = vadd.f32 0.0, %v2687
      %v2689 = vpop.f32.mrf.mxu0
      %2690 = vmatprep.mubr.bf16.mxu0 %v1052
      %2691 = vmatmul.mubr.bf16.gmra.mxu0 %v912
      %v2692 = vpop.f32.mrf.mxu0
      %v2693 = vadd.f32 0.0, %v2692
      %v2694 = vpop.f32.mrf.mxu0
      %v2695 = vpop.f32.mrf.mxu0
      %v2696 = vadd.f32 0.0, %v2695
      %v2697 = vpop.f32.mrf.mxu0
      %2698 = vmatprep.mubr.bf16.mxu0 %v1064
      %2699 = vmatmul.mubr.bf16.gmra.mxu0 %v913
      %v2700 = vpop.f32.mrf.mxu0
      %v2701 = vadd.f32 0.0, %v2700
      %v2702 = vpop.f32.mrf.mxu0
      %v2703 = vpop.f32.mrf.mxu0
      %v2704 = vadd.f32 0.0, %v2703
      %v2705 = vpop.f32.mrf.mxu0
      %2706 = vmatprep.mubr.bf16.mxu0 %v1076
      %2707 = vmatmul.mubr.bf16.gmra.mxu0 %v914
      %v2708 = vpop.f32.mrf.mxu0
      %v2709 = vadd.f32 0.0, %v2708
      %v2710 = vpop.f32.mrf.mxu0
      %v2711 = vpop.f32.mrf.mxu0
      %v2712 = vadd.f32 0.0, %v2711
      %v2713 = vpop.f32.mrf.mxu0
      %2714 = vmatprep.mubr.bf16.mxu0 %v1088
      %2715 = vmatmul.mubr.bf16.gmra.mxu0 %v915
      %v2716 = vpop.f32.mrf.mxu0
      %v2717 = vadd.f32 0.0, %v2716
      %v2718 = vpop.f32.mrf.mxu0
      %v2719 = vpop.f32.mrf.mxu0
      %v2720 = vadd.f32 0.0, %v2719
      %v2721 = vpop.f32.mrf.mxu0
      %2722 = vmatprep.mubr.bf16.mxu0 %v1100
      %2723 = vmatmul.mubr.bf16.gmra.mxu0 %v916
      %v2724 = vpop.f32.mrf.mxu0
      %v2725 = vadd.f32 0.0, %v2724
      %v2726 = vpop.f32.mrf.mxu0
      %v2727 = vpop.f32.mrf.mxu0
      %v2728 = vadd.f32 0.0, %v2727
      %v2729 = vpop.f32.mrf.mxu0
      %2730 = vmatprep.mubr.bf16.mxu0 %v1112
      %2731 = vmatmul.mubr.bf16.gmra.mxu0 %v917
      %v2732 = vpop.f32.mrf.mxu0
      %v2733 = vadd.f32 0.0, %v2732
      %v2734 = vpop.f32.mrf.mxu0
      %v2735 = vpop.f32.mrf.mxu0
      %v2736 = vadd.f32 0.0, %v2735
      %v2737 = vpop.f32.mrf.mxu0
      %2738 = vmatprep.mubr.bf16.mxu0 %v1124
      %2739 = vmatmul.mubr.bf16.gmra.mxu0 %v918
      %v2740 = vpop.f32.mrf.mxu0
      %v2741 = vadd.f32 0.0, %v2740
      %v2742 = vpop.f32.mrf.mxu0
      %v2743 = vpop.f32.mrf.mxu0
      %v2744 = vadd.f32 0.0, %v2743
      %v2745 = vpop.f32.mrf.mxu0
      %2746 = vmatprep.mubr.bf16.mxu0 %v1136
      %2747 = vmatmul.mubr.bf16.gmra.mxu0 %v919
      %v2748 = vpop.f32.mrf.mxu0
      %v2749 = vadd.f32 0.0, %v2748
      %v2750 = vpop.f32.mrf.mxu0
      %v2751 = vpop.f32.mrf.mxu0
      %v2752 = vadd.f32 0.0, %v2751
      %v2753 = vpop.f32.mrf.mxu0
      %2754 = vmatprep.mubr.bf16.mxu0 %v1148
      %2755 = vmatmul.mubr.bf16.gmra.mxu0 %v920
      %v2756 = vpop.f32.mrf.mxu0
      %v2757 = vadd.f32 0.0, %v2756
      %v2758 = vpop.f32.mrf.mxu0
      %v2759 = vpop.f32.mrf.mxu0
      %v2760 = vadd.f32 0.0, %v2759
      %v2761 = vpop.f32.mrf.mxu0
      %2762 = vmatprep.mubr.bf16.mxu0 %v1160
      %2763 = vmatmul.mubr.bf16.gmra.mxu0 %v921
      %v2764 = vpop.f32.mrf.mxu0
      %v2765 = vadd.f32 0.0, %v2764
      %v2766 = vpop.f32.mrf.mxu0
      %v2767 = vpop.f32.mrf.mxu0
      %v2768 = vadd.f32 0.0, %v2767
      %v2769 = vpop.f32.mrf.mxu0
      %2770 = vmatprep.mubr.bf16.mxu0 %v1172
      %2771 = vmatmul.mubr.bf16.gmra.mxu0 %v922
      %v2772 = vpop.f32.mrf.mxu0
      %v2773 = vadd.f32 0.0, %v2772
      %v2774 = vpop.f32.mrf.mxu0
      %v2775 = vpop.f32.mrf.mxu0
      %v2776 = vadd.f32 0.0, %v2775
      %v2777 = vpop.f32.mrf.mxu0
      %2778 = vmatprep.mubr.bf16.mxu0 %v1184
      %2779 = vmatmul.mubr.bf16.gmra.mxu0 %v923
      %v2780 = vpop.f32.mrf.mxu0
      %v2781 = vadd.f32 0.0, %v2780
      %v2782 = vpop.f32.mrf.mxu0
      %v2783 = vpop.f32.mrf.mxu0
      %v2784 = vadd.f32 0.0, %v2783
      %v2785 = vpop.f32.mrf.mxu0
      %2786 = vdwg.mxu0
      %2787 = vmatprep.subr.bf16.mxu0 0
      %2788 = vmatpush1.bf16.msra.mxu0 %v2585
      %2789 = vmatprep.subr.bf16.mxu0 0
      %2790 = vmatpush1.bf16.msra.mxu0 %v2584
      %2791 = vmatprep.subr.bf16.mxu0 0
      %2792 = vmatpush1.bf16.msra.mxu0 %v2583
      %2793 = vmatprep.subr.bf16.mxu0 0
      %2794 = vmatpush1.bf16.msra.mxu0 %v2582
      %2795 = vmatprep.subr.bf16.mxu0 0
      %2796 = vmatpush1.bf16.msra.mxu0 %v2581
      %2797 = vmatprep.subr.bf16.mxu0 0
      %2798 = vmatpush1.bf16.msra.mxu0 %v2580
      %2799 = vmatprep.subr.bf16.mxu0 0
      %2800 = vmatpush1.bf16.msra.mxu0 %v2579
      %2801 = vmatprep.subr.bf16.mxu0 0
      %2802 = vmatpush1.bf16.msra.mxu0 %v2578
      %2803 = vmatprep.subr.bf16.mxu0 0
      %2804 = vmatpush2.bf16.msra.mxu0 0
      %2805 = vmatprep.subr.bf16.mxu0 0
      %2806 = vmatpush2.bf16.msra.mxu0 0
      %2807 = vmatprep.subr.bf16.mxu0 0
      %2808 = vmatpush2.bf16.msra.mxu0 0
      %2809 = vmatprep.subr.bf16.mxu0 0
      %2810 = vmatpush2.bf16.msra.mxu0 0
      %2811 = vmatprep.subr.bf16.mxu0 0
      %2812 = vmatpush2.bf16.msra.mxu0 0
      %2813 = vmatprep.subr.bf16.mxu0 0
      %2814 = vmatpush2.bf16.msra.mxu0 0
      %2815 = vmatprep.subr.bf16.mxu0 0
      %2816 = vmatpush2.bf16.msra.mxu0 0
      %2817 = vmatprep.subr.bf16.mxu0 0
      %2818 = vmatpush2.bf16.msra.mxu0 0
      %2819 = vmatprep.mubr.bf16.mxu0 0
      %2820 = vmatmul.mubr.bf16.gmra.mxu0 %v1254
      %v2821 = vpop.f32.mrf.mxu0
      %v2822 = vadd.f32 %v2645, %v2821
      %v2823 = vpop.f32.mrf.mxu0
      %v2824 = vpop.f32.mrf.mxu0
      %v2825 = vadd.f32 %v2648, %v2824
      %v2826 = vpop.f32.mrf.mxu0
      %2827 = vmatprep.mubr.bf16.mxu0 0
      %2828 = vmatmul.mubr.bf16.gmra.mxu0 %v1257
      %v2829 = vpop.f32.mrf.mxu0
      %v2830 = vadd.f32 %v2653, %v2829
      %v2831 = vpop.f32.mrf.mxu0
      %v2832 = vpop.f32.mrf.mxu0
      %v2833 = vadd.f32 %v2656, %v2832
      %v2834 = vpop.f32.mrf.mxu0
      %2835 = vmatprep.mubr.bf16.mxu0 0
      %2836 = vmatmul.mubr.bf16.gmra.mxu0 %v1260
      %v2837 = vpop.f32.mrf.mxu0
      %v2838 = vadd.f32 %v2661, %v2837
      %v2839 = vpop.f32.mrf.mxu0
      %v2840 = vpop.f32.mrf.mxu0
      %v2841 = vadd.f32 %v2664, %v2840
      %v2842 = vpop.f32.mrf.mxu0
      %2843 = vmatprep.mubr.bf16.mxu0 0
      %2844 = vmatmul.mubr.bf16.gmra.mxu0 %v1263
      %v2845 = vpop.f32.mrf.mxu0
      %v2846 = vadd.f32 %v2669, %v2845
      %v2847 = vpop.f32.mrf.mxu0
      %v2848 = vpop.f32.mrf.mxu0
      %v2849 = vadd.f32 %v2672, %v2848
      %v2850 = vpop.f32.mrf.mxu0
      %2851 = vmatprep.mubr.bf16.mxu0 0
      %2852 = vmatmul.mubr.bf16.gmra.mxu0 %v1266
      %v2853 = vpop.f32.mrf.mxu0
      %v2854 = vadd.f32 %v2677, %v2853
      %v2855 = vpop.f32.mrf.mxu0
      %v2856 = vpop.f32.mrf.mxu0
      %v2857 = vadd.f32 %v2680, %v2856
      %v2858 = vpop.f32.mrf.mxu0
      %2859 = vmatprep.mubr.bf16.mxu0 0
      %2860 = vmatmul.mubr.bf16.gmra.mxu0 %v1269
      %v2861 = vpop.f32.mrf.mxu0
      %v2862 = vadd.f32 %v2685, %v2861
      %v2863 = vpop.f32.mrf.mxu0
      %v2864 = vpop.f32.mrf.mxu0
      %v2865 = vadd.f32 %v2688, %v2864
      %v2866 = vpop.f32.mrf.mxu0
      %2867 = vmatprep.mubr.bf16.mxu0 0
      %2868 = vmatmul.mubr.bf16.gmra.mxu0 %v1272
      %v2869 = vpop.f32.mrf.mxu0
      %v2870 = vadd.f32 %v2693, %v2869
      %v2871 = vpop.f32.mrf.mxu0
      %v2872 = vpop.f32.mrf.mxu0
      %v2873 = vadd.f32 %v2696, %v2872
      %v2874 = vpop.f32.mrf.mxu0
      %2875 = vmatprep.mubr.bf16.mxu0 0
      %2876 = vmatmul.mubr.bf16.gmra.mxu0 %v1275
      %v2877 = vpop.f32.mrf.mxu0
      %v2878 = vadd.f32 %v2701, %v2877
      %v2879 = vpop.f32.mrf.mxu0
      %v2880 = vpop.f32.mrf.mxu0
      %v2881 = vadd.f32 %v2704, %v2880
      %v2882 = vpop.f32.mrf.mxu0
      %2883 = vmatprep.mubr.bf16.mxu0 0
      %2884 = vmatmul.mubr.bf16.gmra.mxu0 %v1278
      %v2885 = vpop.f32.mrf.mxu0
      %v2886 = vadd.f32 %v2709, %v2885
      %v2887 = vpop.f32.mrf.mxu0
      %v2888 = vpop.f32.mrf.mxu0
      %v2889 = vadd.f32 %v2712, %v2888
      %v2890 = vpop.f32.mrf.mxu0
      %2891 = vmatprep.mubr.bf16.mxu0 0
      %2892 = vmatmul.mubr.bf16.gmra.mxu0 %v1281
      %v2893 = vpop.f32.mrf.mxu0
      %v2894 = vadd.f32 %v2717, %v2893
      %v2895 = vpop.f32.mrf.mxu0
      %v2896 = vpop.f32.mrf.mxu0
      %v2897 = vadd.f32 %v2720, %v2896
      %v2898 = vpop.f32.mrf.mxu0
      %2899 = vmatprep.mubr.bf16.mxu0 0
      %2900 = vmatmul.mubr.bf16.gmra.mxu0 %v1284
      %v2901 = vpop.f32.mrf.mxu0
      %v2902 = vadd.f32 %v2725, %v2901
      %v2903 = vpop.f32.mrf.mxu0
      %v2904 = vpop.f32.mrf.mxu0
      %v2905 = vadd.f32 %v2728, %v2904
      %v2906 = vpop.f32.mrf.mxu0
      %2907 = vmatprep.mubr.bf16.mxu0 0
      %2908 = vmatmul.mubr.bf16.gmra.mxu0 %v1287
      %v2909 = vpop.f32.mrf.mxu0
      %v2910 = vadd.f32 %v2733, %v2909
      %v2911 = vpop.f32.mrf.mxu0
      %v2912 = vpop.f32.mrf.mxu0
      %v2913 = vadd.f32 %v2736, %v2912
      %v2914 = vpop.f32.mrf.mxu0
      %2915 = vmatprep.mubr.bf16.mxu0 0
      %2916 = vmatmul.mubr.bf16.gmra.mxu0 %v1290
      %v2917 = vpop.f32.mrf.mxu0
      %v2918 = vadd.f32 %v2741, %v2917
      %v2919 = vpop.f32.mrf.mxu0
      %v2920 = vpop.f32.mrf.mxu0
      %v2921 = vadd.f32 %v2744, %v2920
      %v2922 = vpop.f32.mrf.mxu0
      %2923 = vmatprep.mubr.bf16.mxu0 0
      %2924 = vmatmul.mubr.bf16.gmra.mxu0 %v1293
      %v2925 = vpop.f32.mrf.mxu0
      %v2926 = vadd.f32 %v2749, %v2925
      %v2927 = vpop.f32.mrf.mxu0
      %v2928 = vpop.f32.mrf.mxu0
      %v2929 = vadd.f32 %v2752, %v2928
      %v2930 = vpop.f32.mrf.mxu0
      %2931 = vmatprep.mubr.bf16.mxu0 0
      %2932 = vmatmul.mubr.bf16.gmra.mxu0 %v1296
      %v2933 = vpop.f32.mrf.mxu0
      %v2934 = vadd.f32 %v2757, %v2933
      %v2935 = vpop.f32.mrf.mxu0
      %v2936 = vpop.f32.mrf.mxu0
      %v2937 = vadd.f32 %v2760, %v2936
      %v2938 = vpop.f32.mrf.mxu0
      %2939 = vmatprep.mubr.bf16.mxu0 0
      %2940 = vmatmul.mubr.bf16.gmra.mxu0 %v1299
      %v2941 = vpop.f32.mrf.mxu0
      %v2942 = vadd.f32 %v2765, %v2941
      %v2943 = vpop.f32.mrf.mxu0
      %v2944 = vpop.f32.mrf.mxu0
      %v2945 = vadd.f32 %v2768, %v2944
      %v2946 = vpop.f32.mrf.mxu0
      %2947 = vmatprep.mubr.bf16.mxu0 0
      %2948 = vmatmul.mubr.bf16.gmra.mxu0 %v1302
      %v2949 = vpop.f32.mrf.mxu0
      %v2950 = vadd.f32 %v2773, %v2949
      %v2951 = vpop.f32.mrf.mxu0
      %v2952 = vpop.f32.mrf.mxu0
      %v2953 = vadd.f32 %v2776, %v2952
      %v2954 = vpop.f32.mrf.mxu0
      %2955 = vmatprep.mubr.bf16.mxu0 0
      %2956 = vmatmul.mubr.bf16.gmra.mxu0 %v1305
      %v2957 = vpop.f32.mrf.mxu0
      %v2958 = vadd.f32 %v2781, %v2957
      %v2959 = vpop.f32.mrf.mxu0
      %v2960 = vpop.f32.mrf.mxu0
      %v2961 = vadd.f32 %v2784, %v2960
      %v2962 = vpop.f32.mrf.mxu0
      %2963 = vdwg.mxu0
      %v2964 = vadd.f32 %v2276, %v2822
      %v2965 = vadd.f32 %v2279, %v2825
      %v2966 = vadd.f32 %v2284, %v2830
      %v2967 = vadd.f32 %v2287, %v2833
      %v2968 = vadd.f32 %v2292, %v2838
      %v2969 = vadd.f32 %v2295, %v2841
      %v2970 = vadd.f32 %v2300, %v2846
      %v2971 = vadd.f32 %v2303, %v2849
      %v2972 = vadd.f32 %v2308, %v2854
      %v2973 = vadd.f32 %v2311, %v2857
      %v2974 = vadd.f32 %v2316, %v2862
      %v2975 = vadd.f32 %v2319, %v2865
      %v2976 = vadd.f32 %v2324, %v2870
      %v2977 = vadd.f32 %v2327, %v2873
      %v2978 = vadd.f32 %v2332, %v2878
      %v2979 = vadd.f32 %v2335, %v2881
      %v2980 = vadd.f32 %v2340, %v2886
      %v2981 = vadd.f32 %v2343, %v2889
      %v2982 = vadd.f32 %v2348, %v2894
      %v2983 = vadd.f32 %v2351, %v2897
      %v2984 = vadd.f32 %v2356, %v2902
      %v2985 = vadd.f32 %v2359, %v2905
      %v2986 = vadd.f32 %v2364, %v2910
      %v2987 = vadd.f32 %v2367, %v2913
      %v2988 = vadd.f32 %v2372, %v2918
      %v2989 = vadd.f32 %v2375, %v2921
      %v2990 = vadd.f32 %v2380, %v2926
      %v2991 = vadd.f32 %v2383, %v2929
      %v2992 = vadd.f32 %v2388, %v2934
      %v2993 = vadd.f32 %v2391, %v2937
      %v2994 = vadd.f32 %v2396, %v2942
      %v2995 = vadd.f32 %v2399, %v2945
      %v2996 = vadd.f32 %v2404, %v2950
      %v2997 = vadd.f32 %v2407, %v2953
      %v2998 = vadd.f32 %v2412, %v2958
      %v2999 = vadd.f32 %v2415, %v2961
      %v3000 = vld [vmem:[%s2] sm:$0x1]
      %v3002 = vlaneseq
      %v3003 = vshrl.u32 %v3002, 7
      %v3004 = vsub.s32 0, %v3003
      %v3005 = vrot.slane %v3000, %v3004
      %v3007 = vadd.f32 %v2964, %v3005
      %v3008 = vadd.f32 %v2965, %v3005
      %v3009 = vadd.f32 %v2966, %v3005
      %v3010 = vadd.f32 %v2967, %v3005
      %v3011 = vadd.f32 %v2968, %v3005
      %v3012 = vadd.f32 %v2969, %v3005
      %v3013 = vadd.f32 %v2970, %v3005
      %v3014 = vadd.f32 %v2971, %v3005
      %v3015 = vadd.f32 %v2972, %v3005
      %v3016 = vadd.f32 %v2973, %v3005
      %v3017 = vadd.f32 %v2974, %v3005
      %v3018 = vadd.f32 %v2975, %v3005
      %v3019 = vadd.f32 %v2976, %v3005
      %v3020 = vadd.f32 %v2977, %v3005
      %v3021 = vadd.f32 %v2978, %v3005
      %v3022 = vadd.f32 %v2979, %v3005
      %v3023 = vadd.f32 %v2980, %v3005
      %v3024 = vadd.f32 %v2981, %v3005
      %v3025 = vadd.f32 %v2982, %v3005
      %v3026 = vadd.f32 %v2983, %v3005
      %v3027 = vadd.f32 %v2984, %v3005
      %v3028 = vadd.f32 %v2985, %v3005
      %v3029 = vadd.f32 %v2986, %v3005
      %v3030 = vadd.f32 %v2987, %v3005
      %v3031 = vadd.f32 %v2988, %v3005
      %v3032 = vadd.f32 %v2989, %v3005
      %v3033 = vadd.f32 %v2990, %v3005
      %v3034 = vadd.f32 %v2991, %v3005
      %v3035 = vadd.f32 %v2992, %v3005
      %v3036 = vadd.f32 %v2993, %v3005
      %v3037 = vadd.f32 %v2994, %v3005
      %v3038 = vadd.f32 %v2995, %v3005
      %v3039 = vadd.f32 %v2996, %v3005
      %v3040 = vadd.f32 %v2997, %v3005
      %v3041 = vadd.f32 %v2998, %v3005
      %v3042 = vadd.f32 %v2999, %v3005
      %vm3043 = vcmp.ge.f32.partialorder %v3007, 0.0
      %vm3044 = vcmp.ge.f32.partialorder %v3008, 0.0
      %vm3045 = vcmp.ge.f32.partialorder %v3009, 0.0
      %vm3046 = vcmp.ge.f32.partialorder %v3010, 0.0
      %vm3047 = vcmp.ge.f32.partialorder %v3011, 0.0
      %vm3048 = vcmp.ge.f32.partialorder %v3012, 0.0
      %vm3049 = vcmp.ge.f32.partialorder %v3013, 0.0
      %vm3050 = vcmp.ge.f32.partialorder %v3014, 0.0
      %vm3051 = vcmp.ge.f32.partialorder %v3015, 0.0
      %vm3052 = vcmp.ge.f32.partialorder %v3016, 0.0
      %vm3053 = vcmp.ge.f32.partialorder %v3017, 0.0
      %vm3054 = vcmp.ge.f32.partialorder %v3018, 0.0
      %vm3055 = vcmp.ge.f32.partialorder %v3019, 0.0
      %vm3056 = vcmp.ge.f32.partialorder %v3020, 0.0
      %vm3057 = vcmp.ge.f32.partialorder %v3021, 0.0
      %vm3058 = vcmp.ge.f32.partialorder %v3022, 0.0
      %vm3059 = vcmp.ge.f32.partialorder %v3023, 0.0
      %vm3060 = vcmp.ge.f32.partialorder %v3024, 0.0
      %vm3061 = vcmp.ge.f32.partialorder %v3025, 0.0
      %vm3062 = vcmp.ge.f32.partialorder %v3026, 0.0
      %vm3063 = vcmp.ge.f32.partialorder %v3027, 0.0
      %vm3064 = vcmp.ge.f32.partialorder %v3028, 0.0
      %vm3065 = vcmp.ge.f32.partialorder %v3029, 0.0
      %vm3066 = vcmp.ge.f32.partialorder %v3030, 0.0
      %vm3067 = vcmp.ge.f32.partialorder %v3031, 0.0
      %vm3068 = vcmp.ge.f32.partialorder %v3032, 0.0
      %vm3069 = vcmp.ge.f32.partialorder %v3033, 0.0
      %vm3070 = vcmp.ge.f32.partialorder %v3034, 0.0
      %vm3071 = vcmp.ge.f32.partialorder %v3035, 0.0
      %vm3072 = vcmp.ge.f32.partialorder %v3036, 0.0
      %vm3073 = vcmp.ge.f32.partialorder %v3037, 0.0
      %vm3074 = vcmp.ge.f32.partialorder %v3038, 0.0
      %vm3075 = vcmp.ge.f32.partialorder %v3039, 0.0
      %vm3076 = vcmp.ge.f32.partialorder %v3040, 0.0
      %vm3077 = vcmp.ge.f32.partialorder %v3041, 0.0
      %vm3078 = vcmp.ge.f32.partialorder %v3042, 0.0
      %v3079 = vmul.f32 %v3007, 0.1
      %v3080 = vmul.f32 %v3008, 0.1
      %v3081 = vmul.f32 %v3009, 0.1
      %v3082 = vmul.f32 %v3010, 0.1
      %v3083 = vmul.f32 %v3011, 0.1
      %v3084 = vmul.f32 %v3012, 0.1
      %v3085 = vmul.f32 %v3013, 0.1
      %v3086 = vmul.f32 %v3014, 0.1
      %v3087 = vmul.f32 %v3015, 0.1
      %v3088 = vmul.f32 %v3016, 0.1
      %v3089 = vmul.f32 %v3017, 0.1
      %v3090 = vmul.f32 %v3018, 0.1
      %v3091 = vmul.f32 %v3019, 0.1
      %v3092 = vmul.f32 %v3020, 0.1
      %v3093 = vmul.f32 %v3021, 0.1
      %v3094 = vmul.f32 %v3022, 0.1
      %v3095 = vmul.f32 %v3023, 0.1
      %v3096 = vmul.f32 %v3024, 0.1
      %v3097 = vmul.f32 %v3025, 0.1
      %v3098 = vmul.f32 %v3026, 0.1
      %v3099 = vmul.f32 %v3027, 0.1
      %v3100 = vmul.f32 %v3028, 0.1
      %v3101 = vmul.f32 %v3029, 0.1
      %v3102 = vmul.f32 %v3030, 0.1
      %v3103 = vmul.f32 %v3031, 0.1
      %v3104 = vmul.f32 %v3032, 0.1
      %v3105 = vmul.f32 %v3033, 0.1
      %v3106 = vmul.f32 %v3034, 0.1
      %v3107 = vmul.f32 %v3035, 0.1
      %v3108 = vmul.f32 %v3036, 0.1
      %v3109 = vmul.f32 %v3037, 0.1
      %v3110 = vmul.f32 %v3038, 0.1
      %v3111 = vmul.f32 %v3039, 0.1
      %v3112 = vmul.f32 %v3040, 0.1
      %v3113 = vmul.f32 %v3041, 0.1
      %v3114 = vmul.f32 %v3042, 0.1
      %v3115 = vsel %vm3043, %v3007, %v3079
      %v3116 = vsel %vm3044, %v3008, %v3080
      %v3117 = vsel %vm3045, %v3009, %v3081
      %v3118 = vsel %vm3046, %v3010, %v3082
      %v3119 = vsel %vm3047, %v3011, %v3083
      %v3120 = vsel %vm3048, %v3012, %v3084
      %v3121 = vsel %vm3049, %v3013, %v3085
      %v3122 = vsel %vm3050, %v3014, %v3086
      %v3123 = vsel %vm3051, %v3015, %v3087
      %v3124 = vsel %vm3052, %v3016, %v3088
      %v3125 = vsel %vm3053, %v3017, %v3089
      %v3126 = vsel %vm3054, %v3018, %v3090
      %v3127 = vsel %vm3055, %v3019, %v3091
      %v3128 = vsel %vm3056, %v3020, %v3092
      %v3129 = vsel %vm3057, %v3021, %v3093
      %v3130 = vsel %vm3058, %v3022, %v3094
      %v3131 = vsel %vm3059, %v3023, %v3095
      %v3132 = vsel %vm3060, %v3024, %v3096
      %v3133 = vsel %vm3061, %v3025, %v3097
      %v3134 = vsel %vm3062, %v3026, %v3098
      %v3135 = vsel %vm3063, %v3027, %v3099
      %v3136 = vsel %vm3064, %v3028, %v3100
      %v3137 = vsel %vm3065, %v3029, %v3101
      %v3138 = vsel %vm3066, %v3030, %v3102
      %v3139 = vsel %vm3067, %v3031, %v3103
      %v3140 = vsel %vm3068, %v3032, %v3104
      %v3141 = vsel %vm3069, %v3033, %v3105
      %v3142 = vsel %vm3070, %v3034, %v3106
      %v3143 = vsel %vm3071, %v3035, %v3107
      %v3144 = vsel %vm3072, %v3036, %v3108
      %v3145 = vsel %vm3073, %v3037, %v3109
      %v3146 = vsel %vm3074, %v3038, %v3110
      %v3147 = vsel %vm3075, %v3039, %v3111
      %v3148 = vsel %vm3076, %v3040, %v3112
      %v3149 = vsel %vm3077, %v3041, %v3113
      %v3150 = vsel %vm3078, %v3042, %v3114
      %s3151 = scalar_select %p217, 1, 0
      %v3152 = vstv %s3151
      %vm3153 = vcmp.eq.s32.totalorder %v3152, 1
      %v3154 = vsel %vm3153, 0.0, %v3115
      %v3155 = vsel %vm3153, 0.0, %v3116
      %3156 = vst [vmem:[#allocation3 + $0x1] sm:$0xff] %v3154
      %3157 = vst [vmem:[#allocation3 + $0x9] sm:$0xff] %v3155
      %v3158 = vsel %vm3153, 0.0, %v3149
      %v3159 = vsel %vm3153, 0.0, %v3150
      %s3160 = scalar_lea.vmem [#allocation3], 408
      %3161 = vst [vmem:[%s3160 + $0x1] sm:$0xff] %v3158
      %3162 = vst [vmem:[%s3160 + $0x9] sm:$0xff] %v3159
      %s3163 = scalar_lea.vmem [#allocation3], 24
      %3164 = vst [vmem:[%s3163 + $0x1] sm:$0xff] %v3117
      %3165 = vst [vmem:[%s3163 + $0x9] sm:$0xff] %v3118
      %3166 = vst [vmem:[%s3163 + $0x19] sm:$0xff] %v3119
      %3167 = vst [vmem:[%s3163 + $0x21] sm:$0xff] %v3120
      %3168 = vst [vmem:[%s3163 + $0x31] sm:$0xff] %v3121
      %3169 = vst [vmem:[%s3163 + $0x39] sm:$0xff] %v3122
      %3170 = vst [vmem:[%s3163 + $0x49] sm:$0xff] %v3123
      %3171 = vst [vmem:[%s3163 + $0x51] sm:$0xff] %v3124
      %3172 = vst [vmem:[%s3163 + $0x61] sm:$0xff] %v3125
      %3173 = vst [vmem:[%s3163 + $0x69] sm:$0xff] %v3126
      %3174 = vst [vmem:[%s3163 + $0x79] sm:$0xff] %v3127
      %3175 = vst [vmem:[%s3163 + $0x81] sm:$0xff] %v3128
      %3176 = vst [vmem:[%s3163 + $0x91] sm:$0xff] %v3129
      %3177 = vst [vmem:[%s3163 + $0x99] sm:$0xff] %v3130
      %3178 = vst [vmem:[%s3163 + $0xa9] sm:$0xff] %v3131
      %3179 = vst [vmem:[%s3163 + $0xb1] sm:$0xff] %v3132
      %3180 = vst [vmem:[%s3163 + $0xc1] sm:$0xff] %v3133
      %3181 = vst [vmem:[%s3163 + $0xc9] sm:$0xff] %v3134
      %3182 = vst [vmem:[%s3163 + $0xd9] sm:$0xff] %v3135
      %3183 = vst [vmem:[%s3163 + $0xe1] sm:$0xff] %v3136
      %3184 = vst [vmem:[%s3163 + $0xf1] sm:$0xff] %v3137
      %3185 = vst [vmem:[%s3163 + $0xf9] sm:$0xff] %v3138
      %3186 = vst [vmem:[%s3163 + $0x109] sm:$0xff] %v3139
      %3187 = vst [vmem:[%s3163 + $0x111] sm:$0xff] %v3140
      %3188 = vst [vmem:[%s3163 + $0x121] sm:$0xff] %v3141
      %3189 = vst [vmem:[%s3163 + $0x129] sm:$0xff] %v3142
      %3190 = vst [vmem:[%s3163 + $0x139] sm:$0xff] %v3143
      %3191 = vst [vmem:[%s3163 + $0x141] sm:$0xff] %v3144
      %3192 = vst [vmem:[%s3163 + $0x151] sm:$0xff] %v3145
      %3193 = vst [vmem:[%s3163 + $0x159] sm:$0xff] %v3146
      %3194 = vst [vmem:[%s3163 + $0x169] sm:$0xff] %v3147
      %3195 = vst [vmem:[%s3163 + $0x171] sm:$0xff] %v3148
      %3196 = vst [vmem:[#allocation3] sm:$0x1] 0.0
      %3197 = vst [vmem:[#allocation3 + $0x18] sm:$0x1] 0.0
      %3198 = vst [vmem:[#allocation3 + $0x30] sm:$0x1] 0.0
      %3199 = vst [vmem:[#allocation3 + $0x48] sm:$0x1] 0.0
      %3200 = vst [vmem:[#allocation3 + $0x60] sm:$0x1] 0.0
      %3201 = vst [vmem:[#allocation3 + $0x78] sm:$0x1] 0.0
      %3202 = vst [vmem:[#allocation3 + $0x90] sm:$0x1] 0.0
      %3203 = vst [vmem:[#allocation3 + $0xa8] sm:$0x1] 0.0
      %3204 = vst [vmem:[#allocation3 + $0xc0] sm:$0x1] 0.0
      %3205 = vst [vmem:[#allocation3 + $0xd8] sm:$0x1] 0.0
      %3206 = vst [vmem:[#allocation3 + $0xf0] sm:$0x1] 0.0
      %3207 = vst [vmem:[#allocation3 + $0x108] sm:$0x1] 0.0
      %3208 = vst [vmem:[#allocation3 + $0x120] sm:$0x1] 0.0
      %3209 = vst [vmem:[#allocation3 + $0x138] sm:$0x1] 0.0
      %3210 = vst [vmem:[#allocation3 + $0x150] sm:$0x1] 0.0
      %3211 = vst [vmem:[#allocation3 + $0x168] sm:$0x1] 0.0
      %3212 = vst [vmem:[#allocation3 + $0x180] sm:$0x1] 0.0
      %3213 = vst [vmem:[#allocation3 + $0x198] sm:$0x1] 0.0
      %3214 = vst [vmem:[#allocation3 + $0x11] sm:$0x1] 0.0
      %3215 = vst [vmem:[#allocation3 + $0x29] sm:$0x1] 0.0
      %3216 = vst [vmem:[#allocation3 + $0x41] sm:$0x1] 0.0
      %3217 = vst [vmem:[#allocation3 + $0x59] sm:$0x1] 0.0
      %3218 = vst [vmem:[#allocation3 + $0x71] sm:$0x1] 0.0
      %3219 = vst [vmem:[#allocation3 + $0x89] sm:$0x1] 0.0
      %3220 = vst [vmem:[#allocation3 + $0xa1] sm:$0x1] 0.0
      %3221 = vst [vmem:[#allocation3 + $0xb9] sm:$0x1] 0.0
      %3222 = vst [vmem:[#allocation3 + $0xd1] sm:$0x1] 0.0
      %3223 = vst [vmem:[#allocation3 + $0xe9] sm:$0x1] 0.0
      %3224 = vst [vmem:[#allocation3 + $0x101] sm:$0x1] 0.0
      %3225 = vst [vmem:[#allocation3 + $0x119] sm:$0x1] 0.0
      %3226 = vst [vmem:[#allocation3 + $0x131] sm:$0x1] 0.0
      %3227 = vst [vmem:[#allocation3 + $0x149] sm:$0x1] 0.0
      %3228 = vst [vmem:[#allocation3 + $0x161] sm:$0x1] 0.0
      %3229 = vst [vmem:[#allocation3 + $0x179] sm:$0x1] 0.0
      %3230 = vst [vmem:[#allocation3 + $0x191] sm:$0x1] 0.0
      %3231 = vst [vmem:[#allocation3 + $0x1a9] sm:$0x1] 0.0
      %v3232 = vld [vmem:[#allocation3] sm:$0xff]
      %v3233 = vld [vmem:[#allocation3 + $0x8] sm:$0xff]
      %v3234 = vld [vmem:[#allocation3 + $0x10] sm:$0x3]
      %v3235 = vld [vmem:[#allocation3 + $0x18] sm:$0xff]
      %v3236 = vld [vmem:[#allocation3 + $0x20] sm:$0xff]
      %v3237 = vld [vmem:[#allocation3 + $0x28] sm:$0x3]
      %v3238 = vld [vmem:[#allocation3 + $0x30] sm:$0xff]
      %v3239 = vld [vmem:[#allocation3 + $0x38] sm:$0xff]
      %v3240 = vld [vmem:[#allocation3 + $0x40] sm:$0x3]
      %v3241 = vld [vmem:[#allocation3 + $0x48] sm:$0xff]
      %v3242 = vld [vmem:[#allocation3 + $0x50] sm:$0xff]
      %v3243 = vld [vmem:[#allocation3 + $0x58] sm:$0x3]
      %v3244 = vld [vmem:[#allocation3 + $0x60] sm:$0xff]
      %v3245 = vld [vmem:[#allocation3 + $0x68] sm:$0xff]
      %v3246 = vld [vmem:[#allocation3 + $0x70] sm:$0x3]
      %v3247 = vld [vmem:[#allocation3 + $0x78] sm:$0xff]
      %v3248 = vld [vmem:[#allocation3 + $0x80] sm:$0xff]
      %v3249 = vld [vmem:[#allocation3 + $0x88] sm:$0x3]
      %v3250 = vld [vmem:[#allocation3 + $0x90] sm:$0xff]
      %v3251 = vld [vmem:[#allocation3 + $0x98] sm:$0xff]
      %v3252 = vld [vmem:[#allocation3 + $0xa0] sm:$0x3]
      %v3253 = vld [vmem:[#allocation3 + $0xa8] sm:$0xff]
      %v3254 = vld [vmem:[#allocation3 + $0xb0] sm:$0xff]
      %v3255 = vld [vmem:[#allocation3 + $0xb8] sm:$0x3]
      %v3256 = vld [vmem:[#allocation3 + $0xc0] sm:$0xff]
      %v3257 = vld [vmem:[#allocation3 + $0xc8] sm:$0xff]
      %v3258 = vld [vmem:[#allocation3 + $0xd0] sm:$0x3]
      %v3259 = vld [vmem:[#allocation3 + $0xd8] sm:$0xff]
      %v3260 = vld [vmem:[#allocation3 + $0xe0] sm:$0xff]
      %v3261 = vld [vmem:[#allocation3 + $0xe8] sm:$0x3]
      %v3262 = vld [vmem:[#allocation3 + $0xf0] sm:$0xff]
      %v3263 = vld [vmem:[#allocation3 + $0xf8] sm:$0xff]
      %v3264 = vld [vmem:[#allocation3 + $0x100] sm:$0x3]
      %v3265 = vld [vmem:[#allocation3 + $0x108] sm:$0xff]
      %v3266 = vld [vmem:[#allocation3 + $0x110] sm:$0xff]
      %v3267 = vld [vmem:[#allocation3 + $0x118] sm:$0x3]
      %v3268 = vld [vmem:[#allocation3 + $0x120] sm:$0xff]
      %v3269 = vld [vmem:[#allocation3 + $0x128] sm:$0xff]
      %v3270 = vld [vmem:[#allocation3 + $0x130] sm:$0x3]
      %v3271 = vld [vmem:[#allocation3 + $0x138] sm:$0xff]
      %v3272 = vld [vmem:[#allocation3 + $0x140] sm:$0xff]
      %v3273 = vld [vmem:[#allocation3 + $0x148] sm:$0x3]
      %v3274 = vld [vmem:[#allocation3 + $0x150] sm:$0xff]
      %v3275 = vld [vmem:[#allocation3 + $0x158] sm:$0xff]
      %v3276 = vld [vmem:[#allocation3 + $0x160] sm:$0x3]
      %v3277 = vld [vmem:[#allocation3 + $0x168] sm:$0xff]
      %v3278 = vld [vmem:[#allocation3 + $0x170] sm:$0xff]
      %v3279 = vld [vmem:[#allocation3 + $0x178] sm:$0x3]
      %v3280 = vld [vmem:[#allocation3 + $0x180] sm:$0xff]
      %v3281 = vld [vmem:[#allocation3 + $0x188] sm:$0xff]
      %v3282 = vld [vmem:[#allocation3 + $0x190] sm:$0x3]
      %v3283 = vld [vmem:[#allocation3 + $0x198] sm:$0xff]
      %v3284 = vld [vmem:[#allocation3 + $0x1a0] sm:$0xff]
      %v3285 = vld [vmem:[#allocation3 + $0x1a8] sm:$0x3]
      %v3286 = vpack.c.bf16 %v3233, %v3232
      %v3287 = vpack.c.bf16 %v3236, %v3235
      %v3288 = vpack.c.bf16 %v3239, %v3238
      %v3289 = vpack.c.bf16 %v3242, %v3241
      %v3290 = vpack.c.bf16 %v3245, %v3244
      %v3291 = vpack.c.bf16 %v3248, %v3247
      %v3292 = vpack.c.bf16 %v3251, %v3250
      %v3293 = vpack.c.bf16 %v3254, %v3253
      %v3294 = vpack.c.bf16 %v3257, %v3256
      %v3295 = vpack.c.bf16 %v3260, %v3259
      %v3296 = vpack.c.bf16 %v3263, %v3262
      %v3297 = vpack.c.bf16 %v3266, %v3265
      %v3298 = vpack.c.bf16 %v3269, %v3268
      %v3299 = vpack.c.bf16 %v3272, %v3271
      %v3300 = vpack.c.bf16 %v3275, %v3274
      %v3301 = vpack.c.bf16 %v3278, %v3277
      %v3302 = vpack.c.bf16 %v3281, %v3280
      %v3303 = vpack.c.bf16 %v3284, %v3283
      %v3304 = vpack.c.bf16 %v3234, %v3234
      %v3305 = vpack.c.bf16 %v3237, %v3237
      %v3306 = vpack.c.bf16 %v3240, %v3240
      %v3307 = vpack.c.bf16 %v3243, %v3243
      %v3308 = vpack.c.bf16 %v3246, %v3246
      %v3309 = vpack.c.bf16 %v3249, %v3249
      %v3310 = vpack.c.bf16 %v3252, %v3252
      %v3311 = vpack.c.bf16 %v3255, %v3255
      %v3312 = vpack.c.bf16 %v3258, %v3258
      %v3313 = vpack.c.bf16 %v3261, %v3261
      %v3314 = vpack.c.bf16 %v3264, %v3264
      %v3315 = vpack.c.bf16 %v3267, %v3267
      %v3316 = vpack.c.bf16 %v3270, %v3270
      %v3317 = vpack.c.bf16 %v3273, %v3273
      %v3318 = vpack.c.bf16 %v3276, %v3276
      %v3319 = vpack.c.bf16 %v3279, %v3279
      %v3320 = vpack.c.bf16 %v3282, %v3282
      %v3321 = vpack.c.bf16 %v3285, %v3285
      %v3323 = vshrl.u32 %v3286, 16
      %v3325 = vshll.u32 %v3286, 16
      %v3327 = vrot.slane %v3325, 1
      %v3328 = vor.u32 %v3323, %v3327
      %v3330 = vshll.u32 %v3304, 16
      %v3332 = vrot.slane %v3330, 1
      %v3333 = vsel %vm944, %v3328, %v3332
      %v3335 = vshrl.u32 %v3287, 16
      %v3337 = vshll.u32 %v3287, 16
      %v3339 = vrot.slane %v3337, 1
      %v3340 = vor.u32 %v3335, %v3339
      %v3342 = vshll.u32 %v3305, 16
      %v3344 = vrot.slane %v3342, 1
      %v3345 = vsel %vm944, %v3340, %v3344
      %v3347 = vshrl.u32 %v3288, 16
      %v3349 = vshll.u32 %v3288, 16
      %v3351 = vrot.slane %v3349, 1
      %v3352 = vor.u32 %v3347, %v3351
      %v3354 = vshll.u32 %v3306, 16
      %v3356 = vrot.slane %v3354, 1
      %v3357 = vsel %vm944, %v3352, %v3356
      %v3359 = vshrl.u32 %v3289, 16
      %v3361 = vshll.u32 %v3289, 16
      %v3363 = vrot.slane %v3361, 1
      %v3364 = vor.u32 %v3359, %v3363
      %v3366 = vshll.u32 %v3307, 16
      %v3368 = vrot.slane %v3366, 1
      %v3369 = vsel %vm944, %v3364, %v3368
      %v3371 = vshrl.u32 %v3290, 16
      %v3373 = vshll.u32 %v3290, 16
      %v3375 = vrot.slane %v3373, 1
      %v3376 = vor.u32 %v3371, %v3375
      %v3378 = vshll.u32 %v3308, 16
      %v3380 = vrot.slane %v3378, 1
      %v3381 = vsel %vm944, %v3376, %v3380
      %v3383 = vshrl.u32 %v3291, 16
      %v3385 = vshll.u32 %v3291, 16
      %v3387 = vrot.slane %v3385, 1
      %v3388 = vor.u32 %v3383, %v3387
      %v3390 = vshll.u32 %v3309, 16
      %v3392 = vrot.slane %v3390, 1
      %v3393 = vsel %vm944, %v3388, %v3392
      %v3395 = vshrl.u32 %v3292, 16
      %v3397 = vshll.u32 %v3292, 16
      %v3399 = vrot.slane %v3397, 1
      %v3400 = vor.u32 %v3395, %v3399
      %v3402 = vshll.u32 %v3310, 16
      %v3404 = vrot.slane %v3402, 1
      %v3405 = vsel %vm944, %v3400, %v3404
      %v3407 = vshrl.u32 %v3293, 16
      %v3409 = vshll.u32 %v3293, 16
      %v3411 = vrot.slane %v3409, 1
      %v3412 = vor.u32 %v3407, %v3411
      %v3414 = vshll.u32 %v3311, 16
      %v3416 = vrot.slane %v3414, 1
      %v3417 = vsel %vm944, %v3412, %v3416
      %v3419 = vshrl.u32 %v3294, 16
      %v3421 = vshll.u32 %v3294, 16
      %v3423 = vrot.slane %v3421, 1
      %v3424 = vor.u32 %v3419, %v3423
      %v3426 = vshll.u32 %v3312, 16
      %v3428 = vrot.slane %v3426, 1
      %v3429 = vsel %vm944, %v3424, %v3428
      %v3431 = vshrl.u32 %v3295, 16
      %v3433 = vshll.u32 %v3295, 16
      %v3435 = vrot.slane %v3433, 1
      %v3436 = vor.u32 %v3431, %v3435
      %v3438 = vshll.u32 %v3313, 16
      %v3440 = vrot.slane %v3438, 1
      %v3441 = vsel %vm944, %v3436, %v3440
      %v3443 = vshrl.u32 %v3296, 16
      %v3445 = vshll.u32 %v3296, 16
      %v3447 = vrot.slane %v3445, 1
      %v3448 = vor.u32 %v3443, %v3447
      %v3450 = vshll.u32 %v3314, 16
      %v3452 = vrot.slane %v3450, 1
      %v3453 = vsel %vm944, %v3448, %v3452
      %v3455 = vshrl.u32 %v3297, 16
      %v3457 = vshll.u32 %v3297, 16
      %v3459 = vrot.slane %v3457, 1
      %v3460 = vor.u32 %v3455, %v3459
      %v3462 = vshll.u32 %v3315, 16
      %v3464 = vrot.slane %v3462, 1
      %v3465 = vsel %vm944, %v3460, %v3464
      %v3467 = vshrl.u32 %v3298, 16
      %v3469 = vshll.u32 %v3298, 16
      %v3471 = vrot.slane %v3469, 1
      %v3472 = vor.u32 %v3467, %v3471
      %v3474 = vshll.u32 %v3316, 16
      %v3476 = vrot.slane %v3474, 1
      %v3477 = vsel %vm944, %v3472, %v3476
      %v3479 = vshrl.u32 %v3299, 16
      %v3481 = vshll.u32 %v3299, 16
      %v3483 = vrot.slane %v3481, 1
      %v3484 = vor.u32 %v3479, %v3483
      %v3486 = vshll.u32 %v3317, 16
      %v3488 = vrot.slane %v3486, 1
      %v3489 = vsel %vm944, %v3484, %v3488
      %v3491 = vshrl.u32 %v3300, 16
      %v3493 = vshll.u32 %v3300, 16
      %v3495 = vrot.slane %v3493, 1
      %v3496 = vor.u32 %v3491, %v3495
      %v3498 = vshll.u32 %v3318, 16
      %v3500 = vrot.slane %v3498, 1
      %v3501 = vsel %vm944, %v3496, %v3500
      %v3503 = vshrl.u32 %v3301, 16
      %v3505 = vshll.u32 %v3301, 16
      %v3507 = vrot.slane %v3505, 1
      %v3508 = vor.u32 %v3503, %v3507
      %v3510 = vshll.u32 %v3319, 16
      %v3512 = vrot.slane %v3510, 1
      %v3513 = vsel %vm944, %v3508, %v3512
      %v3515 = vshrl.u32 %v3302, 16
      %v3517 = vshll.u32 %v3302, 16
      %v3519 = vrot.slane %v3517, 1
      %v3520 = vor.u32 %v3515, %v3519
      %v3522 = vshll.u32 %v3320, 16
      %v3524 = vrot.slane %v3522, 1
      %v3525 = vsel %vm944, %v3520, %v3524
      %v3527 = vshrl.u32 %v3303, 16
      %v3529 = vshll.u32 %v3303, 16
      %v3531 = vrot.slane %v3529, 1
      %v3532 = vor.u32 %v3527, %v3531
      %v3534 = vshll.u32 %v3321, 16
      %v3536 = vrot.slane %v3534, 1
      %v3537 = vsel %vm944, %v3532, %v3536
      %v3592 = vrot.slane %v3286, 1
      %v3593 = vrot.slane %v3304, 1
      %v3594 = vsel %vm1245, %v3592, %v3593
      %v3595 = vrot.slane %v3287, 1
      %v3596 = vrot.slane %v3305, 1
      %v3597 = vsel %vm1245, %v3595, %v3596
      %v3598 = vrot.slane %v3288, 1
      %v3599 = vrot.slane %v3306, 1
      %v3600 = vsel %vm1245, %v3598, %v3599
      %v3601 = vrot.slane %v3289, 1
      %v3602 = vrot.slane %v3307, 1
      %v3603 = vsel %vm1245, %v3601, %v3602
      %v3604 = vrot.slane %v3290, 1
      %v3605 = vrot.slane %v3308, 1
      %v3606 = vsel %vm1245, %v3604, %v3605
      %v3607 = vrot.slane %v3291, 1
      %v3608 = vrot.slane %v3309, 1
      %v3609 = vsel %vm1245, %v3607, %v3608
      %v3610 = vrot.slane %v3292, 1
      %v3611 = vrot.slane %v3310, 1
      %v3612 = vsel %vm1245, %v3610, %v3611
      %v3613 = vrot.slane %v3293, 1
      %v3614 = vrot.slane %v3311, 1
      %v3615 = vsel %vm1245, %v3613, %v3614
      %v3616 = vrot.slane %v3294, 1
      %v3617 = vrot.slane %v3312, 1
      %v3618 = vsel %vm1245, %v3616, %v3617
      %v3619 = vrot.slane %v3295, 1
      %v3620 = vrot.slane %v3313, 1
      %v3621 = vsel %vm1245, %v3619, %v3620
      %v3622 = vrot.slane %v3296, 1
      %v3623 = vrot.slane %v3314, 1
      %v3624 = vsel %vm1245, %v3622, %v3623
      %v3625 = vrot.slane %v3297, 1
      %v3626 = vrot.slane %v3315, 1
      %v3627 = vsel %vm1245, %v3625, %v3626
      %v3628 = vrot.slane %v3298, 1
      %v3629 = vrot.slane %v3316, 1
      %v3630 = vsel %vm1245, %v3628, %v3629
      %v3631 = vrot.slane %v3299, 1
      %v3632 = vrot.slane %v3317, 1
      %v3633 = vsel %vm1245, %v3631, %v3632
      %v3634 = vrot.slane %v3300, 1
      %v3635 = vrot.slane %v3318, 1
      %v3636 = vsel %vm1245, %v3634, %v3635
      %v3637 = vrot.slane %v3301, 1
      %v3638 = vrot.slane %v3319, 1
      %v3639 = vsel %vm1245, %v3637, %v3638
      %v3640 = vrot.slane %v3302, 1
      %v3641 = vrot.slane %v3320, 1
      %v3642 = vsel %vm1245, %v3640, %v3641
      %v3643 = vrot.slane %v3303, 1
      %v3644 = vrot.slane %v3321, 1
      %v3645 = vsel %vm1245, %v3643, %v3644
      %v3664 = vld [vmem:[%s3] sm:$0xf]
      %v3665 = vld [vmem:[%s3 + $0x4] sm:$0xf]
      %v3666 = vld [vmem:[%s3 + $0x8] sm:$0xf]
      %v3667 = vld [vmem:[%s3 + $0xc] sm:$0xf]
      %v3668 = vld [vmem:[%s3 + $0x10] sm:$0xf]
      %v3669 = vld [vmem:[%s3 + $0x14] sm:$0xf]
      %v3670 = vld [vmem:[%s3 + $0x18] sm:$0xf]
      %v3671 = vld [vmem:[%s3 + $0x1c] sm:$0xf]
      %v3672 = vld [vmem:[%s3 + $0x20] sm:$0xf]
      %v3673 = vld [vmem:[%s3 + $0x24] sm:$0xf]
      %v3674 = vld [vmem:[%s3 + $0x28] sm:$0xf]
      %v3675 = vld [vmem:[%s3 + $0x2c] sm:$0xf]
      %v3676 = vld [vmem:[%s3 + $0x30] sm:$0xf]
      %v3677 = vld [vmem:[%s3 + $0x34] sm:$0xf]
      %v3678 = vld [vmem:[%s3 + $0x38] sm:$0xf]
      %v3679 = vld [vmem:[%s3 + $0x3c] sm:$0xf]
      %v3680 = vld [vmem:[%s3 + $0x40] sm:$0xf]
      %v3681 = vld [vmem:[%s3 + $0x44] sm:$0xf]
      %v3682 = vld [vmem:[%s3 + $0x48] sm:$0xf]
      %v3683 = vld [vmem:[%s3 + $0x4c] sm:$0xf]
      %v3684 = vld [vmem:[%s3 + $0x50] sm:$0xf]
      %v3685 = vld [vmem:[%s3 + $0x54] sm:$0xf]
      %v3686 = vld [vmem:[%s3 + $0x58] sm:$0xf]
      %v3687 = vld [vmem:[%s3 + $0x5c] sm:$0xf]
      %v3688 = vld [vmem:[%s3 + $0x60] sm:$0xf]
      %v3689 = vld [vmem:[%s3 + $0x64] sm:$0xf]
      %v3690 = vld [vmem:[%s3 + $0x68] sm:$0xf]
      %v3691 = vld [vmem:[%s3 + $0x6c] sm:$0xf]
      %v3692 = vld [vmem:[%s3 + $0x70] sm:$0xf]
      %v3693 = vld [vmem:[%s3 + $0x74] sm:$0xf]
      %v3694 = vld [vmem:[%s3 + $0x78] sm:$0xf]
      %v3695 = vld [vmem:[%s3 + $0x7c] sm:$0xf]
      %v3696 = vld [vmem:[%s3 + $0x80] sm:$0xf]
      %v3697 = vld [vmem:[%s3 + $0x84] sm:$0xf]
      %v3698 = vld [vmem:[%s3 + $0x88] sm:$0xf]
      %v3699 = vld [vmem:[%s3 + $0x8c] sm:$0xf]
      %v3700 = vld [vmem:[%s3 + $0x90] sm:$0xf]
      %v3701 = vld [vmem:[%s3 + $0x94] sm:$0xf]
      %v3702 = vld [vmem:[%s3 + $0x98] sm:$0xf]
      %v3703 = vld [vmem:[%s3 + $0x9c] sm:$0xf]
      %v3704 = vld [vmem:[%s3 + $0xa0] sm:$0xf]
      %v3705 = vld [vmem:[%s3 + $0xa4] sm:$0xf]
      %v3706 = vld [vmem:[%s3 + $0xa8] sm:$0xf]
      %v3707 = vld [vmem:[%s3 + $0xac] sm:$0xf]
      %v3708 = vld [vmem:[%s3 + $0xb0] sm:$0xf]
      %v3709 = vld [vmem:[%s3 + $0xb4] sm:$0xf]
      %v3710 = vld [vmem:[%s3 + $0xb8] sm:$0xf]
      %v3711 = vld [vmem:[%s3 + $0xbc] sm:$0xf]
      %v3712 = vld [vmem:[%s3 + $0xc0] sm:$0xf]
      %v3713 = vld [vmem:[%s3 + $0xc4] sm:$0xf]
      %v3714 = vld [vmem:[%s3 + $0xc8] sm:$0xf]
      %v3715 = vld [vmem:[%s3 + $0xcc] sm:$0xf]
      %v3716 = vld [vmem:[%s3 + $0xd0] sm:$0xf]
      %v3717 = vld [vmem:[%s3 + $0xd4] sm:$0xf]
      %v3718 = vld [vmem:[%s3 + $0xd8] sm:$0xf]
      %v3719 = vld [vmem:[%s3 + $0xdc] sm:$0xf]
      %v3720 = vld [vmem:[%s3 + $0xe0] sm:$0xf]
      %v3721 = vld [vmem:[%s3 + $0xe4] sm:$0xf]
      %v3722 = vld [vmem:[%s3 + $0xe8] sm:$0xf]
      %v3723 = vld [vmem:[%s3 + $0xec] sm:$0xf]
      %v3724 = vld [vmem:[%s3 + $0xf0] sm:$0xf]
      %v3725 = vld [vmem:[%s3 + $0xf4] sm:$0xf]
      %v3726 = vld [vmem:[%s3 + $0xf8] sm:$0xf]
      %v3727 = vld [vmem:[%s3 + $0xfc] sm:$0xf]
      %v3728 = vld [vmem:[%s3 + $0x100] sm:$0xf]
      %v3729 = vld [vmem:[%s3 + $0x104] sm:$0xf]
      %v3730 = vld [vmem:[%s3 + $0x108] sm:$0xf]
      %v3731 = vld [vmem:[%s3 + $0x10c] sm:$0xf]
      %v3732 = vld [vmem:[%s3 + $0x110] sm:$0xf]
      %v3733 = vld [vmem:[%s3 + $0x114] sm:$0xf]
      %v3734 = vld [vmem:[%s3 + $0x118] sm:$0xf]
      %v3735 = vld [vmem:[%s3 + $0x11c] sm:$0xf]
      %v3736 = vld [vmem:[%s3 + $0x120] sm:$0xf]
      %v3737 = vld [vmem:[%s3 + $0x124] sm:$0xf]
      %v3738 = vld [vmem:[%s3 + $0x128] sm:$0xf]
      %v3739 = vld [vmem:[%s3 + $0x12c] sm:$0xf]
      %v3740 = vld [vmem:[%s3 + $0x130] sm:$0xf]
      %v3741 = vld [vmem:[%s3 + $0x134] sm:$0xf]
      %v3742 = vld [vmem:[%s3 + $0x138] sm:$0xf]
      %v3743 = vld [vmem:[%s3 + $0x13c] sm:$0xf]
      %v3744 = vld [vmem:[%s3 + $0x140] sm:$0xf]
      %v3745 = vld [vmem:[%s3 + $0x144] sm:$0xf]
      %v3746 = vld [vmem:[%s3 + $0x148] sm:$0xf]
      %v3747 = vld [vmem:[%s3 + $0x14c] sm:$0xf]
      %v3748 = vld [vmem:[%s3 + $0x150] sm:$0xf]
      %v3749 = vld [vmem:[%s3 + $0x154] sm:$0xf]
      %v3750 = vld [vmem:[%s3 + $0x158] sm:$0xf]
      %v3751 = vld [vmem:[%s3 + $0x15c] sm:$0xf]
      %v3752 = vld [vmem:[%s3 + $0x160] sm:$0xf]
      %v3753 = vld [vmem:[%s3 + $0x164] sm:$0xf]
      %v3754 = vld [vmem:[%s3 + $0x168] sm:$0xf]
      %v3755 = vld [vmem:[%s3 + $0x16c] sm:$0xf]
      %v3756 = vld [vmem:[%s3 + $0x170] sm:$0xf]
      %v3757 = vld [vmem:[%s3 + $0x174] sm:$0xf]
      %v3758 = vld [vmem:[%s3 + $0x178] sm:$0xf]
      %v3759 = vld [vmem:[%s3 + $0x17c] sm:$0xf]
      %v3808 = vunpack.c.l.b16 %v3712
      %v3809 = vunpack.c.l.b16 %v3713
      %v3810 = vunpack.c.l.b16 %v3714
      %v3811 = vunpack.c.l.b16 %v3715
      %v3812 = vunpack.c.l.b16 %v3716
      %v3813 = vunpack.c.l.b16 %v3717
      %v3814 = vunpack.c.l.b16 %v3718
      %v3815 = vunpack.c.l.b16 %v3719
      %v3816 = vunpack.c.l.b16 %v3720
      %v3817 = vunpack.c.l.b16 %v3721
      %v3818 = vunpack.c.l.b16 %v3722
      %v3819 = vunpack.c.l.b16 %v3723
      %v3820 = vunpack.c.l.b16 %v3724
      %v3821 = vunpack.c.l.b16 %v3725
      %v3822 = vunpack.c.l.b16 %v3726
      %v3823 = vunpack.c.l.b16 %v3727
      %v3824 = vunpack.c.l.b16 %v3728
      %v3825 = vunpack.c.l.b16 %v3729
      %v3826 = vunpack.c.l.b16 %v3730
      %v3827 = vunpack.c.l.b16 %v3731
      %v3828 = vunpack.c.l.b16 %v3732
      %v3829 = vunpack.c.l.b16 %v3733
      %v3830 = vunpack.c.l.b16 %v3734
      %v3831 = vunpack.c.l.b16 %v3735
      %v3832 = vunpack.c.l.b16 %v3736
      %v3833 = vunpack.c.l.b16 %v3737
      %v3834 = vunpack.c.l.b16 %v3738
      %v3835 = vunpack.c.l.b16 %v3739
      %v3836 = vunpack.c.l.b16 %v3740
      %v3837 = vunpack.c.l.b16 %v3741
      %v3838 = vunpack.c.l.b16 %v3742
      %v3839 = vunpack.c.l.b16 %v3743
      %v3840 = vunpack.c.l.b16 %v3744
      %v3841 = vunpack.c.l.b16 %v3745
      %v3842 = vunpack.c.l.b16 %v3746
      %v3843 = vunpack.c.l.b16 %v3747
      %v3844 = vunpack.c.l.b16 %v3748
      %v3845 = vunpack.c.l.b16 %v3749
      %v3846 = vunpack.c.l.b16 %v3750
      %v3847 = vunpack.c.l.b16 %v3751
      %v3848 = vunpack.c.l.b16 %v3752
      %v3849 = vunpack.c.l.b16 %v3753
      %v3850 = vunpack.c.l.b16 %v3754
      %v3851 = vunpack.c.l.b16 %v3755
      %v3852 = vunpack.c.l.b16 %v3756
      %v3853 = vunpack.c.l.b16 %v3757
      %v3854 = vunpack.c.l.b16 %v3758
      %v3855 = vunpack.c.l.b16 %v3759
      %v3856 = vpack.c.b16 %v3809, %v3808
      %v3857 = vpack.c.b16 %v3811, %v3810
      %v3858 = vpack.c.b16 %v3813, %v3812
      %v3859 = vpack.c.b16 %v3815, %v3814
      %v3860 = vpack.c.b16 %v3817, %v3816
      %v3861 = vpack.c.b16 %v3819, %v3818
      %v3862 = vpack.c.b16 %v3821, %v3820
      %v3863 = vpack.c.b16 %v3823, %v3822
      %v3864 = vpack.c.b16 %v3825, %v3824
      %v3865 = vpack.c.b16 %v3827, %v3826
      %v3866 = vpack.c.b16 %v3829, %v3828
      %v3867 = vpack.c.b16 %v3831, %v3830
      %v3868 = vpack.c.b16 %v3833, %v3832
      %v3869 = vpack.c.b16 %v3835, %v3834
      %v3870 = vpack.c.b16 %v3837, %v3836
      %v3871 = vpack.c.b16 %v3839, %v3838
      %v3872 = vpack.c.b16 %v3841, %v3840
      %v3873 = vpack.c.b16 %v3843, %v3842
      %v3874 = vpack.c.b16 %v3845, %v3844
      %v3875 = vpack.c.b16 %v3847, %v3846
      %v3876 = vpack.c.b16 %v3849, %v3848
      %v3877 = vpack.c.b16 %v3851, %v3850
      %v3878 = vpack.c.b16 %v3853, %v3852
      %v3879 = vpack.c.b16 %v3855, %v3854
      %3904 = vmatprep.subr.bf16.mxu0 0
      %3905 = vmatpush1.bf16.msra.mxu0 %v3863
      %3906 = vmatprep.subr.bf16.mxu0 0
      %3907 = vmatpush1.bf16.msra.mxu0 %v3862
      %3908 = vmatprep.subr.bf16.mxu0 0
      %3909 = vmatpush1.bf16.msra.mxu0 %v3861
      %3910 = vmatprep.subr.bf16.mxu0 0
      %3911 = vmatpush1.bf16.msra.mxu0 %v3860
      %3912 = vmatprep.subr.bf16.mxu0 0
      %3913 = vmatpush1.bf16.msra.mxu0 %v3859
      %3914 = vmatprep.subr.bf16.mxu0 0
      %3915 = vmatpush1.bf16.msra.mxu0 %v3858
      %3916 = vmatprep.subr.bf16.mxu0 0
      %3917 = vmatpush1.bf16.msra.mxu0 %v3857
      %3918 = vmatprep.subr.bf16.mxu0 0
      %3919 = vmatpush1.bf16.msra.mxu0 %v3856
      %3920 = vmatprep.subr.bf16.mxu0 0
      %3921 = vmatpush2.bf16.msra.mxu0 %v3871
      %3922 = vmatprep.subr.bf16.mxu0 0
      %3923 = vmatpush2.bf16.msra.mxu0 %v3870
      %3924 = vmatprep.subr.bf16.mxu0 0
      %3925 = vmatpush2.bf16.msra.mxu0 %v3869
      %3926 = vmatprep.subr.bf16.mxu0 0
      %3927 = vmatpush2.bf16.msra.mxu0 %v3868
      %3928 = vmatprep.subr.bf16.mxu0 0
      %3929 = vmatpush2.bf16.msra.mxu0 %v3867
      %3930 = vmatprep.subr.bf16.mxu0 0
      %3931 = vmatpush2.bf16.msra.mxu0 %v3866
      %3932 = vmatprep.subr.bf16.mxu0 0
      %3933 = vmatpush2.bf16.msra.mxu0 %v3865
      %3934 = vmatprep.subr.bf16.mxu0 0
      %3935 = vmatpush2.bf16.msra.mxu0 %v3864
      %3936 = vmatprep.mubr.bf16.mxu0 %v3345
      %3937 = vmatmul.mubr.bf16.gmra.mxu0 %v3287
      %v3938 = vpop.f32.mrf.mxu0
      %v3939 = vadd.f32 0.0, %v3938
      %v3940 = vpop.f32.mrf.mxu0
      %v3941 = vpop.f32.mrf.mxu0
      %v3942 = vadd.f32 0.0, %v3941
      %v3943 = vpop.f32.mrf.mxu0
      %3944 = vmatprep.mubr.bf16.mxu0 %v3357
      %3945 = vmatmul.mubr.bf16.gmra.mxu0 %v3288
      %v3946 = vpop.f32.mrf.mxu0
      %v3947 = vadd.f32 0.0, %v3946
      %v3948 = vpop.f32.mrf.mxu0
      %v3949 = vpop.f32.mrf.mxu0
      %v3950 = vadd.f32 0.0, %v3949
      %v3951 = vpop.f32.mrf.mxu0
      %3952 = vmatprep.mubr.bf16.mxu0 %v3369
      %3953 = vmatmul.mubr.bf16.gmra.mxu0 %v3289
      %v3954 = vpop.f32.mrf.mxu0
      %v3955 = vadd.f32 0.0, %v3954
      %v3956 = vpop.f32.mrf.mxu0
      %v3957 = vpop.f32.mrf.mxu0
      %v3958 = vadd.f32 0.0, %v3957
      %v3959 = vpop.f32.mrf.mxu0
      %3960 = vmatprep.mubr.bf16.mxu0 %v3381
      %3961 = vmatmul.mubr.bf16.gmra.mxu0 %v3290
      %v3962 = vpop.f32.mrf.mxu0
      %v3963 = vadd.f32 0.0, %v3962
      %v3964 = vpop.f32.mrf.mxu0
      %v3965 = vpop.f32.mrf.mxu0
      %v3966 = vadd.f32 0.0, %v3965
      %v3967 = vpop.f32.mrf.mxu0
      %3968 = vmatprep.mubr.bf16.mxu0 %v3393
      %3969 = vmatmul.mubr.bf16.gmra.mxu0 %v3291
      %v3970 = vpop.f32.mrf.mxu0
      %v3971 = vadd.f32 0.0, %v3970
      %v3972 = vpop.f32.mrf.mxu0
      %v3973 = vpop.f32.mrf.mxu0
      %v3974 = vadd.f32 0.0, %v3973
      %v3975 = vpop.f32.mrf.mxu0
      %3976 = vmatprep.mubr.bf16.mxu0 %v3405
      %3977 = vmatmul.mubr.bf16.gmra.mxu0 %v3292
      %v3978 = vpop.f32.mrf.mxu0
      %v3979 = vadd.f32 0.0, %v3978
      %v3980 = vpop.f32.mrf.mxu0
      %v3981 = vpop.f32.mrf.mxu0
      %v3982 = vadd.f32 0.0, %v3981
      %v3983 = vpop.f32.mrf.mxu0
      %3984 = vmatprep.mubr.bf16.mxu0 %v3417
      %3985 = vmatmul.mubr.bf16.gmra.mxu0 %v3293
      %v3986 = vpop.f32.mrf.mxu0
      %v3987 = vadd.f32 0.0, %v3986
      %v3988 = vpop.f32.mrf.mxu0
      %v3989 = vpop.f32.mrf.mxu0
      %v3990 = vadd.f32 0.0, %v3989
      %v3991 = vpop.f32.mrf.mxu0
      %3992 = vmatprep.mubr.bf16.mxu0 %v3429
      %3993 = vmatmul.mubr.bf16.gmra.mxu0 %v3294
      %v3994 = vpop.f32.mrf.mxu0
      %v3995 = vadd.f32 0.0, %v3994
      %v3996 = vpop.f32.mrf.mxu0
      %v3997 = vpop.f32.mrf.mxu0
      %v3998 = vadd.f32 0.0, %v3997
      %v3999 = vpop.f32.mrf.mxu0
      %4000 = vmatprep.mubr.bf16.mxu0 %v3441
      %4001 = vmatmul.mubr.bf16.gmra.mxu0 %v3295
      %v4002 = vpop.f32.mrf.mxu0
      %v4003 = vadd.f32 0.0, %v4002
      %v4004 = vpop.f32.mrf.mxu0
      %v4005 = vpop.f32.mrf.mxu0
      %v4006 = vadd.f32 0.0, %v4005
      %v4007 = vpop.f32.mrf.mxu0
      %4008 = vmatprep.mubr.bf16.mxu0 %v3453
      %4009 = vmatmul.mubr.bf16.gmra.mxu0 %v3296
      %v4010 = vpop.f32.mrf.mxu0
      %v4011 = vadd.f32 0.0, %v4010
      %v4012 = vpop.f32.mrf.mxu0
      %v4013 = vpop.f32.mrf.mxu0
      %v4014 = vadd.f32 0.0, %v4013
      %v4015 = vpop.f32.mrf.mxu0
      %4016 = vmatprep.mubr.bf16.mxu0 %v3465
      %4017 = vmatmul.mubr.bf16.gmra.mxu0 %v3297
      %v4018 = vpop.f32.mrf.mxu0
      %v4019 = vadd.f32 0.0, %v4018
      %v4020 = vpop.f32.mrf.mxu0
      %v4021 = vpop.f32.mrf.mxu0
      %v4022 = vadd.f32 0.0, %v4021
      %v4023 = vpop.f32.mrf.mxu0
      %4024 = vmatprep.mubr.bf16.mxu0 %v3477
      %4025 = vmatmul.mubr.bf16.gmra.mxu0 %v3298
      %v4026 = vpop.f32.mrf.mxu0
      %v4027 = vadd.f32 0.0, %v4026
      %v4028 = vpop.f32.mrf.mxu0
      %v4029 = vpop.f32.mrf.mxu0
      %v4030 = vadd.f32 0.0, %v4029
      %v4031 = vpop.f32.mrf.mxu0
      %4032 = vmatprep.mubr.bf16.mxu0 %v3489
      %4033 = vmatmul.mubr.bf16.gmra.mxu0 %v3299
      %v4034 = vpop.f32.mrf.mxu0
      %v4035 = vadd.f32 0.0, %v4034
      %v4036 = vpop.f32.mrf.mxu0
      %v4037 = vpop.f32.mrf.mxu0
      %v4038 = vadd.f32 0.0, %v4037
      %v4039 = vpop.f32.mrf.mxu0
      %4040 = vmatprep.mubr.bf16.mxu0 %v3501
      %4041 = vmatmul.mubr.bf16.gmra.mxu0 %v3300
      %v4042 = vpop.f32.mrf.mxu0
      %v4043 = vadd.f32 0.0, %v4042
      %v4044 = vpop.f32.mrf.mxu0
      %v4045 = vpop.f32.mrf.mxu0
      %v4046 = vadd.f32 0.0, %v4045
      %v4047 = vpop.f32.mrf.mxu0
      %4048 = vmatprep.mubr.bf16.mxu0 %v3513
      %4049 = vmatmul.mubr.bf16.gmra.mxu0 %v3301
      %v4050 = vpop.f32.mrf.mxu0
      %v4051 = vadd.f32 0.0, %v4050
      %v4052 = vpop.f32.mrf.mxu0
      %v4053 = vpop.f32.mrf.mxu0
      %v4054 = vadd.f32 0.0, %v4053
      %v4055 = vpop.f32.mrf.mxu0
      %4056 = vmatprep.mubr.bf16.mxu0 %v3525
      %4057 = vmatmul.mubr.bf16.gmra.mxu0 %v3302
      %v4058 = vpop.f32.mrf.mxu0
      %v4059 = vadd.f32 0.0, %v4058
      %v4060 = vpop.f32.mrf.mxu0
      %v4061 = vpop.f32.mrf.mxu0
      %v4062 = vadd.f32 0.0, %v4061
      %v4063 = vpop.f32.mrf.mxu0
      %4064 = vdwg.mxu0
      %4065 = vmatprep.subr.bf16.mxu0 0
      %4066 = vmatpush1.bf16.msra.mxu0 %v3879
      %4067 = vmatprep.subr.bf16.mxu0 0
      %4068 = vmatpush1.bf16.msra.mxu0 %v3878
      %4069 = vmatprep.subr.bf16.mxu0 0
      %4070 = vmatpush1.bf16.msra.mxu0 %v3877
      %4071 = vmatprep.subr.bf16.mxu0 0
      %4072 = vmatpush1.bf16.msra.mxu0 %v3876
      %4073 = vmatprep.subr.bf16.mxu0 0
      %4074 = vmatpush1.bf16.msra.mxu0 %v3875
      %4075 = vmatprep.subr.bf16.mxu0 0
      %4076 = vmatpush1.bf16.msra.mxu0 %v3874
      %4077 = vmatprep.subr.bf16.mxu0 0
      %4078 = vmatpush1.bf16.msra.mxu0 %v3873
      %4079 = vmatprep.subr.bf16.mxu0 0
      %4080 = vmatpush1.bf16.msra.mxu0 %v3872
      %4081 = vmatprep.subr.bf16.mxu0 0
      %4082 = vmatpush2.bf16.msra.mxu0 0
      %4083 = vmatprep.subr.bf16.mxu0 0
      %4084 = vmatpush2.bf16.msra.mxu0 0
      %4085 = vmatprep.subr.bf16.mxu0 0
      %4086 = vmatpush2.bf16.msra.mxu0 0
      %4087 = vmatprep.subr.bf16.mxu0 0
      %4088 = vmatpush2.bf16.msra.mxu0 0
      %4089 = vmatprep.subr.bf16.mxu0 0
      %4090 = vmatpush2.bf16.msra.mxu0 0
      %4091 = vmatprep.subr.bf16.mxu0 0
      %4092 = vmatpush2.bf16.msra.mxu0 0
      %4093 = vmatprep.subr.bf16.mxu0 0
      %4094 = vmatpush2.bf16.msra.mxu0 0
      %4095 = vmatprep.subr.bf16.mxu0 0
      %4096 = vmatpush2.bf16.msra.mxu0 0
      %4097 = vmatprep.mubr.bf16.mxu0 0
      %4098 = vmatmul.mubr.bf16.gmra.mxu0 %v3597
      %v4099 = vpop.f32.mrf.mxu0
      %v4100 = vadd.f32 %v3939, %v4099
      %v4101 = vpop.f32.mrf.mxu0
      %v4102 = vpop.f32.mrf.mxu0
      %v4103 = vadd.f32 %v3942, %v4102
      %v4104 = vpop.f32.mrf.mxu0
      %4105 = vmatprep.mubr.bf16.mxu0 0
      %4106 = vmatmul.mubr.bf16.gmra.mxu0 %v3600
      %v4107 = vpop.f32.mrf.mxu0
      %v4108 = vadd.f32 %v3947, %v4107
      %v4109 = vpop.f32.mrf.mxu0
      %v4110 = vpop.f32.mrf.mxu0
      %v4111 = vadd.f32 %v3950, %v4110
      %v4112 = vpop.f32.mrf.mxu0
      %4113 = vmatprep.mubr.bf16.mxu0 0
      %4114 = vmatmul.mubr.bf16.gmra.mxu0 %v3603
      %v4115 = vpop.f32.mrf.mxu0
      %v4116 = vadd.f32 %v3955, %v4115
      %v4117 = vpop.f32.mrf.mxu0
      %v4118 = vpop.f32.mrf.mxu0
      %v4119 = vadd.f32 %v3958, %v4118
      %v4120 = vpop.f32.mrf.mxu0
      %4121 = vmatprep.mubr.bf16.mxu0 0
      %4122 = vmatmul.mubr.bf16.gmra.mxu0 %v3606
      %v4123 = vpop.f32.mrf.mxu0
      %v4124 = vadd.f32 %v3963, %v4123
      %v4125 = vpop.f32.mrf.mxu0
      %v4126 = vpop.f32.mrf.mxu0
      %v4127 = vadd.f32 %v3966, %v4126
      %v4128 = vpop.f32.mrf.mxu0
      %4129 = vmatprep.mubr.bf16.mxu0 0
      %4130 = vmatmul.mubr.bf16.gmra.mxu0 %v3609
      %v4131 = vpop.f32.mrf.mxu0
      %v4132 = vadd.f32 %v3971, %v4131
      %v4133 = vpop.f32.mrf.mxu0
      %v4134 = vpop.f32.mrf.mxu0
      %v4135 = vadd.f32 %v3974, %v4134
      %v4136 = vpop.f32.mrf.mxu0
      %4137 = vmatprep.mubr.bf16.mxu0 0
      %4138 = vmatmul.mubr.bf16.gmra.mxu0 %v3612
      %v4139 = vpop.f32.mrf.mxu0
      %v4140 = vadd.f32 %v3979, %v4139
      %v4141 = vpop.f32.mrf.mxu0
      %v4142 = vpop.f32.mrf.mxu0
      %v4143 = vadd.f32 %v3982, %v4142
      %v4144 = vpop.f32.mrf.mxu0
      %4145 = vmatprep.mubr.bf16.mxu0 0
      %4146 = vmatmul.mubr.bf16.gmra.mxu0 %v3615
      %v4147 = vpop.f32.mrf.mxu0
      %v4148 = vadd.f32 %v3987, %v4147
      %v4149 = vpop.f32.mrf.mxu0
      %v4150 = vpop.f32.mrf.mxu0
      %v4151 = vadd.f32 %v3990, %v4150
      %v4152 = vpop.f32.mrf.mxu0
      %4153 = vmatprep.mubr.bf16.mxu0 0
      %4154 = vmatmul.mubr.bf16.gmra.mxu0 %v3618
      %v4155 = vpop.f32.mrf.mxu0
      %v4156 = vadd.f32 %v3995, %v4155
      %v4157 = vpop.f32.mrf.mxu0
      %v4158 = vpop.f32.mrf.mxu0
      %v4159 = vadd.f32 %v3998, %v4158
      %v4160 = vpop.f32.mrf.mxu0
      %4161 = vmatprep.mubr.bf16.mxu0 0
      %4162 = vmatmul.mubr.bf16.gmra.mxu0 %v3621
      %v4163 = vpop.f32.mrf.mxu0
      %v4164 = vadd.f32 %v4003, %v4163
      %v4165 = vpop.f32.mrf.mxu0
      %v4166 = vpop.f32.mrf.mxu0
      %v4167 = vadd.f32 %v4006, %v4166
      %v4168 = vpop.f32.mrf.mxu0
      %4169 = vmatprep.mubr.bf16.mxu0 0
      %4170 = vmatmul.mubr.bf16.gmra.mxu0 %v3624
      %v4171 = vpop.f32.mrf.mxu0
      %v4172 = vadd.f32 %v4011, %v4171
      %v4173 = vpop.f32.mrf.mxu0
      %v4174 = vpop.f32.mrf.mxu0
      %v4175 = vadd.f32 %v4014, %v4174
      %v4176 = vpop.f32.mrf.mxu0
      %4177 = vmatprep.mubr.bf16.mxu0 0
      %4178 = vmatmul.mubr.bf16.gmra.mxu0 %v3627
      %v4179 = vpop.f32.mrf.mxu0
      %v4180 = vadd.f32 %v4019, %v4179
      %v4181 = vpop.f32.mrf.mxu0
      %v4182 = vpop.f32.mrf.mxu0
      %v4183 = vadd.f32 %v4022, %v4182
      %v4184 = vpop.f32.mrf.mxu0
      %4185 = vmatprep.mubr.bf16.mxu0 0
      %4186 = vmatmul.mubr.bf16.gmra.mxu0 %v3630
      %v4187 = vpop.f32.mrf.mxu0
      %v4188 = vadd.f32 %v4027, %v4187
      %v4189 = vpop.f32.mrf.mxu0
      %v4190 = vpop.f32.mrf.mxu0
      %v4191 = vadd.f32 %v4030, %v4190
      %v4192 = vpop.f32.mrf.mxu0
      %4193 = vmatprep.mubr.bf16.mxu0 0
      %4194 = vmatmul.mubr.bf16.gmra.mxu0 %v3633
      %v4195 = vpop.f32.mrf.mxu0
      %v4196 = vadd.f32 %v4035, %v4195
      %v4197 = vpop.f32.mrf.mxu0
      %v4198 = vpop.f32.mrf.mxu0
      %v4199 = vadd.f32 %v4038, %v4198
      %v4200 = vpop.f32.mrf.mxu0
      %4201 = vmatprep.mubr.bf16.mxu0 0
      %4202 = vmatmul.mubr.bf16.gmra.mxu0 %v3636
      %v4203 = vpop.f32.mrf.mxu0
      %v4204 = vadd.f32 %v4043, %v4203
      %v4205 = vpop.f32.mrf.mxu0
      %v4206 = vpop.f32.mrf.mxu0
      %v4207 = vadd.f32 %v4046, %v4206
      %v4208 = vpop.f32.mrf.mxu0
      %4209 = vmatprep.mubr.bf16.mxu0 0
      %4210 = vmatmul.mubr.bf16.gmra.mxu0 %v3639
      %v4211 = vpop.f32.mrf.mxu0
      %v4212 = vadd.f32 %v4051, %v4211
      %v4213 = vpop.f32.mrf.mxu0
      %v4214 = vpop.f32.mrf.mxu0
      %v4215 = vadd.f32 %v4054, %v4214
      %v4216 = vpop.f32.mrf.mxu0
      %4217 = vmatprep.mubr.bf16.mxu0 0
      %4218 = vmatmul.mubr.bf16.gmra.mxu0 %v3642
      %v4219 = vpop.f32.mrf.mxu0
      %v4220 = vadd.f32 %v4059, %v4219
      %v4221 = vpop.f32.mrf.mxu0
      %v4222 = vpop.f32.mrf.mxu0
      %v4223 = vadd.f32 %v4062, %v4222
      %v4224 = vpop.f32.mrf.mxu0
      %4225 = vdwg.mxu0
      %v4274 = vunpack.c.l.b16 %v3664
      %v4275 = vunpack.c.l.b16 %v3665
      %v4276 = vunpack.c.l.b16 %v3666
      %v4277 = vunpack.c.l.b16 %v3667
      %v4278 = vunpack.c.l.b16 %v3668
      %v4279 = vunpack.c.l.b16 %v3669
      %v4280 = vunpack.c.l.b16 %v3670
      %v4281 = vunpack.c.l.b16 %v3671
      %v4282 = vunpack.c.l.b16 %v3672
      %v4283 = vunpack.c.l.b16 %v3673
      %v4284 = vunpack.c.l.b16 %v3674
      %v4285 = vunpack.c.l.b16 %v3675
      %v4286 = vunpack.c.l.b16 %v3676
      %v4287 = vunpack.c.l.b16 %v3677
      %v4288 = vunpack.c.l.b16 %v3678
      %v4289 = vunpack.c.l.b16 %v3679
      %v4290 = vunpack.c.l.b16 %v3680
      %v4291 = vunpack.c.l.b16 %v3681
      %v4292 = vunpack.c.l.b16 %v3682
      %v4293 = vunpack.c.l.b16 %v3683
      %v4294 = vunpack.c.l.b16 %v3684
      %v4295 = vunpack.c.l.b16 %v3685
      %v4296 = vunpack.c.l.b16 %v3686
      %v4297 = vunpack.c.l.b16 %v3687
      %v4298 = vunpack.c.l.b16 %v3688
      %v4299 = vunpack.c.l.b16 %v3689
      %v4300 = vunpack.c.l.b16 %v3690
      %v4301 = vunpack.c.l.b16 %v3691
      %v4302 = vunpack.c.l.b16 %v3692
      %v4303 = vunpack.c.l.b16 %v3693
      %v4304 = vunpack.c.l.b16 %v3694
      %v4305 = vunpack.c.l.b16 %v3695
      %v4306 = vunpack.c.l.b16 %v3696
      %v4307 = vunpack.c.l.b16 %v3697
      %v4308 = vunpack.c.l.b16 %v3698
      %v4309 = vunpack.c.l.b16 %v3699
      %v4310 = vunpack.c.l.b16 %v3700
      %v4311 = vunpack.c.l.b16 %v3701
      %v4312 = vunpack.c.l.b16 %v3702
      %v4313 = vunpack.c.l.b16 %v3703
      %v4314 = vunpack.c.l.b16 %v3704
      %v4315 = vunpack.c.l.b16 %v3705
      %v4316 = vunpack.c.l.b16 %v3706
      %v4317 = vunpack.c.l.b16 %v3707
      %v4318 = vunpack.c.l.b16 %v3708
      %v4319 = vunpack.c.l.b16 %v3709
      %v4320 = vunpack.c.l.b16 %v3710
      %v4321 = vunpack.c.l.b16 %v3711
      %v4322 = vpack.c.b16 %v4275, %v4274
      %v4323 = vpack.c.b16 %v4277, %v4276
      %v4324 = vpack.c.b16 %v4279, %v4278
      %v4325 = vpack.c.b16 %v4281, %v4280
      %v4326 = vpack.c.b16 %v4283, %v4282
      %v4327 = vpack.c.b16 %v4285, %v4284
      %v4328 = vpack.c.b16 %v4287, %v4286
      %v4329 = vpack.c.b16 %v4289, %v4288
      %v4330 = vpack.c.b16 %v4291, %v4290
      %v4331 = vpack.c.b16 %v4293, %v4292
      %v4332 = vpack.c.b16 %v4295, %v4294
      %v4333 = vpack.c.b16 %v4297, %v4296
      %v4334 = vpack.c.b16 %v4299, %v4298
      %v4335 = vpack.c.b16 %v4301, %v4300
      %v4336 = vpack.c.b16 %v4303, %v4302
      %v4337 = vpack.c.b16 %v4305, %v4304
      %v4338 = vpack.c.b16 %v4307, %v4306
      %v4339 = vpack.c.b16 %v4309, %v4308
      %v4340 = vpack.c.b16 %v4311, %v4310
      %v4341 = vpack.c.b16 %v4313, %v4312
      %v4342 = vpack.c.b16 %v4315, %v4314
      %v4343 = vpack.c.b16 %v4317, %v4316
      %v4344 = vpack.c.b16 %v4319, %v4318
      %v4345 = vpack.c.b16 %v4321, %v4320
      %4370 = vmatprep.subr.bf16.mxu0 0
      %4371 = vmatpush1.bf16.msra.mxu0 %v4329
      %4372 = vmatprep.subr.bf16.mxu0 0
      %4373 = vmatpush1.bf16.msra.mxu0 %v4328
      %4374 = vmatprep.subr.bf16.mxu0 0
      %4375 = vmatpush1.bf16.msra.mxu0 %v4327
      %4376 = vmatprep.subr.bf16.mxu0 0
      %4377 = vmatpush1.bf16.msra.mxu0 %v4326
      %4378 = vmatprep.subr.bf16.mxu0 0
      %4379 = vmatpush1.bf16.msra.mxu0 %v4325
      %4380 = vmatprep.subr.bf16.mxu0 0
      %4381 = vmatpush1.bf16.msra.mxu0 %v4324
      %4382 = vmatprep.subr.bf16.mxu0 0
      %4383 = vmatpush1.bf16.msra.mxu0 %v4323
      %4384 = vmatprep.subr.bf16.mxu0 0
      %4385 = vmatpush1.bf16.msra.mxu0 %v4322
      %4386 = vmatprep.subr.bf16.mxu0 0
      %4387 = vmatpush2.bf16.msra.mxu0 %v4337
      %4388 = vmatprep.subr.bf16.mxu0 0
      %4389 = vmatpush2.bf16.msra.mxu0 %v4336
      %4390 = vmatprep.subr.bf16.mxu0 0
      %4391 = vmatpush2.bf16.msra.mxu0 %v4335
      %4392 = vmatprep.subr.bf16.mxu0 0
      %4393 = vmatpush2.bf16.msra.mxu0 %v4334
      %4394 = vmatprep.subr.bf16.mxu0 0
      %4395 = vmatpush2.bf16.msra.mxu0 %v4333
      %4396 = vmatprep.subr.bf16.mxu0 0
      %4397 = vmatpush2.bf16.msra.mxu0 %v4332
      %4398 = vmatprep.subr.bf16.mxu0 0
      %4399 = vmatpush2.bf16.msra.mxu0 %v4331
      %4400 = vmatprep.subr.bf16.mxu0 0
      %4401 = vmatpush2.bf16.msra.mxu0 %v4330
      %4402 = vmatprep.mubr.bf16.mxu0 %v3333
      %4403 = vmatmul.mubr.bf16.gmra.mxu0 %v3286
      %v4404 = vpop.f32.mrf.mxu0
      %v4405 = vadd.f32 %v4100, %v4404
      %v4406 = vpop.f32.mrf.mxu0
      %v4407 = vpop.f32.mrf.mxu0
      %v4408 = vadd.f32 %v4103, %v4407
      %v4409 = vpop.f32.mrf.mxu0
      %4410 = vmatprep.mubr.bf16.mxu0 %v3345
      %4411 = vmatmul.mubr.bf16.gmra.mxu0 %v3287
      %v4412 = vpop.f32.mrf.mxu0
      %v4413 = vadd.f32 %v4108, %v4412
      %v4414 = vpop.f32.mrf.mxu0
      %v4415 = vpop.f32.mrf.mxu0
      %v4416 = vadd.f32 %v4111, %v4415
      %v4417 = vpop.f32.mrf.mxu0
      %4418 = vmatprep.mubr.bf16.mxu0 %v3357
      %4419 = vmatmul.mubr.bf16.gmra.mxu0 %v3288
      %v4420 = vpop.f32.mrf.mxu0
      %v4421 = vadd.f32 %v4116, %v4420
      %v4422 = vpop.f32.mrf.mxu0
      %v4423 = vpop.f32.mrf.mxu0
      %v4424 = vadd.f32 %v4119, %v4423
      %v4425 = vpop.f32.mrf.mxu0
      %4426 = vmatprep.mubr.bf16.mxu0 %v3369
      %4427 = vmatmul.mubr.bf16.gmra.mxu0 %v3289
      %v4428 = vpop.f32.mrf.mxu0
      %v4429 = vadd.f32 %v4124, %v4428
      %v4430 = vpop.f32.mrf.mxu0
      %v4431 = vpop.f32.mrf.mxu0
      %v4432 = vadd.f32 %v4127, %v4431
      %v4433 = vpop.f32.mrf.mxu0
      %4434 = vmatprep.mubr.bf16.mxu0 %v3381
      %4435 = vmatmul.mubr.bf16.gmra.mxu0 %v3290
      %v4436 = vpop.f32.mrf.mxu0
      %v4437 = vadd.f32 %v4132, %v4436
      %v4438 = vpop.f32.mrf.mxu0
      %v4439 = vpop.f32.mrf.mxu0
      %v4440 = vadd.f32 %v4135, %v4439
      %v4441 = vpop.f32.mrf.mxu0
      %4442 = vmatprep.mubr.bf16.mxu0 %v3393
      %4443 = vmatmul.mubr.bf16.gmra.mxu0 %v3291
      %v4444 = vpop.f32.mrf.mxu0
      %v4445 = vadd.f32 %v4140, %v4444
      %v4446 = vpop.f32.mrf.mxu0
      %v4447 = vpop.f32.mrf.mxu0
      %v4448 = vadd.f32 %v4143, %v4447
      %v4449 = vpop.f32.mrf.mxu0
      %4450 = vmatprep.mubr.bf16.mxu0 %v3405
      %4451 = vmatmul.mubr.bf16.gmra.mxu0 %v3292
      %v4452 = vpop.f32.mrf.mxu0
      %v4453 = vadd.f32 %v4148, %v4452
      %v4454 = vpop.f32.mrf.mxu0
      %v4455 = vpop.f32.mrf.mxu0
      %v4456 = vadd.f32 %v4151, %v4455
      %v4457 = vpop.f32.mrf.mxu0
      %4458 = vmatprep.mubr.bf16.mxu0 %v3417
      %4459 = vmatmul.mubr.bf16.gmra.mxu0 %v3293
      %v4460 = vpop.f32.mrf.mxu0
      %v4461 = vadd.f32 %v4156, %v4460
      %v4462 = vpop.f32.mrf.mxu0
      %v4463 = vpop.f32.mrf.mxu0
      %v4464 = vadd.f32 %v4159, %v4463
      %v4465 = vpop.f32.mrf.mxu0
      %4466 = vmatprep.mubr.bf16.mxu0 %v3429
      %4467 = vmatmul.mubr.bf16.gmra.mxu0 %v3294
      %v4468 = vpop.f32.mrf.mxu0
      %v4469 = vadd.f32 %v4164, %v4468
      %v4470 = vpop.f32.mrf.mxu0
      %v4471 = vpop.f32.mrf.mxu0
      %v4472 = vadd.f32 %v4167, %v4471
      %v4473 = vpop.f32.mrf.mxu0
      %4474 = vmatprep.mubr.bf16.mxu0 %v3441
      %4475 = vmatmul.mubr.bf16.gmra.mxu0 %v3295
      %v4476 = vpop.f32.mrf.mxu0
      %v4477 = vadd.f32 %v4172, %v4476
      %v4478 = vpop.f32.mrf.mxu0
      %v4479 = vpop.f32.mrf.mxu0
      %v4480 = vadd.f32 %v4175, %v4479
      %v4481 = vpop.f32.mrf.mxu0
      %4482 = vmatprep.mubr.bf16.mxu0 %v3453
      %4483 = vmatmul.mubr.bf16.gmra.mxu0 %v3296
      %v4484 = vpop.f32.mrf.mxu0
      %v4485 = vadd.f32 %v4180, %v4484
      %v4486 = vpop.f32.mrf.mxu0
      %v4487 = vpop.f32.mrf.mxu0
      %v4488 = vadd.f32 %v4183, %v4487
      %v4489 = vpop.f32.mrf.mxu0
      %4490 = vmatprep.mubr.bf16.mxu0 %v3465
      %4491 = vmatmul.mubr.bf16.gmra.mxu0 %v3297
      %v4492 = vpop.f32.mrf.mxu0
      %v4493 = vadd.f32 %v4188, %v4492
      %v4494 = vpop.f32.mrf.mxu0
      %v4495 = vpop.f32.mrf.mxu0
      %v4496 = vadd.f32 %v4191, %v4495
      %v4497 = vpop.f32.mrf.mxu0
      %4498 = vmatprep.mubr.bf16.mxu0 %v3477
      %4499 = vmatmul.mubr.bf16.gmra.mxu0 %v3298
      %v4500 = vpop.f32.mrf.mxu0
      %v4501 = vadd.f32 %v4196, %v4500
      %v4502 = vpop.f32.mrf.mxu0
      %v4503 = vpop.f32.mrf.mxu0
      %v4504 = vadd.f32 %v4199, %v4503
      %v4505 = vpop.f32.mrf.mxu0
      %4506 = vmatprep.mubr.bf16.mxu0 %v3489
      %4507 = vmatmul.mubr.bf16.gmra.mxu0 %v3299
      %v4508 = vpop.f32.mrf.mxu0
      %v4509 = vadd.f32 %v4204, %v4508
      %v4510 = vpop.f32.mrf.mxu0
      %v4511 = vpop.f32.mrf.mxu0
      %v4512 = vadd.f32 %v4207, %v4511
      %v4513 = vpop.f32.mrf.mxu0
      %4514 = vmatprep.mubr.bf16.mxu0 %v3501
      %4515 = vmatmul.mubr.bf16.gmra.mxu0 %v3300
      %v4516 = vpop.f32.mrf.mxu0
      %v4517 = vadd.f32 %v4212, %v4516
      %v4518 = vpop.f32.mrf.mxu0
      %v4519 = vpop.f32.mrf.mxu0
      %v4520 = vadd.f32 %v4215, %v4519
      %v4521 = vpop.f32.mrf.mxu0
      %4522 = vmatprep.mubr.bf16.mxu0 %v3513
      %4523 = vmatmul.mubr.bf16.gmra.mxu0 %v3301
      %v4524 = vpop.f32.mrf.mxu0
      %v4525 = vadd.f32 %v4220, %v4524
      %v4526 = vpop.f32.mrf.mxu0
      %v4527 = vpop.f32.mrf.mxu0
      %v4528 = vadd.f32 %v4223, %v4527
      %v4529 = vpop.f32.mrf.mxu0
      %4530 = vdwg.mxu0
      %4531 = vmatprep.subr.bf16.mxu0 0
      %4532 = vmatpush1.bf16.msra.mxu0 %v4345
      %4533 = vmatprep.subr.bf16.mxu0 0
      %4534 = vmatpush1.bf16.msra.mxu0 %v4344
      %4535 = vmatprep.subr.bf16.mxu0 0
      %4536 = vmatpush1.bf16.msra.mxu0 %v4343
      %4537 = vmatprep.subr.bf16.mxu0 0
      %4538 = vmatpush1.bf16.msra.mxu0 %v4342
      %4539 = vmatprep.subr.bf16.mxu0 0
      %4540 = vmatpush1.bf16.msra.mxu0 %v4341
      %4541 = vmatprep.subr.bf16.mxu0 0
      %4542 = vmatpush1.bf16.msra.mxu0 %v4340
      %4543 = vmatprep.subr.bf16.mxu0 0
      %4544 = vmatpush1.bf16.msra.mxu0 %v4339
      %4545 = vmatprep.subr.bf16.mxu0 0
      %4546 = vmatpush1.bf16.msra.mxu0 %v4338
      %4547 = vmatprep.subr.bf16.mxu0 0
      %4548 = vmatpush2.bf16.msra.mxu0 0
      %4549 = vmatprep.subr.bf16.mxu0 0
      %4550 = vmatpush2.bf16.msra.mxu0 0
      %4551 = vmatprep.subr.bf16.mxu0 0
      %4552 = vmatpush2.bf16.msra.mxu0 0
      %4553 = vmatprep.subr.bf16.mxu0 0
      %4554 = vmatpush2.bf16.msra.mxu0 0
      %4555 = vmatprep.subr.bf16.mxu0 0
      %4556 = vmatpush2.bf16.msra.mxu0 0
      %4557 = vmatprep.subr.bf16.mxu0 0
      %4558 = vmatpush2.bf16.msra.mxu0 0
      %4559 = vmatprep.subr.bf16.mxu0 0
      %4560 = vmatpush2.bf16.msra.mxu0 0
      %4561 = vmatprep.subr.bf16.mxu0 0
      %4562 = vmatpush2.bf16.msra.mxu0 0
      %4563 = vmatprep.mubr.bf16.mxu0 0
      %4564 = vmatmul.mubr.bf16.gmra.mxu0 %v3594
      %v4565 = vpop.f32.mrf.mxu0
      %v4566 = vadd.f32 %v4405, %v4565
      %v4567 = vpop.f32.mrf.mxu0
      %v4568 = vpop.f32.mrf.mxu0
      %v4569 = vadd.f32 %v4408, %v4568
      %v4570 = vpop.f32.mrf.mxu0
      %4571 = vmatprep.mubr.bf16.mxu0 0
      %4572 = vmatmul.mubr.bf16.gmra.mxu0 %v3597
      %v4573 = vpop.f32.mrf.mxu0
      %v4574 = vadd.f32 %v4413, %v4573
      %v4575 = vpop.f32.mrf.mxu0
      %v4576 = vpop.f32.mrf.mxu0
      %v4577 = vadd.f32 %v4416, %v4576
      %v4578 = vpop.f32.mrf.mxu0
      %4579 = vmatprep.mubr.bf16.mxu0 0
      %4580 = vmatmul.mubr.bf16.gmra.mxu0 %v3600
      %v4581 = vpop.f32.mrf.mxu0
      %v4582 = vadd.f32 %v4421, %v4581
      %v4583 = vpop.f32.mrf.mxu0
      %v4584 = vpop.f32.mrf.mxu0
      %v4585 = vadd.f32 %v4424, %v4584
      %v4586 = vpop.f32.mrf.mxu0
      %4587 = vmatprep.mubr.bf16.mxu0 0
      %4588 = vmatmul.mubr.bf16.gmra.mxu0 %v3603
      %v4589 = vpop.f32.mrf.mxu0
      %v4590 = vadd.f32 %v4429, %v4589
      %v4591 = vpop.f32.mrf.mxu0
      %v4592 = vpop.f32.mrf.mxu0
      %v4593 = vadd.f32 %v4432, %v4592
      %v4594 = vpop.f32.mrf.mxu0
      %4595 = vmatprep.mubr.bf16.mxu0 0
      %4596 = vmatmul.mubr.bf16.gmra.mxu0 %v3606
      %v4597 = vpop.f32.mrf.mxu0
      %v4598 = vadd.f32 %v4437, %v4597
      %v4599 = vpop.f32.mrf.mxu0
      %v4600 = vpop.f32.mrf.mxu0
      %v4601 = vadd.f32 %v4440, %v4600
      %v4602 = vpop.f32.mrf.mxu0
      %4603 = vmatprep.mubr.bf16.mxu0 0
      %4604 = vmatmul.mubr.bf16.gmra.mxu0 %v3609
      %v4605 = vpop.f32.mrf.mxu0
      %v4606 = vadd.f32 %v4445, %v4605
      %v4607 = vpop.f32.mrf.mxu0
      %v4608 = vpop.f32.mrf.mxu0
      %v4609 = vadd.f32 %v4448, %v4608
      %v4610 = vpop.f32.mrf.mxu0
      %4611 = vmatprep.mubr.bf16.mxu0 0
      %4612 = vmatmul.mubr.bf16.gmra.mxu0 %v3612
      %v4613 = vpop.f32.mrf.mxu0
      %v4614 = vadd.f32 %v4453, %v4613
      %v4615 = vpop.f32.mrf.mxu0
      %v4616 = vpop.f32.mrf.mxu0
      %v4617 = vadd.f32 %v4456, %v4616
      %v4618 = vpop.f32.mrf.mxu0
      %4619 = vmatprep.mubr.bf16.mxu0 0
      %4620 = vmatmul.mubr.bf16.gmra.mxu0 %v3615
      %v4621 = vpop.f32.mrf.mxu0
      %v4622 = vadd.f32 %v4461, %v4621
      %v4623 = vpop.f32.mrf.mxu0
      %v4624 = vpop.f32.mrf.mxu0
      %v4625 = vadd.f32 %v4464, %v4624
      %v4626 = vpop.f32.mrf.mxu0
      %4627 = vmatprep.mubr.bf16.mxu0 0
      %4628 = vmatmul.mubr.bf16.gmra.mxu0 %v3618
      %v4629 = vpop.f32.mrf.mxu0
      %v4630 = vadd.f32 %v4469, %v4629
      %v4631 = vpop.f32.mrf.mxu0
      %v4632 = vpop.f32.mrf.mxu0
      %v4633 = vadd.f32 %v4472, %v4632
      %v4634 = vpop.f32.mrf.mxu0
      %4635 = vmatprep.mubr.bf16.mxu0 0
      %4636 = vmatmul.mubr.bf16.gmra.mxu0 %v3621
      %v4637 = vpop.f32.mrf.mxu0
      %v4638 = vadd.f32 %v4477, %v4637
      %v4639 = vpop.f32.mrf.mxu0
      %v4640 = vpop.f32.mrf.mxu0
      %v4641 = vadd.f32 %v4480, %v4640
      %v4642 = vpop.f32.mrf.mxu0
      %4643 = vmatprep.mubr.bf16.mxu0 0
      %4644 = vmatmul.mubr.bf16.gmra.mxu0 %v3624
      %v4645 = vpop.f32.mrf.mxu0
      %v4646 = vadd.f32 %v4485, %v4645
      %v4647 = vpop.f32.mrf.mxu0
      %v4648 = vpop.f32.mrf.mxu0
      %v4649 = vadd.f32 %v4488, %v4648
      %v4650 = vpop.f32.mrf.mxu0
      %4651 = vmatprep.mubr.bf16.mxu0 0
      %4652 = vmatmul.mubr.bf16.gmra.mxu0 %v3627
      %v4653 = vpop.f32.mrf.mxu0
      %v4654 = vadd.f32 %v4493, %v4653
      %v4655 = vpop.f32.mrf.mxu0
      %v4656 = vpop.f32.mrf.mxu0
      %v4657 = vadd.f32 %v4496, %v4656
      %v4658 = vpop.f32.mrf.mxu0
      %4659 = vmatprep.mubr.bf16.mxu0 0
      %4660 = vmatmul.mubr.bf16.gmra.mxu0 %v3630
      %v4661 = vpop.f32.mrf.mxu0
      %v4662 = vadd.f32 %v4501, %v4661
      %v4663 = vpop.f32.mrf.mxu0
      %v4664 = vpop.f32.mrf.mxu0
      %v4665 = vadd.f32 %v4504, %v4664
      %v4666 = vpop.f32.mrf.mxu0
      %4667 = vmatprep.mubr.bf16.mxu0 0
      %4668 = vmatmul.mubr.bf16.gmra.mxu0 %v3633
      %v4669 = vpop.f32.mrf.mxu0
      %v4670 = vadd.f32 %v4509, %v4669
      %v4671 = vpop.f32.mrf.mxu0
      %v4672 = vpop.f32.mrf.mxu0
      %v4673 = vadd.f32 %v4512, %v4672
      %v4674 = vpop.f32.mrf.mxu0
      %4675 = vmatprep.mubr.bf16.mxu0 0
      %4676 = vmatmul.mubr.bf16.gmra.mxu0 %v3636
      %v4677 = vpop.f32.mrf.mxu0
      %v4678 = vadd.f32 %v4517, %v4677
      %v4679 = vpop.f32.mrf.mxu0
      %v4680 = vpop.f32.mrf.mxu0
      %v4681 = vadd.f32 %v4520, %v4680
      %v4682 = vpop.f32.mrf.mxu0
      %4683 = vmatprep.mubr.bf16.mxu0 0
      %4684 = vmatmul.mubr.bf16.gmra.mxu0 %v3639
      %v4685 = vpop.f32.mrf.mxu0
      %v4686 = vadd.f32 %v4525, %v4685
      %v4687 = vpop.f32.mrf.mxu0
      %v4688 = vpop.f32.mrf.mxu0
      %v4689 = vadd.f32 %v4528, %v4688
      %v4690 = vpop.f32.mrf.mxu0
      %4691 = vdwg.mxu0
      %v4692 = vld [vmem:[%s3 + $0x180] sm:$0xf]
      %v4693 = vld [vmem:[%s3 + $0x184] sm:$0xf]
      %v4694 = vld [vmem:[%s3 + $0x188] sm:$0xf]
      %v4695 = vld [vmem:[%s3 + $0x18c] sm:$0xf]
      %v4696 = vld [vmem:[%s3 + $0x190] sm:$0xf]
      %v4697 = vld [vmem:[%s3 + $0x194] sm:$0xf]
      %v4698 = vld [vmem:[%s3 + $0x198] sm:$0xf]
      %v4699 = vld [vmem:[%s3 + $0x19c] sm:$0xf]
      %v4700 = vld [vmem:[%s3 + $0x1a0] sm:$0xf]
      %v4701 = vld [vmem:[%s3 + $0x1a4] sm:$0xf]
      %v4702 = vld [vmem:[%s3 + $0x1a8] sm:$0xf]
      %v4703 = vld [vmem:[%s3 + $0x1ac] sm:$0xf]
      %v4704 = vld [vmem:[%s3 + $0x1b0] sm:$0xf]
      %v4705 = vld [vmem:[%s3 + $0x1b4] sm:$0xf]
      %v4706 = vld [vmem:[%s3 + $0x1b8] sm:$0xf]
      %v4707 = vld [vmem:[%s3 + $0x1bc] sm:$0xf]
      %v4708 = vld [vmem:[%s3 + $0x1c0] sm:$0xf]
      %v4709 = vld [vmem:[%s3 + $0x1c4] sm:$0xf]
      %v4710 = vld [vmem:[%s3 + $0x1c8] sm:$0xf]
      %v4711 = vld [vmem:[%s3 + $0x1cc] sm:$0xf]
      %v4712 = vld [vmem:[%s3 + $0x1d0] sm:$0xf]
      %v4713 = vld [vmem:[%s3 + $0x1d4] sm:$0xf]
      %v4714 = vld [vmem:[%s3 + $0x1d8] sm:$0xf]
      %v4715 = vld [vmem:[%s3 + $0x1dc] sm:$0xf]
      %v4716 = vld [vmem:[%s3 + $0x1e0] sm:$0xf]
      %v4717 = vld [vmem:[%s3 + $0x1e4] sm:$0xf]
      %v4718 = vld [vmem:[%s3 + $0x1e8] sm:$0xf]
      %v4719 = vld [vmem:[%s3 + $0x1ec] sm:$0xf]
      %v4720 = vld [vmem:[%s3 + $0x1f0] sm:$0xf]
      %v4721 = vld [vmem:[%s3 + $0x1f4] sm:$0xf]
      %v4722 = vld [vmem:[%s3 + $0x1f8] sm:$0xf]
      %v4723 = vld [vmem:[%s3 + $0x1fc] sm:$0xf]
      %v4724 = vld [vmem:[%s3 + $0x200] sm:$0xf]
      %v4725 = vld [vmem:[%s3 + $0x204] sm:$0xf]
      %v4726 = vld [vmem:[%s3 + $0x208] sm:$0xf]
      %v4727 = vld [vmem:[%s3 + $0x20c] sm:$0xf]
      %v4728 = vld [vmem:[%s3 + $0x210] sm:$0xf]
      %v4729 = vld [vmem:[%s3 + $0x214] sm:$0xf]
      %v4730 = vld [vmem:[%s3 + $0x218] sm:$0xf]
      %v4731 = vld [vmem:[%s3 + $0x21c] sm:$0xf]
      %v4732 = vld [vmem:[%s3 + $0x220] sm:$0xf]
      %v4733 = vld [vmem:[%s3 + $0x224] sm:$0xf]
      %v4734 = vld [vmem:[%s3 + $0x228] sm:$0xf]
      %v4735 = vld [vmem:[%s3 + $0x22c] sm:$0xf]
      %v4736 = vld [vmem:[%s3 + $0x230] sm:$0xf]
      %v4737 = vld [vmem:[%s3 + $0x234] sm:$0xf]
      %v4738 = vld [vmem:[%s3 + $0x238] sm:$0xf]
      %v4739 = vld [vmem:[%s3 + $0x23c] sm:$0xf]
      %v4788 = vunpack.c.l.b16 %v4692
      %v4789 = vunpack.c.l.b16 %v4693
      %v4790 = vunpack.c.l.b16 %v4694
      %v4791 = vunpack.c.l.b16 %v4695
      %v4792 = vunpack.c.l.b16 %v4696
      %v4793 = vunpack.c.l.b16 %v4697
      %v4794 = vunpack.c.l.b16 %v4698
      %v4795 = vunpack.c.l.b16 %v4699
      %v4796 = vunpack.c.l.b16 %v4700
      %v4797 = vunpack.c.l.b16 %v4701
      %v4798 = vunpack.c.l.b16 %v4702
      %v4799 = vunpack.c.l.b16 %v4703
      %v4800 = vunpack.c.l.b16 %v4704
      %v4801 = vunpack.c.l.b16 %v4705
      %v4802 = vunpack.c.l.b16 %v4706
      %v4803 = vunpack.c.l.b16 %v4707
      %v4804 = vunpack.c.l.b16 %v4708
      %v4805 = vunpack.c.l.b16 %v4709
      %v4806 = vunpack.c.l.b16 %v4710
      %v4807 = vunpack.c.l.b16 %v4711
      %v4808 = vunpack.c.l.b16 %v4712
      %v4809 = vunpack.c.l.b16 %v4713
      %v4810 = vunpack.c.l.b16 %v4714
      %v4811 = vunpack.c.l.b16 %v4715
      %v4812 = vunpack.c.l.b16 %v4716
      %v4813 = vunpack.c.l.b16 %v4717
      %v4814 = vunpack.c.l.b16 %v4718
      %v4815 = vunpack.c.l.b16 %v4719
      %v4816 = vunpack.c.l.b16 %v4720
      %v4817 = vunpack.c.l.b16 %v4721
      %v4818 = vunpack.c.l.b16 %v4722
      %v4819 = vunpack.c.l.b16 %v4723
      %v4820 = vunpack.c.l.b16 %v4724
      %v4821 = vunpack.c.l.b16 %v4725
      %v4822 = vunpack.c.l.b16 %v4726
      %v4823 = vunpack.c.l.b16 %v4727
      %v4824 = vunpack.c.l.b16 %v4728
      %v4825 = vunpack.c.l.b16 %v4729
      %v4826 = vunpack.c.l.b16 %v4730
      %v4827 = vunpack.c.l.b16 %v4731
      %v4828 = vunpack.c.l.b16 %v4732
      %v4829 = vunpack.c.l.b16 %v4733
      %v4830 = vunpack.c.l.b16 %v4734
      %v4831 = vunpack.c.l.b16 %v4735
      %v4832 = vunpack.c.l.b16 %v4736
      %v4833 = vunpack.c.l.b16 %v4737
      %v4834 = vunpack.c.l.b16 %v4738
      %v4835 = vunpack.c.l.b16 %v4739
      %v4836 = vpack.c.b16 %v4789, %v4788
      %v4837 = vpack.c.b16 %v4791, %v4790
      %v4838 = vpack.c.b16 %v4793, %v4792
      %v4839 = vpack.c.b16 %v4795, %v4794
      %v4840 = vpack.c.b16 %v4797, %v4796
      %v4841 = vpack.c.b16 %v4799, %v4798
      %v4842 = vpack.c.b16 %v4801, %v4800
      %v4843 = vpack.c.b16 %v4803, %v4802
      %v4844 = vpack.c.b16 %v4805, %v4804
      %v4845 = vpack.c.b16 %v4807, %v4806
      %v4846 = vpack.c.b16 %v4809, %v4808
      %v4847 = vpack.c.b16 %v4811, %v4810
      %v4848 = vpack.c.b16 %v4813, %v4812
      %v4849 = vpack.c.b16 %v4815, %v4814
      %v4850 = vpack.c.b16 %v4817, %v4816
      %v4851 = vpack.c.b16 %v4819, %v4818
      %v4852 = vpack.c.b16 %v4821, %v4820
      %v4853 = vpack.c.b16 %v4823, %v4822
      %v4854 = vpack.c.b16 %v4825, %v4824
      %v4855 = vpack.c.b16 %v4827, %v4826
      %v4856 = vpack.c.b16 %v4829, %v4828
      %v4857 = vpack.c.b16 %v4831, %v4830
      %v4858 = vpack.c.b16 %v4833, %v4832
      %v4859 = vpack.c.b16 %v4835, %v4834
      %4884 = vmatprep.subr.bf16.mxu0 0
      %4885 = vmatpush1.bf16.msra.mxu0 %v4843
      %4886 = vmatprep.subr.bf16.mxu0 0
      %4887 = vmatpush1.bf16.msra.mxu0 %v4842
      %4888 = vmatprep.subr.bf16.mxu0 0
      %4889 = vmatpush1.bf16.msra.mxu0 %v4841
      %4890 = vmatprep.subr.bf16.mxu0 0
      %4891 = vmatpush1.bf16.msra.mxu0 %v4840
      %4892 = vmatprep.subr.bf16.mxu0 0
      %4893 = vmatpush1.bf16.msra.mxu0 %v4839
      %4894 = vmatprep.subr.bf16.mxu0 0
      %4895 = vmatpush1.bf16.msra.mxu0 %v4838
      %4896 = vmatprep.subr.bf16.mxu0 0
      %4897 = vmatpush1.bf16.msra.mxu0 %v4837
      %4898 = vmatprep.subr.bf16.mxu0 0
      %4899 = vmatpush1.bf16.msra.mxu0 %v4836
      %4900 = vmatprep.subr.bf16.mxu0 0
      %4901 = vmatpush2.bf16.msra.mxu0 %v4851
      %4902 = vmatprep.subr.bf16.mxu0 0
      %4903 = vmatpush2.bf16.msra.mxu0 %v4850
      %4904 = vmatprep.subr.bf16.mxu0 0
      %4905 = vmatpush2.bf16.msra.mxu0 %v4849
      %4906 = vmatprep.subr.bf16.mxu0 0
      %4907 = vmatpush2.bf16.msra.mxu0 %v4848
      %4908 = vmatprep.subr.bf16.mxu0 0
      %4909 = vmatpush2.bf16.msra.mxu0 %v4847
      %4910 = vmatprep.subr.bf16.mxu0 0
      %4911 = vmatpush2.bf16.msra.mxu0 %v4846
      %4912 = vmatprep.subr.bf16.mxu0 0
      %4913 = vmatpush2.bf16.msra.mxu0 %v4845
      %4914 = vmatprep.subr.bf16.mxu0 0
      %4915 = vmatpush2.bf16.msra.mxu0 %v4844
      %4916 = vmatprep.mubr.bf16.mxu0 %v3357
      %4917 = vmatmul.mubr.bf16.gmra.mxu0 %v3288
      %v4918 = vpop.f32.mrf.mxu0
      %v4919 = vadd.f32 0.0, %v4918
      %v4920 = vpop.f32.mrf.mxu0
      %v4921 = vpop.f32.mrf.mxu0
      %v4922 = vadd.f32 0.0, %v4921
      %v4923 = vpop.f32.mrf.mxu0
      %4924 = vmatprep.mubr.bf16.mxu0 %v3369
      %4925 = vmatmul.mubr.bf16.gmra.mxu0 %v3289
      %v4926 = vpop.f32.mrf.mxu0
      %v4927 = vadd.f32 0.0, %v4926
      %v4928 = vpop.f32.mrf.mxu0
      %v4929 = vpop.f32.mrf.mxu0
      %v4930 = vadd.f32 0.0, %v4929
      %v4931 = vpop.f32.mrf.mxu0
      %4932 = vmatprep.mubr.bf16.mxu0 %v3381
      %4933 = vmatmul.mubr.bf16.gmra.mxu0 %v3290
      %v4934 = vpop.f32.mrf.mxu0
      %v4935 = vadd.f32 0.0, %v4934
      %v4936 = vpop.f32.mrf.mxu0
      %v4937 = vpop.f32.mrf.mxu0
      %v4938 = vadd.f32 0.0, %v4937
      %v4939 = vpop.f32.mrf.mxu0
      %4940 = vmatprep.mubr.bf16.mxu0 %v3393
      %4941 = vmatmul.mubr.bf16.gmra.mxu0 %v3291
      %v4942 = vpop.f32.mrf.mxu0
      %v4943 = vadd.f32 0.0, %v4942
      %v4944 = vpop.f32.mrf.mxu0
      %v4945 = vpop.f32.mrf.mxu0
      %v4946 = vadd.f32 0.0, %v4945
      %v4947 = vpop.f32.mrf.mxu0
      %4948 = vmatprep.mubr.bf16.mxu0 %v3405
      %4949 = vmatmul.mubr.bf16.gmra.mxu0 %v3292
      %v4950 = vpop.f32.mrf.mxu0
      %v4951 = vadd.f32 0.0, %v4950
      %v4952 = vpop.f32.mrf.mxu0
      %v4953 = vpop.f32.mrf.mxu0
      %v4954 = vadd.f32 0.0, %v4953
      %v4955 = vpop.f32.mrf.mxu0
      %4956 = vmatprep.mubr.bf16.mxu0 %v3417
      %4957 = vmatmul.mubr.bf16.gmra.mxu0 %v3293
      %v4958 = vpop.f32.mrf.mxu0
      %v4959 = vadd.f32 0.0, %v4958
      %v4960 = vpop.f32.mrf.mxu0
      %v4961 = vpop.f32.mrf.mxu0
      %v4962 = vadd.f32 0.0, %v4961
      %v4963 = vpop.f32.mrf.mxu0
      %4964 = vmatprep.mubr.bf16.mxu0 %v3429
      %4965 = vmatmul.mubr.bf16.gmra.mxu0 %v3294
      %v4966 = vpop.f32.mrf.mxu0
      %v4967 = vadd.f32 0.0, %v4966
      %v4968 = vpop.f32.mrf.mxu0
      %v4969 = vpop.f32.mrf.mxu0
      %v4970 = vadd.f32 0.0, %v4969
      %v4971 = vpop.f32.mrf.mxu0
      %4972 = vmatprep.mubr.bf16.mxu0 %v3441
      %4973 = vmatmul.mubr.bf16.gmra.mxu0 %v3295
      %v4974 = vpop.f32.mrf.mxu0
      %v4975 = vadd.f32 0.0, %v4974
      %v4976 = vpop.f32.mrf.mxu0
      %v4977 = vpop.f32.mrf.mxu0
      %v4978 = vadd.f32 0.0, %v4977
      %v4979 = vpop.f32.mrf.mxu0
      %4980 = vmatprep.mubr.bf16.mxu0 %v3453
      %4981 = vmatmul.mubr.bf16.gmra.mxu0 %v3296
      %v4982 = vpop.f32.mrf.mxu0
      %v4983 = vadd.f32 0.0, %v4982
      %v4984 = vpop.f32.mrf.mxu0
      %v4985 = vpop.f32.mrf.mxu0
      %v4986 = vadd.f32 0.0, %v4985
      %v4987 = vpop.f32.mrf.mxu0
      %4988 = vmatprep.mubr.bf16.mxu0 %v3465
      %4989 = vmatmul.mubr.bf16.gmra.mxu0 %v3297
      %v4990 = vpop.f32.mrf.mxu0
      %v4991 = vadd.f32 0.0, %v4990
      %v4992 = vpop.f32.mrf.mxu0
      %v4993 = vpop.f32.mrf.mxu0
      %v4994 = vadd.f32 0.0, %v4993
      %v4995 = vpop.f32.mrf.mxu0
      %4996 = vmatprep.mubr.bf16.mxu0 %v3477
      %4997 = vmatmul.mubr.bf16.gmra.mxu0 %v3298
      %v4998 = vpop.f32.mrf.mxu0
      %v4999 = vadd.f32 0.0, %v4998
      %v5000 = vpop.f32.mrf.mxu0
      %v5001 = vpop.f32.mrf.mxu0
      %v5002 = vadd.f32 0.0, %v5001
      %v5003 = vpop.f32.mrf.mxu0
      %5004 = vmatprep.mubr.bf16.mxu0 %v3489
      %5005 = vmatmul.mubr.bf16.gmra.mxu0 %v3299
      %v5006 = vpop.f32.mrf.mxu0
      %v5007 = vadd.f32 0.0, %v5006
      %v5008 = vpop.f32.mrf.mxu0
      %v5009 = vpop.f32.mrf.mxu0
      %v5010 = vadd.f32 0.0, %v5009
      %v5011 = vpop.f32.mrf.mxu0
      %5012 = vmatprep.mubr.bf16.mxu0 %v3501
      %5013 = vmatmul.mubr.bf16.gmra.mxu0 %v3300
      %v5014 = vpop.f32.mrf.mxu0
      %v5015 = vadd.f32 0.0, %v5014
      %v5016 = vpop.f32.mrf.mxu0
      %v5017 = vpop.f32.mrf.mxu0
      %v5018 = vadd.f32 0.0, %v5017
      %v5019 = vpop.f32.mrf.mxu0
      %5020 = vmatprep.mubr.bf16.mxu0 %v3513
      %5021 = vmatmul.mubr.bf16.gmra.mxu0 %v3301
      %v5022 = vpop.f32.mrf.mxu0
      %v5023 = vadd.f32 0.0, %v5022
      %v5024 = vpop.f32.mrf.mxu0
      %v5025 = vpop.f32.mrf.mxu0
      %v5026 = vadd.f32 0.0, %v5025
      %v5027 = vpop.f32.mrf.mxu0
      %5028 = vmatprep.mubr.bf16.mxu0 %v3525
      %5029 = vmatmul.mubr.bf16.gmra.mxu0 %v3302
      %v5030 = vpop.f32.mrf.mxu0
      %v5031 = vadd.f32 0.0, %v5030
      %v5032 = vpop.f32.mrf.mxu0
      %v5033 = vpop.f32.mrf.mxu0
      %v5034 = vadd.f32 0.0, %v5033
      %v5035 = vpop.f32.mrf.mxu0
      %5036 = vmatprep.mubr.bf16.mxu0 %v3537
      %5037 = vmatmul.mubr.bf16.gmra.mxu0 %v3303
      %v5038 = vpop.f32.mrf.mxu0
      %v5039 = vadd.f32 0.0, %v5038
      %v5040 = vpop.f32.mrf.mxu0
      %v5041 = vpop.f32.mrf.mxu0
      %v5042 = vadd.f32 0.0, %v5041
      %v5043 = vpop.f32.mrf.mxu0
      %5044 = vdwg.mxu0
      %5045 = vmatprep.subr.bf16.mxu0 0
      %5046 = vmatpush1.bf16.msra.mxu0 %v4859
      %5047 = vmatprep.subr.bf16.mxu0 0
      %5048 = vmatpush1.bf16.msra.mxu0 %v4858
      %5049 = vmatprep.subr.bf16.mxu0 0
      %5050 = vmatpush1.bf16.msra.mxu0 %v4857
      %5051 = vmatprep.subr.bf16.mxu0 0
      %5052 = vmatpush1.bf16.msra.mxu0 %v4856
      %5053 = vmatprep.subr.bf16.mxu0 0
      %5054 = vmatpush1.bf16.msra.mxu0 %v4855
      %5055 = vmatprep.subr.bf16.mxu0 0
      %5056 = vmatpush1.bf16.msra.mxu0 %v4854
      %5057 = vmatprep.subr.bf16.mxu0 0
      %5058 = vmatpush1.bf16.msra.mxu0 %v4853
      %5059 = vmatprep.subr.bf16.mxu0 0
      %5060 = vmatpush1.bf16.msra.mxu0 %v4852
      %5061 = vmatprep.subr.bf16.mxu0 0
      %5062 = vmatpush2.bf16.msra.mxu0 0
      %5063 = vmatprep.subr.bf16.mxu0 0
      %5064 = vmatpush2.bf16.msra.mxu0 0
      %5065 = vmatprep.subr.bf16.mxu0 0
      %5066 = vmatpush2.bf16.msra.mxu0 0
      %5067 = vmatprep.subr.bf16.mxu0 0
      %5068 = vmatpush2.bf16.msra.mxu0 0
      %5069 = vmatprep.subr.bf16.mxu0 0
      %5070 = vmatpush2.bf16.msra.mxu0 0
      %5071 = vmatprep.subr.bf16.mxu0 0
      %5072 = vmatpush2.bf16.msra.mxu0 0
      %5073 = vmatprep.subr.bf16.mxu0 0
      %5074 = vmatpush2.bf16.msra.mxu0 0
      %5075 = vmatprep.subr.bf16.mxu0 0
      %5076 = vmatpush2.bf16.msra.mxu0 0
      %5077 = vmatprep.mubr.bf16.mxu0 0
      %5078 = vmatmul.mubr.bf16.gmra.mxu0 %v3600
      %v5079 = vpop.f32.mrf.mxu0
      %v5080 = vadd.f32 %v4919, %v5079
      %v5081 = vpop.f32.mrf.mxu0
      %v5082 = vpop.f32.mrf.mxu0
      %v5083 = vadd.f32 %v4922, %v5082
      %v5084 = vpop.f32.mrf.mxu0
      %5085 = vmatprep.mubr.bf16.mxu0 0
      %5086 = vmatmul.mubr.bf16.gmra.mxu0 %v3603
      %v5087 = vpop.f32.mrf.mxu0
      %v5088 = vadd.f32 %v4927, %v5087
      %v5089 = vpop.f32.mrf.mxu0
      %v5090 = vpop.f32.mrf.mxu0
      %v5091 = vadd.f32 %v4930, %v5090
      %v5092 = vpop.f32.mrf.mxu0
      %5093 = vmatprep.mubr.bf16.mxu0 0
      %5094 = vmatmul.mubr.bf16.gmra.mxu0 %v3606
      %v5095 = vpop.f32.mrf.mxu0
      %v5096 = vadd.f32 %v4935, %v5095
      %v5097 = vpop.f32.mrf.mxu0
      %v5098 = vpop.f32.mrf.mxu0
      %v5099 = vadd.f32 %v4938, %v5098
      %v5100 = vpop.f32.mrf.mxu0
      %5101 = vmatprep.mubr.bf16.mxu0 0
      %5102 = vmatmul.mubr.bf16.gmra.mxu0 %v3609
      %v5103 = vpop.f32.mrf.mxu0
      %v5104 = vadd.f32 %v4943, %v5103
      %v5105 = vpop.f32.mrf.mxu0
      %v5106 = vpop.f32.mrf.mxu0
      %v5107 = vadd.f32 %v4946, %v5106
      %v5108 = vpop.f32.mrf.mxu0
      %5109 = vmatprep.mubr.bf16.mxu0 0
      %5110 = vmatmul.mubr.bf16.gmra.mxu0 %v3612
      %v5111 = vpop.f32.mrf.mxu0
      %v5112 = vadd.f32 %v4951, %v5111
      %v5113 = vpop.f32.mrf.mxu0
      %v5114 = vpop.f32.mrf.mxu0
      %v5115 = vadd.f32 %v4954, %v5114
      %v5116 = vpop.f32.mrf.mxu0
      %5117 = vmatprep.mubr.bf16.mxu0 0
      %5118 = vmatmul.mubr.bf16.gmra.mxu0 %v3615
      %v5119 = vpop.f32.mrf.mxu0
      %v5120 = vadd.f32 %v4959, %v5119
      %v5121 = vpop.f32.mrf.mxu0
      %v5122 = vpop.f32.mrf.mxu0
      %v5123 = vadd.f32 %v4962, %v5122
      %v5124 = vpop.f32.mrf.mxu0
      %5125 = vmatprep.mubr.bf16.mxu0 0
      %5126 = vmatmul.mubr.bf16.gmra.mxu0 %v3618
      %v5127 = vpop.f32.mrf.mxu0
      %v5128 = vadd.f32 %v4967, %v5127
      %v5129 = vpop.f32.mrf.mxu0
      %v5130 = vpop.f32.mrf.mxu0
      %v5131 = vadd.f32 %v4970, %v5130
      %v5132 = vpop.f32.mrf.mxu0
      %5133 = vmatprep.mubr.bf16.mxu0 0
      %5134 = vmatmul.mubr.bf16.gmra.mxu0 %v3621
      %v5135 = vpop.f32.mrf.mxu0
      %v5136 = vadd.f32 %v4975, %v5135
      %v5137 = vpop.f32.mrf.mxu0
      %v5138 = vpop.f32.mrf.mxu0
      %v5139 = vadd.f32 %v4978, %v5138
      %v5140 = vpop.f32.mrf.mxu0
      %5141 = vmatprep.mubr.bf16.mxu0 0
      %5142 = vmatmul.mubr.bf16.gmra.mxu0 %v3624
      %v5143 = vpop.f32.mrf.mxu0
      %v5144 = vadd.f32 %v4983, %v5143
      %v5145 = vpop.f32.mrf.mxu0
      %v5146 = vpop.f32.mrf.mxu0
      %v5147 = vadd.f32 %v4986, %v5146
      %v5148 = vpop.f32.mrf.mxu0
      %5149 = vmatprep.mubr.bf16.mxu0 0
      %5150 = vmatmul.mubr.bf16.gmra.mxu0 %v3627
      %v5151 = vpop.f32.mrf.mxu0
      %v5152 = vadd.f32 %v4991, %v5151
      %v5153 = vpop.f32.mrf.mxu0
      %v5154 = vpop.f32.mrf.mxu0
      %v5155 = vadd.f32 %v4994, %v5154
      %v5156 = vpop.f32.mrf.mxu0
      %5157 = vmatprep.mubr.bf16.mxu0 0
      %5158 = vmatmul.mubr.bf16.gmra.mxu0 %v3630
      %v5159 = vpop.f32.mrf.mxu0
      %v5160 = vadd.f32 %v4999, %v5159
      %v5161 = vpop.f32.mrf.mxu0
      %v5162 = vpop.f32.mrf.mxu0
      %v5163 = vadd.f32 %v5002, %v5162
      %v5164 = vpop.f32.mrf.mxu0
      %5165 = vmatprep.mubr.bf16.mxu0 0
      %5166 = vmatmul.mubr.bf16.gmra.mxu0 %v3633
      %v5167 = vpop.f32.mrf.mxu0
      %v5168 = vadd.f32 %v5007, %v5167
      %v5169 = vpop.f32.mrf.mxu0
      %v5170 = vpop.f32.mrf.mxu0
      %v5171 = vadd.f32 %v5010, %v5170
      %v5172 = vpop.f32.mrf.mxu0
      %5173 = vmatprep.mubr.bf16.mxu0 0
      %5174 = vmatmul.mubr.bf16.gmra.mxu0 %v3636
      %v5175 = vpop.f32.mrf.mxu0
      %v5176 = vadd.f32 %v5015, %v5175
      %v5177 = vpop.f32.mrf.mxu0
      %v5178 = vpop.f32.mrf.mxu0
      %v5179 = vadd.f32 %v5018, %v5178
      %v5180 = vpop.f32.mrf.mxu0
      %5181 = vmatprep.mubr.bf16.mxu0 0
      %5182 = vmatmul.mubr.bf16.gmra.mxu0 %v3639
      %v5183 = vpop.f32.mrf.mxu0
      %v5184 = vadd.f32 %v5023, %v5183
      %v5185 = vpop.f32.mrf.mxu0
      %v5186 = vpop.f32.mrf.mxu0
      %v5187 = vadd.f32 %v5026, %v5186
      %v5188 = vpop.f32.mrf.mxu0
      %5189 = vmatprep.mubr.bf16.mxu0 0
      %5190 = vmatmul.mubr.bf16.gmra.mxu0 %v3642
      %v5191 = vpop.f32.mrf.mxu0
      %v5192 = vadd.f32 %v5031, %v5191
      %v5193 = vpop.f32.mrf.mxu0
      %v5194 = vpop.f32.mrf.mxu0
      %v5195 = vadd.f32 %v5034, %v5194
      %v5196 = vpop.f32.mrf.mxu0
      %5197 = vmatprep.mubr.bf16.mxu0 0
      %5198 = vmatmul.mubr.bf16.gmra.mxu0 %v3645
      %v5199 = vpop.f32.mrf.mxu0
      %v5200 = vadd.f32 %v5039, %v5199
      %v5201 = vpop.f32.mrf.mxu0
      %v5202 = vpop.f32.mrf.mxu0
      %v5203 = vadd.f32 %v5042, %v5202
      %v5204 = vpop.f32.mrf.mxu0
      %5205 = vdwg.mxu0
      %v5206 = vadd.f32 %v4566, %v5080
      %v5207 = vadd.f32 %v4569, %v5083
      %v5208 = vadd.f32 %v4574, %v5088
      %v5209 = vadd.f32 %v4577, %v5091
      %v5210 = vadd.f32 %v4582, %v5096
      %v5211 = vadd.f32 %v4585, %v5099
      %v5212 = vadd.f32 %v4590, %v5104
      %v5213 = vadd.f32 %v4593, %v5107
      %v5214 = vadd.f32 %v4598, %v5112
      %v5215 = vadd.f32 %v4601, %v5115
      %v5216 = vadd.f32 %v4606, %v5120
      %v5217 = vadd.f32 %v4609, %v5123
      %v5218 = vadd.f32 %v4614, %v5128
      %v5219 = vadd.f32 %v4617, %v5131
      %v5220 = vadd.f32 %v4622, %v5136
      %v5221 = vadd.f32 %v4625, %v5139
      %v5222 = vadd.f32 %v4630, %v5144
      %v5223 = vadd.f32 %v4633, %v5147
      %v5224 = vadd.f32 %v4638, %v5152
      %v5225 = vadd.f32 %v4641, %v5155
      %v5226 = vadd.f32 %v4646, %v5160
      %v5227 = vadd.f32 %v4649, %v5163
      %v5228 = vadd.f32 %v4654, %v5168
      %v5229 = vadd.f32 %v4657, %v5171
      %v5230 = vadd.f32 %v4662, %v5176
      %v5231 = vadd.f32 %v4665, %v5179
      %v5232 = vadd.f32 %v4670, %v5184
      %v5233 = vadd.f32 %v4673, %v5187
      %v5234 = vadd.f32 %v4678, %v5192
      %v5235 = vadd.f32 %v4681, %v5195
      %v5236 = vadd.f32 %v4686, %v5200
      %v5237 = vadd.f32 %v4689, %v5203
      %v5238 = vld [vmem:[%s4] sm:$0x1]
      %v5240 = vlaneseq
      %v5241 = vshrl.u32 %v5240, 7
      %v5242 = vsub.s32 0, %v5241
      %v5243 = vrot.slane %v5238, %v5242
      %v5245 = vadd.f32 %v5206, %v5243
      %v5246 = vadd.f32 %v5207, %v5243
      %v5247 = vadd.f32 %v5208, %v5243
      %v5248 = vadd.f32 %v5209, %v5243
      %v5249 = vadd.f32 %v5210, %v5243
      %v5250 = vadd.f32 %v5211, %v5243
      %v5251 = vadd.f32 %v5212, %v5243
      %v5252 = vadd.f32 %v5213, %v5243
      %v5253 = vadd.f32 %v5214, %v5243
      %v5254 = vadd.f32 %v5215, %v5243
      %v5255 = vadd.f32 %v5216, %v5243
      %v5256 = vadd.f32 %v5217, %v5243
      %v5257 = vadd.f32 %v5218, %v5243
      %v5258 = vadd.f32 %v5219, %v5243
      %v5259 = vadd.f32 %v5220, %v5243
      %v5260 = vadd.f32 %v5221, %v5243
      %v5261 = vadd.f32 %v5222, %v5243
      %v5262 = vadd.f32 %v5223, %v5243
      %v5263 = vadd.f32 %v5224, %v5243
      %v5264 = vadd.f32 %v5225, %v5243
      %v5265 = vadd.f32 %v5226, %v5243
      %v5266 = vadd.f32 %v5227, %v5243
      %v5267 = vadd.f32 %v5228, %v5243
      %v5268 = vadd.f32 %v5229, %v5243
      %v5269 = vadd.f32 %v5230, %v5243
      %v5270 = vadd.f32 %v5231, %v5243
      %v5271 = vadd.f32 %v5232, %v5243
      %v5272 = vadd.f32 %v5233, %v5243
      %v5273 = vadd.f32 %v5234, %v5243
      %v5274 = vadd.f32 %v5235, %v5243
      %v5275 = vadd.f32 %v5236, %v5243
      %v5276 = vadd.f32 %v5237, %v5243
      %vm5309 = vcmask 1040384
      %v5310 = vrot.slane %v5245, 7
      %v5311 = vrot.slane %v5246, 7
      %v5312 = vsel %vm5309, %v5310, %v5311
      %v5313 = vrot.slane %v5247, 7
      %v5314 = vrot.slane %v5248, 7
      %v5315 = vsel %vm5309, %v5313, %v5314
      %v5316 = vrot.slane %v5249, 7
      %v5317 = vrot.slane %v5250, 7
      %v5318 = vsel %vm5309, %v5316, %v5317
      %v5319 = vrot.slane %v5251, 7
      %v5320 = vrot.slane %v5252, 7
      %v5321 = vsel %vm5309, %v5319, %v5320
      %v5322 = vrot.slane %v5253, 7
      %v5323 = vrot.slane %v5254, 7
      %v5324 = vsel %vm5309, %v5322, %v5323
      %v5325 = vrot.slane %v5255, 7
      %v5326 = vrot.slane %v5256, 7
      %v5327 = vsel %vm5309, %v5325, %v5326
      %v5328 = vrot.slane %v5257, 7
      %v5329 = vrot.slane %v5258, 7
      %v5330 = vsel %vm5309, %v5328, %v5329
      %v5331 = vrot.slane %v5259, 7
      %v5332 = vrot.slane %v5260, 7
      %v5333 = vsel %vm5309, %v5331, %v5332
      %v5334 = vrot.slane %v5261, 7
      %v5335 = vrot.slane %v5262, 7
      %v5336 = vsel %vm5309, %v5334, %v5335
      %v5337 = vrot.slane %v5263, 7
      %v5338 = vrot.slane %v5264, 7
      %v5339 = vsel %vm5309, %v5337, %v5338
      %v5340 = vrot.slane %v5265, 7
      %v5341 = vrot.slane %v5266, 7
      %v5342 = vsel %vm5309, %v5340, %v5341
      %v5343 = vrot.slane %v5267, 7
      %v5344 = vrot.slane %v5268, 7
      %v5345 = vsel %vm5309, %v5343, %v5344
      %v5346 = vrot.slane %v5269, 7
      %v5347 = vrot.slane %v5270, 7
      %v5348 = vsel %vm5309, %v5346, %v5347
      %v5349 = vrot.slane %v5271, 7
      %v5350 = vrot.slane %v5272, 7
      %v5351 = vsel %vm5309, %v5349, %v5350
      %v5352 = vrot.slane %v5273, 7
      %v5353 = vrot.slane %v5274, 7
      %v5354 = vsel %vm5309, %v5352, %v5353
      %v5355 = vrot.slane %v5275, 7
      %v5356 = vrot.slane %v5276, 7
      %v5357 = vsel %vm5309, %v5355, %v5356
      %v5406 = vadd.f32 %v670, %v5310
      %v5407 = vadd.f32 %v671, %v5312
      %v5408 = vadd.f32 %v672, %v5311
      %v5409 = vadd.f32 %v673, %v5313
      %v5410 = vadd.f32 %v674, %v5315
      %v5411 = vadd.f32 %v675, %v5314
      %v5412 = vadd.f32 %v676, %v5316
      %v5413 = vadd.f32 %v677, %v5318
      %v5414 = vadd.f32 %v678, %v5317
      %v5415 = vadd.f32 %v679, %v5319
      %v5416 = vadd.f32 %v680, %v5321
      %v5417 = vadd.f32 %v681, %v5320
      %v5418 = vadd.f32 %v682, %v5322
      %v5419 = vadd.f32 %v683, %v5324
      %v5420 = vadd.f32 %v684, %v5323
      %v5421 = vadd.f32 %v685, %v5325
      %v5422 = vadd.f32 %v686, %v5327
      %v5423 = vadd.f32 %v687, %v5326
      %v5424 = vadd.f32 %v688, %v5328
      %v5425 = vadd.f32 %v689, %v5330
      %v5426 = vadd.f32 %v690, %v5329
      %v5427 = vadd.f32 %v691, %v5331
      %v5428 = vadd.f32 %v692, %v5333
      %v5429 = vadd.f32 %v693, %v5332
      %v5430 = vadd.f32 %v694, %v5334
      %v5431 = vadd.f32 %v695, %v5336
      %v5432 = vadd.f32 %v696, %v5335
      %v5433 = vadd.f32 %v697, %v5337
      %v5434 = vadd.f32 %v698, %v5339
      %v5435 = vadd.f32 %v699, %v5338
      %v5436 = vadd.f32 %v700, %v5340
      %v5437 = vadd.f32 %v701, %v5342
      %v5438 = vadd.f32 %v702, %v5341
      %v5439 = vadd.f32 %v703, %v5343
      %v5440 = vadd.f32 %v704, %v5345
      %v5441 = vadd.f32 %v705, %v5344
      %v5442 = vadd.f32 %v706, %v5346
      %v5443 = vadd.f32 %v707, %v5348
      %v5444 = vadd.f32 %v708, %v5347
      %v5445 = vadd.f32 %v709, %v5349
      %v5446 = vadd.f32 %v710, %v5351
      %v5447 = vadd.f32 %v711, %v5350
      %v5448 = vadd.f32 %v712, %v5352
      %v5449 = vadd.f32 %v713, %v5354
      %v5450 = vadd.f32 %v714, %v5353
      %v5451 = vadd.f32 %v715, %v5355
      %v5452 = vadd.f32 %v716, %v5357
      %v5453 = vadd.f32 %v717, %v5356
      %5454 = vst [vmem:[%s202 - $0x1] sm:$0xfe] %v5406
      %5455 = vst [vmem:[%s202 + $0x7] sm:$0xff] %v5407
      %5456 = vst [vmem:[%s202 + $0xf] sm:$0x1] %v5408
      %5457 = vst [vmem:[%s202 + $0xf] sm:$0xfe] %v5409
      %5458 = vst [vmem:[%s202 + $0x17] sm:$0xff] %v5410
      %5459 = vst [vmem:[%s202 + $0x1f] sm:$0x1] %v5411
      %5460 = vst [vmem:[%s202 + $0x1f] sm:$0xfe] %v5412
      %5461 = vst [vmem:[%s202 + $0x27] sm:$0xff] %v5413
      %5462 = vst [vmem:[%s202 + $0x2f] sm:$0x1] %v5414
      %5463 = vst [vmem:[%s202 + $0x2f] sm:$0xfe] %v5415
      %5464 = vst [vmem:[%s202 + $0x37] sm:$0xff] %v5416
      %5465 = vst [vmem:[%s202 + $0x3f] sm:$0x1] %v5417
      %5466 = vst [vmem:[%s202 + $0x3f] sm:$0xfe] %v5418
      %5467 = vst [vmem:[%s202 + $0x47] sm:$0xff] %v5419
      %5468 = vst [vmem:[%s202 + $0x4f] sm:$0x1] %v5420
      %5469 = vst [vmem:[%s202 + $0x4f] sm:$0xfe] %v5421
      %5470 = vst [vmem:[%s202 + $0x57] sm:$0xff] %v5422
      %5471 = vst [vmem:[%s202 + $0x5f] sm:$0x1] %v5423
      %5472 = vst [vmem:[%s202 + $0x5f] sm:$0xfe] %v5424
      %5473 = vst [vmem:[%s202 + $0x67] sm:$0xff] %v5425
      %5474 = vst [vmem:[%s202 + $0x6f] sm:$0x1] %v5426
      %5475 = vst [vmem:[%s202 + $0x6f] sm:$0xfe] %v5427
      %5476 = vst [vmem:[%s202 + $0x77] sm:$0xff] %v5428
      %5477 = vst [vmem:[%s202 + $0x7f] sm:$0x1] %v5429
      %5478 = vst [vmem:[%s202 + $0x7f] sm:$0xfe] %v5430
      %5479 = vst [vmem:[%s202 + $0x87] sm:$0xff] %v5431
      %5480 = vst [vmem:[%s202 + $0x8f] sm:$0x1] %v5432
      %5481 = vst [vmem:[%s202 + $0x8f] sm:$0xfe] %v5433
      %5482 = vst [vmem:[%s202 + $0x97] sm:$0xff] %v5434
      %5483 = vst [vmem:[%s202 + $0x9f] sm:$0x1] %v5435
      %5484 = vst [vmem:[%s202 + $0x9f] sm:$0xfe] %v5436
      %5485 = vst [vmem:[%s202 + $0xa7] sm:$0xff] %v5437
      %5486 = vst [vmem:[%s202 + $0xaf] sm:$0x1] %v5438
      %5487 = vst [vmem:[%s202 + $0xaf] sm:$0xfe] %v5439
      %5488 = vst [vmem:[%s202 + $0xb7] sm:$0xff] %v5440
      %5489 = vst [vmem:[%s202 + $0xbf] sm:$0x1] %v5441
      %5490 = vst [vmem:[%s202 + $0xbf] sm:$0xfe] %v5442
      %5491 = vst [vmem:[%s202 + $0xc7] sm:$0xff] %v5443
      %5492 = vst [vmem:[%s202 + $0xcf] sm:$0x1] %v5444
      %5493 = vst [vmem:[%s202 + $0xcf] sm:$0xfe] %v5445
      %5494 = vst [vmem:[%s202 + $0xd7] sm:$0xff] %v5446
      %5495 = vst [vmem:[%s202 + $0xdf] sm:$0x1] %v5447
      %5496 = vst [vmem:[%s202 + $0xdf] sm:$0xfe] %v5448
      %5497 = vst [vmem:[%s202 + $0xe7] sm:$0xff] %v5449
      %5498 = vst [vmem:[%s202 + $0xef] sm:$0x1] %v5450
      %5499 = vst [vmem:[%s202 + $0xef] sm:$0xfe] %v5451
      %5500 = vst [vmem:[%s202 + $0xf7] sm:$0xff] %v5452
      %5501 = vst [vmem:[%s202 + $0xff] sm:$0x1] %v5453
      %s5502 = smul.u32 16, %s21
      %p5503 = scmp.lt.s32.totalorder %s20, 1
      %s5504 = scalar_select %p5503, %s20, 1
      %p5505 = scmp.lt.s32.totalorder %s5502, 15
      %s5506 = scalar_select %p5505, %s5502, 15
      %s5507 = smul.addr %s5506, 2
      %s5508 = smul.addr %s5504, 32
      %s5509 = sadd.s32 %s5507, %s5508
      %s5510 = smul.addr %s5509, 8
      %s5511 = scalar_lea.vmem %s5, %s5510
      // Predicated region
      $region119: #{resblock2d_pallas.1} parent=35 // pred_check
        %p5512 = pneg %p132
      $region120: #{resblock2d_pallas.1} parent=35 // pred_check_branch
        %5514 = sbr.rel (%p5512) target = $region122
      $region121: #{resblock2d_pallas.1} parent=35 // pred_region
        %s5515 = smul.u32 16, %s21
      $region122: #{resblock2d_pallas.1} parent=35 // pred_fallthru
        _
    $region36: #{resblock2d_pallas.1} parent=5 // pred_fallthru
      _
    %p5516 = scmp.le.s32.totalorder 2, %s11
    // Predicated region
    $region123: #{resblock2d_pallas.1} parent=5 // pred_check
      %p5517 = pneg %p5516
    $region124: #{resblock2d_pallas.1} parent=5 // pred_check_branch
      %5519 = sbr.rel (%p5517) target = $region126
    $region125: #{resblock2d_pallas.1} parent=5 // pred_region
      %s5520 = ssub.s32 %s11, 2
      // Predicated region
      $region127: #{resblock2d_pallas.1} parent=125 // pred_check
        %p5521 = pneg %p138
      $region128: #{resblock2d_pallas.1} parent=125 // pred_check_branch
        %5523 = sbr.rel (%p5521) target = $region130
      $region129: #{resblock2d_pallas.1} parent=125 // pred_region
        %s5524 = smul.u32 16, %s23
        %p5525 = scmp.lt.s32.totalorder %s22, 1
        %s5526 = scalar_select %p5525, %s22, 1
        %p5527 = scmp.lt.s32.totalorder %s5524, 15
        %s5528 = scalar_select %p5527, %s5524, 15
        %s5529 = smul.addr %s5528, 2
        %s5530 = smul.addr %s5526, 32
        %s5531 = sadd.s32 %s5529, %s5530
        %s5532 = smul.addr %s5531, 8
        %s5533 = scalar_lea.vmem %s5, %s5532
      $region130: #{resblock2d_pallas.1} parent=125 // pred_fallthru
        _
    $region126: #{resblock2d_pallas.1} parent=5 // pred_fallthru
      _
  $region6: #{resblock2d_pallas.1} parent=0 // loop_footer
    %s15 = sadd.s32 1, %s11
  $region7: #{resblock2d_pallas.1} parent=0 // loop_footer_branch
    %10 = sbr.rel target = $region3
  $region8: #{resblock2d_pallas.1} parent=0 // loop_exit
    _
  %5534 = vsyncmov [#allocation4]
  %s5535 = vpop.sfrf %5534
  %p5536 = scmp.eq.s32.totalorder %s5535, 0
  %p5537 = pneg %p5536
  %5539 = shalt.err (%p5537)
  %s5540 = scalar_lea.sflag [#allocation4], 1
  %5541 = vsyncmov %s5540
  %s5542 = vpop.sfrf %5541
  %p5543 = scmp.eq.s32.totalorder %s5542, 0
  %p5544 = pneg %p5543
  %5546 = shalt.err (%p5544)

</llo_original>
